<compile_context>
chip_gen: v7x
topology: tpu7x:2x2x1
jax: 0.10.0
libtpu: 0.0.40
codegen_flags: <defaults>
</compile_context>

<pallas_src>
import functools

import jax
import jax.numpy as jnp
from jax import lax
from jax.experimental import pallas as pl
from jax.experimental.pallas import tpu as pltpu


def _gatconv_kernel(x_all_ref, x_dst_ref, wt_ref, trans_ref, edge_ref, out_ref, *,
                    num_heads, out_feats, topk_T):
    """One dst-row tile: fc + RoHe kill mask + per-head edge-softmax/aggregation."""
    H, F = num_heads, out_feats
    NEG = jnp.float32(-9e15)        # exact kill value (matches the reference)
    BIG_NEG = jnp.float32(-3e38)    # non-edge bias (dominated; never produces +inf in exp)
    dn = (((1,), (1,)), ((), ()))   # contract last dims of both operands (A @ B^T, no transpose)

    # ---- fc: Z = X @ W^T  (weight arrives pre-transposed as (D_in, H*F)) -- MXU, f32
    z = jnp.dot(x_all_ref[...], wt_ref[...], preferred_element_type=jnp.float32)   # (N,   H*F)
    zd = jnp.dot(x_dst_ref[...], wt_ref[...], preferred_element_type=jnp.float32)  # (td,  H*F)

    # ---- head-invariant RoHe mask for this dst tile (f32 end-to-end) --------
    # sum_h <Z_h[d], Z_h[s]> == <Z[d], Z[s]> -> one full-width Gram, transpose-free.
    s_sum = lax.dot_general(zd, z, dn, preferred_element_type=jnp.float32)          # (td, N)
    # trans_ref is pre-masked by the adjacency in the wrapper (exactly 0 off-edge).
    M = trans_ref[...] * s_sum                                                      # rows = dst tile

    # thr[d] = clamp(T-th largest of M[d,:], min=0).  One XLU max + one VPU select
    # per iteration; removes the largest *distinct* value each round.  Rows whose
    # top-T reaches into the (many) exact zeros still end at a value <= 0, which
    # the clamp maps to 0 -- the same threshold torch.topk produces there.
    vals = M
    for _ in range(topk_T - 1):
        rmax = jnp.max(vals, axis=-1, keepdims=True)
        vals = jnp.where(vals == rmax, -jnp.inf, vals)
    thr = jnp.maximum(jnp.max(vals, axis=-1, keepdims=True), 0.0)                   # (td, 1)

    # Edge s->d (d in this tile) is killed iff M[d, s] < thr[d]; already in
    # [dst, src] orientation, shared by all heads, no transpose anywhere.
    kill = M < thr                                                                  # (td, N)

    # in-edge mask arrives pre-oriented (rows = dst) as int8
    edge = edge_ref[...].astype(jnp.float32) > 0.0                                  # (td, N)
    edge_bias = jnp.where(edge, 0.0, BIG_NEG)   # hoisted out of the head loop

    # ---- per-head scores, edge-softmax, aggregation (bf16 MXU inputs) -------
    z_bf = z.astype(jnp.bfloat16)
    zd_bf = zd.astype(jnp.bfloat16)

    for h in range(H):
        zh = z_bf[:, h * F:(h + 1) * F]                                             # (N,  F) bf16
        zdh = zd_bf[:, h * F:(h + 1) * F]                                           # (td, F) bf16
        sh = lax.dot_general(zdh, zh, dn, preferred_element_type=jnp.float32)       # (td, N) f32

        # killed edges get exactly NEG (edge_bias is 0 there) -> identical
        # uniform-attention behavior to the reference when every in-edge of a
        # node is killed; non-edges sink to ~-3e38 and are zeroed below anyway.
        scores = jnp.where(kill, NEG, sh) + edge_bias
        rmax = jnp.max(scores, axis=-1, keepdims=True)                              # (td, 1)
        # scores - rmax <= 0 always, so exp never overflows to +inf.
        p = jnp.where(edge, jnp.exp(scores - rmax), 0.0)
        denom = jnp.sum(p, axis=-1, keepdims=True)
        inv = jnp.where(denom > 0.0, pl.reciprocal(denom, approx=True), 0.0)        # EUP slot
        a = p * inv                                                                 # (td, N), rows w/o in-edges -> 0

        # rst_h[d, :] = sum_s a[d, s] * Z_h[s, :]  -> straight into the output slab
        out_ref[:, h * F:(h + 1) * F] = jnp.dot(
            a.astype(jnp.bfloat16), zh, preferred_element_type=jnp.float32)


def gatconv_forward(x, fc_w, adj, trans, *, num_heads, out_feats, topk_T,
                    dst_tile=None):
    """x: (N, D_in) f32; fc_w: (H*F, D_in) f32 (PyTorch nn.Linear layout);
    adj/trans: (N, N) f32 dense [src, dst].  Returns (N, num_heads, out_feats)."""
    N, d_in = x.shape
    HF = num_heads * out_feats
    if dst_tile is None:
        dst_tile = N if N <= 128 else 128
    assert N % dst_tile == 0 and dst_tile % 8 == 0, "dst_tile must tile N and be sublane-aligned"

    # one-time wrapper-side graph preprocessing (free relative to per-call work)
    wt = jnp.asarray(fc_w, jnp.float32).T                          # (D_in, H*F)
    trans_m = jnp.where(adj > 0.0, trans, 0.0).astype(jnp.float32)  # [src, dst], exactly 0 off-edge
    edge_in = (adj.T > 0.0).astype(jnp.int8)                        # [dst, src] in-edge mask, int8

    kernel = functools.partial(_gatconv_kernel, num_heads=num_heads,
                               out_feats=out_feats, topk_T=topk_T)

    out2d = pl.pallas_call(
        kernel,
        grid=(N // dst_tile,),                                       # dst-row tiles
        in_specs=[
            pl.BlockSpec((N, d_in), lambda i: (0, 0)),               # X (grid-invariant, DMA'd once)
            pl.BlockSpec((dst_tile, d_in), lambda i: (i, 0)),        # X rows of this dst tile
            pl.BlockSpec((d_in, HF), lambda i: (0, 0)),              # W^T (grid-invariant)
            pl.BlockSpec((dst_tile, N), lambda i: (i, 0)),           # TransM rows (out-edges of dst tile)
            pl.BlockSpec((dst_tile, N), lambda i: (i, 0)),           # in-edge mask rows, int8
        ],
        out_specs=pl.BlockSpec((dst_tile, HF), lambda i: (i, 0)),    # lane-dense (td, H*F)
        out_shape=jax.ShapeDtypeStruct((N, HF), jnp.float32),
        compiler_params=pltpu.CompilerParams(
            dimension_semantics=("parallel",),                       # both TCs on v7x
            vmem_limit_bytes=48 * 1024 * 1024),                      # explicit headroom (< 64 MiB v7x physical)
    )(x, x, wt, trans_m, edge_in)

    # free view: (N, H*F) -> (N, num_heads, out_feats), matches PyTorch rst layout
    return out2d.reshape(N, num_heads, out_feats)


def _gatconv_reference(x, fc_w, adj, trans, *, num_heads, out_feats, topk_T,
                       match_kernel_precision=False):
    """Pure-JAX reference mirroring the PyTorch forward.  With
    match_kernel_precision=True the softmax/aggregation matmul inputs are cast
    to bf16 exactly like the kernel (kill/threshold path stays f32)."""
    N = x.shape[0]
    H, F = num_heads, out_feats
    hp = lax.Precision.HIGHEST
    z = jnp.dot(x, fc_w.T, precision=hp)                           # (N, H*F)
    zh = z.reshape(N, H, F)
    e32 = jnp.einsum('shf,dhf->hsd', zh, zh, precision=hp)         # per-head scores [h, src, dst]
    M = jnp.where(adj > 0, trans * jnp.sum(e32, axis=0), 0.0)      # [src, dst]
    thr = jnp.maximum(lax.top_k(M, topk_T)[0][..., -1:], 0.0)
    masked = jnp.where(M < thr, -9e15, M)
    killed = masked.T < -100.0                                     # kill[s, d] for edge s->d
    if match_kernel_precision:
        zb = zh.astype(jnp.bfloat16)
        e = jnp.einsum('shf,dhf->hsd', zb, zb, preferred_element_type=jnp.float32)
    else:
        e = e32
    e = jnp.where(killed[None, :, :], -9e15, e)
    e_edges = jnp.where((adj > 0)[None], e, -jnp.inf)
    emax = jnp.max(e_edges, axis=1, keepdims=True)                 # per (h, dst), over src
    p = jnp.where((adj > 0)[None], jnp.exp(e - emax), 0.0)
    denom = jnp.sum(p, axis=1, keepdims=True)
    a = jnp.where(denom > 0, p / denom, 0.0)                       # (H, src, dst)
    if match_kernel_precision:
        rst = jnp.einsum('hsd,shf->dhf', a.astype(jnp.bfloat16), zh.astype(jnp.bfloat16),
                         preferred_element_type=jnp.float32)
    else:
        rst = jnp.einsum('hsd,shf->dhf', a, zh, precision=hp)
    return rst


if __name__ == "__main__":
    num_heads, out_feats, topk_T = 8, 16, 4     # num_heads=8 is hard-coded in the module

    def make_case(key, N, in_feats, edge_p):
        k_x, k_w, k_adj, k_tr = jax.random.split(key, 4)
        x = jax.random.normal(k_x, (N, in_feats), dtype=jnp.float32)
        # xavier_normal_(fc.weight, gain=calculate_gain('relu')=sqrt(2)); layout (H*F, D_in)
        gain = 2.0 ** 0.5
        std = gain * (2.0 / (in_feats + num_heads * out_feats)) ** 0.5
        fc_w = (std * jax.random.normal(k_w, (num_heads * out_feats, in_feats))).astype(jnp.float32)
        # deterministic synthetic graph: random edges + self loops; adj[src, dst]
        rand = jax.random.uniform(k_adj, (N, N))
        adj = ((rand < edge_p) | jnp.eye(N, dtype=bool)).astype(jnp.float32)
        trans = (adj * jax.random.uniform(k_tr, (N, N))).astype(jnp.float32)
        return x, fc_w, adj, trans

    key = jax.random.PRNGKey(0)
    k1, k2 = jax.random.split(key)

    # ---- case 1: N=64, single dst tile (grid=(1,)) -------------------------
    x, fc_w, adj, trans = make_case(k1, 64, 32, 0.15)
    rst = gatconv_forward(x, fc_w, adj, trans, num_heads=num_heads,
                          out_feats=out_feats, topk_T=topk_T)
    rst = jax.block_until_ready(rst)
    assert rst.shape == (64, num_heads, out_feats)
    assert bool(jnp.all(jnp.isfinite(rst)))

    # (i) tight check vs a precision-matched reference (same bf16 softmax/agg
    # inputs) -- validates the fused mask / softmax / aggregation logic.  The
    # top-T threshold is a hard cut, so a ~1-ulp f32 Gram difference can flip a
    # single edge's kill decision; require an overwhelming majority match.
    ref_m = _gatconv_reference(x, fc_w, adj, trans, num_heads=num_heads,
                               out_feats=out_feats, topk_T=topk_T,
                               match_kernel_precision=True)
    tol = 2e-3 + 2e-2 * jnp.abs(ref_m)
    frac = float(jnp.mean((jnp.abs(rst - ref_m) <= tol).astype(jnp.float32)))
    assert frac > 0.97, f"only {frac:.4f} of outputs match the matched-precision reference"

    # (ii) loose check vs the full-f32 reference -- documents the deliberate
    # bf16 precision trade on the softmax/aggregation path.
    ref_f = _gatconv_reference(x, fc_w, adj, trans, num_heads=num_heads,
                               out_feats=out_feats, topk_T=topk_T,
                               match_kernel_precision=False)
    tol_f = 3e-2 + 1e-1 * jnp.abs(ref_f)
    frac_f = float(jnp.mean((jnp.abs(rst - ref_f) <= tol_f).astype(jnp.float32)))
    assert frac_f > 0.90, f"only {frac_f:.4f} of outputs near the f32 reference"

    # ---- case 2: N=256, two dst tiles (grid=(2,), "parallel") --------------
    x2, fc_w2, adj2, trans2 = make_case(k2, 256, 32, 0.05)
    rst2 = gatconv_forward(x2, fc_w2, adj2, trans2, num_heads=num_heads,
                           out_feats=out_feats, topk_T=topk_T, dst_tile=128)
    rst2 = jax.block_until_ready(rst2)
    assert rst2.shape == (256, num_heads, out_feats)
    assert bool(jnp.all(jnp.isfinite(rst2)))
    ref2 = _gatconv_reference(x2, fc_w2, adj2, trans2, num_heads=num_heads,
                              out_feats=out_feats, topk_T=topk_T,
                              match_kernel_precision=True)
    tol2 = 2e-3 + 2e-2 * jnp.abs(ref2)
    frac2 = float(jnp.mean((jnp.abs(rst2 - ref2) <= tol2).astype(jnp.float32)))
    assert frac2 > 0.97, f"only {frac2:.4f} of tiled-grid outputs match the reference"

    print("KERNEL_OK")
</pallas_src>

<mosaic_0001>
module attributes {stable_mosaic.version = 11 : i64} {
  func.func @_gatconv_kernel(%arg0: i32, %arg1: memref<64x32xf32, #tpu.memory_space<vmem>>, %arg2: memref<64x32xf32, #tpu.memory_space<vmem>>, %arg3: memref<32x128xf32, #tpu.memory_space<vmem>>, %arg4: memref<64x64xf32, #tpu.memory_space<vmem>>, %arg5: memref<64x64xi8, #tpu.memory_space<vmem>>, %arg6: memref<64x128xf32, #tpu.memory_space<vmem>>) attributes {dimension_semantics = [#tpu.dimension_semantics<parallel>], iteration_bounds = array<i64: 1>, scalar_prefetch = 0 : i64, scratch_operands = 0 : i64, tpu.core_type = #tpu.core_type<tc>, window_params = [{pipeline_mode = #tpu.pipeline_mode<synchronous>, transform_indices = @transform_0, window_bounds = array<i64: 64, 32>}, {transform_indices = @transform_1, window_bounds = array<i64: 64, 32>}, {pipeline_mode = #tpu.pipeline_mode<synchronous>, transform_indices = @transform_2, window_bounds = array<i64: 32, 128>}, {transform_indices = @transform_3, window_bounds = array<i64: 64, 64>}, {transform_indices = @transform_4, window_bounds = array<i64: 64, 64>}, {transform_indices = @transform_5, window_bounds = array<i64: 64, 128>}]} {
    %c0 = arith.constant 0 : index
    %c0_0 = arith.constant 0 : index
    %0 = vector.load %arg1[%c0, %c0_0] : memref<64x32xf32, #tpu.memory_space<vmem>>, vector<64x32xf32>
    %c0_1 = arith.constant 0 : index
    %c0_2 = arith.constant 0 : index
    %1 = vector.load %arg3[%c0_1, %c0_2] : memref<32x128xf32, #tpu.memory_space<vmem>>, vector<32x128xf32>
    %cst = arith.constant dense<0.000000e+00> : vector<64x128xf32>
    %2 = tpu.matmul %0, %1, %cst {dimension_numbers = #tpu.dot_dimension_numbers<[1], [0], [0], [1], [0, 0, 1, 1], [], []>} : vector<64x32xf32>, vector<32x128xf32>, vector<64x128xf32> -> vector<64x128xf32>
    %c0_3 = arith.constant 0 : index
    %c0_4 = arith.constant 0 : index
    %3 = vector.load %arg2[%c0_3, %c0_4] : memref<64x32xf32, #tpu.memory_space<vmem>>, vector<64x32xf32>
    %c0_5 = arith.constant 0 : index
    %c0_6 = arith.constant 0 : index
    %4 = vector.load %arg3[%c0_5, %c0_6] : memref<32x128xf32, #tpu.memory_space<vmem>>, vector<32x128xf32>
    %cst_7 = arith.constant dense<0.000000e+00> : vector<64x128xf32>
    %5 = tpu.matmul %3, %4, %cst_7 {dimension_numbers = #tpu.dot_dimension_numbers<[1], [0], [0], [1], [0, 0, 1, 1], [], []>} : vector<64x32xf32>, vector<32x128xf32>, vector<64x128xf32> -> vector<64x128xf32>
    %cst_8 = arith.constant dense<0.000000e+00> : vector<64x64xf32>
    %6 = tpu.matmul %5, %2, %cst_8 {dimension_numbers = #tpu.dot_dimension_numbers<[1], [1], [0], [0], [0, 0, 1, 0], [], []>} : vector<64x128xf32>, vector<64x128xf32>, vector<64x64xf32> -> vector<64x64xf32>
    %c0_9 = arith.constant 0 : index
    %c0_10 = arith.constant 0 : index
    %7 = vector.load %arg4[%c0_9, %c0_10] : memref<64x64xf32, #tpu.memory_space<vmem>>, vector<64x64xf32>
    %8 = arith.mulf %7, %6 : vector<64x64xf32>
    %cst_11 = arith.constant dense<0xFF800000> : vector<64xf32>
    %9 = vector.multi_reduction <maximumf>, %8, %cst_11 [1] : vector<64x64xf32> to vector<64xf32>
    %10 = vector.shape_cast %9 : vector<64xf32> to vector<64x1xf32>
    %11 = vector.broadcast %10 : vector<64x1xf32> to vector<64x64xf32>
    %12 = arith.cmpf oeq, %8, %11 : vector<64x64xf32>
    %cst_12 = arith.constant 0xFF800000 : f32
    %13 = vector.broadcast %cst_12 : f32 to vector<64x64xf32>
    %14 = arith.select %12, %13, %8 : vector<64x64xi1>, vector<64x64xf32>
    %cst_13 = arith.constant dense<0xFF800000> : vector<64xf32>
    %15 = vector.multi_reduction <maximumf>, %14, %cst_13 [1] : vector<64x64xf32> to vector<64xf32>
    %16 = vector.shape_cast %15 : vector<64xf32> to vector<64x1xf32>
    %17 = vector.broadcast %16 : vector<64x1xf32> to vector<64x64xf32>
    %18 = arith.cmpf oeq, %14, %17 : vector<64x64xf32>
    %cst_14 = arith.constant 0xFF800000 : f32
    %19 = vector.broadcast %cst_14 : f32 to vector<64x64xf32>
    %20 = arith.select %18, %19, %14 : vector<64x64xi1>, vector<64x64xf32>
    %cst_15 = arith.constant dense<0xFF800000> : vector<64xf32>
    %21 = vector.multi_reduction <maximumf>, %20, %cst_15 [1] : vector<64x64xf32> to vector<64xf32>
    %22 = vector.shape_cast %21 : vector<64xf32> to vector<64x1xf32>
    %23 = vector.broadcast %22 : vector<64x1xf32> to vector<64x64xf32>
    %24 = arith.cmpf oeq, %20, %23 : vector<64x64xf32>
    %cst_16 = arith.constant 0xFF800000 : f32
    %25 = vector.broadcast %cst_16 : f32 to vector<64x64xf32>
    %26 = arith.select %24, %25, %20 : vector<64x64xi1>, vector<64x64xf32>
    %cst_17 = arith.constant dense<0xFF800000> : vector<64xf32>
    %27 = vector.multi_reduction <maximumf>, %26, %cst_17 [1] : vector<64x64xf32> to vector<64xf32>
    %28 = vector.shape_cast %27 : vector<64xf32> to vector<64x1xf32>
    %cst_18 = arith.constant 0.000000e+00 : f32
    %29 = vector.broadcast %cst_18 : f32 to vector<64x1xf32>
    %30 = arith.maximumf %28, %29 : vector<64x1xf32>
    %31 = vector.broadcast %30 : vector<64x1xf32> to vector<64x64xf32>
    %32 = arith.cmpf olt, %8, %31 : vector<64x64xf32>
    %c0_19 = arith.constant 0 : index
    %c0_20 = arith.constant 0 : index
    %33 = vector.load %arg5[%c0_19, %c0_20] : memref<64x64xi8, #tpu.memory_space<vmem>>, vector<64x64xi8>
    %34 = arith.sitofp %33 : vector<64x64xi8> to vector<64x64xf32>
    %cst_21 = arith.constant 0.000000e+00 : f32
    %35 = vector.broadcast %cst_21 : f32 to vector<64x64xf32>
    %36 = arith.cmpf ogt, %34, %35 : vector<64x64xf32>
    %cst_22 = arith.constant 0.000000e+00 : f32
    %cst_23 = arith.constant -3.000000e+38 : f32
    %37 = vector.broadcast %cst_22 : f32 to vector<64x64xf32>
    %38 = vector.broadcast %cst_23 : f32 to vector<64x64xf32>
    %39 = arith.select %36, %37, %38 : vector<64x64xi1>, vector<64x64xf32>
    %40 = arith.truncf %2 : vector<64x128xf32> to vector<64x128xbf16>
    %41 = arith.truncf %5 : vector<64x128xf32> to vector<64x128xbf16>
    %42 = vector.extract_strided_slice %40 {offsets = [0, 0], sizes = [64, 16], strides = [1, 1]} : vector<64x128xbf16> to vector<64x16xbf16>
    %43 = vector.extract_strided_slice %41 {offsets = [0, 0], sizes = [64, 16], strides = [1, 1]} : vector<64x128xbf16> to vector<64x16xbf16>
    %cst_24 = arith.constant dense<0.000000e+00> : vector<64x64xf32>
    %44 = tpu.matmul %43, %42, %cst_24 {dimension_numbers = #tpu.dot_dimension_numbers<[1], [1], [0], [0], [0, 0, 1, 0], [], []>} : vector<64x16xbf16>, vector<64x16xbf16>, vector<64x64xf32> -> vector<64x64xf32>
    %cst_25 = arith.constant -9.000000e+15 : f32
    %45 = vector.broadcast %cst_25 : f32 to vector<64x64xf32>
    %46 = arith.select %32, %45, %44 : vector<64x64xi1>, vector<64x64xf32>
    %47 = arith.addf %46, %39 : vector<64x64xf32>
    %cst_26 = arith.constant dense<0xFF800000> : vector<64xf32>
    %48 = vector.multi_reduction <maximumf>, %47, %cst_26 [1] : vector<64x64xf32> to vector<64xf32>
    %49 = vector.shape_cast %48 : vector<64xf32> to vector<64x1xf32>
    %50 = vector.broadcast %49 : vector<64x1xf32> to vector<64x64xf32>
    %51 = arith.subf %47, %50 : vector<64x64xf32>
    %52 = math.exp %51 : vector<64x64xf32>
    %cst_27 = arith.constant 0.000000e+00 : f32
    %53 = vector.broadcast %cst_27 : f32 to vector<64x64xf32>
    %54 = arith.select %36, %52, %53 : vector<64x64xi1>, vector<64x64xf32>
    %cst_28 = arith.constant dense<0.000000e+00> : vector<64xf32>
    %55 = vector.multi_reduction <add>, %54, %cst_28 [1] : vector<64x64xf32> to vector<64xf32>
    %56 = vector.shape_cast %55 : vector<64xf32> to vector<64x1xf32>
    %cst_29 = arith.constant 0.000000e+00 : f32
    %57 = vector.broadcast %cst_29 : f32 to vector<64x1xf32>
    %58 = arith.cmpf ogt, %56, %57 : vector<64x1xf32>
    %59 = tpu.reciprocal %56 {approx = true} : vector<64x1xf32> -> vector<64x1xf32>
    %cst_30 = arith.constant 0.000000e+00 : f32
    %60 = vector.broadcast %cst_30 : f32 to vector<64x1xf32>
    %61 = arith.select %58, %59, %60 : vector<64x1xi1>, vector<64x1xf32>
    %62 = vector.broadcast %61 : vector<64x1xf32> to vector<64x64xf32>
    %63 = arith.mulf %54, %62 : vector<64x64xf32>
    %64 = arith.truncf %63 : vector<64x64xf32> to vector<64x64xbf16>
    %cst_31 = arith.constant dense<0.000000e+00> : vector<64x16xf32>
    %65 = tpu.matmul %64, %42, %cst_31 {dimension_numbers = #tpu.dot_dimension_numbers<[1], [0], [0], [1], [0, 0, 1, 1], [], []>} : vector<64x64xbf16>, vector<64x16xbf16>, vector<64x16xf32> -> vector<64x16xf32>
    %c0_32 = arith.constant 0 : index
    %c0_33 = arith.constant 0 : index
    %66 = vector.load %arg6[%c0_32, %c0_33] : memref<64x128xf32, #tpu.memory_space<vmem>>, vector<64x16xf32>
    tpu.vector_store %arg6[%c0_32, %c0_33], %65 {strides = array<i32>} : memref<64x128xf32, #tpu.memory_space<vmem>>, vector<64x16xf32>,
    %67 = vector.extract_strided_slice %40 {offsets = [0, 16], sizes = [64, 16], strides = [1, 1]} : vector<64x128xbf16> to vector<64x16xbf16>
    %68 = vector.extract_strided_slice %41 {offsets = [0, 16], sizes = [64, 16], strides = [1, 1]} : vector<64x128xbf16> to vector<64x16xbf16>
    %cst_34 = arith.constant dense<0.000000e+00> : vector<64x64xf32>
    %69 = tpu.matmul %68, %67, %cst_34 {dimension_numbers = #tpu.dot_dimension_numbers<[1], [1], [0], [0], [0, 0, 1, 0], [], []>} : vector<64x16xbf16>, vector<64x16xbf16>, vector<64x64xf32> -> vector<64x64xf32>
    %cst_35 = arith.constant -9.000000e+15 : f32
    %70 = vector.broadcast %cst_35 : f32 to vector<64x64xf32>
    %71 = arith.select %32, %70, %69 : vector<64x64xi1>, vector<64x64xf32>
    %72 = arith.addf %71, %39 : vector<64x64xf32>
    %cst_36 = arith.constant dense<0xFF800000> : vector<64xf32>
    %73 = vector.multi_reduction <maximumf>, %72, %cst_36 [1] : vector<64x64xf32> to vector<64xf32>
    %74 = vector.shape_cast %73 : vector<64xf32> to vector<64x1xf32>
    %75 = vector.broadcast %74 : vector<64x1xf32> to vector<64x64xf32>
    %76 = arith.subf %72, %75 : vector<64x64xf32>
    %77 = math.exp %76 : vector<64x64xf32>
    %cst_37 = arith.constant 0.000000e+00 : f32
    %78 = vector.broadcast %cst_37 : f32 to vector<64x64xf32>
    %79 = arith.select %36, %77, %78 : vector<64x64xi1>, vector<64x64xf32>
    %cst_38 = arith.constant dense<0.000000e+00> : vector<64xf32>
    %80 = vector.multi_reduction <add>, %79, %cst_38 [1] : vector<64x64xf32> to vector<64xf32>
    %81 = vector.shape_cast %80 : vector<64xf32> to vector<64x1xf32>
    %cst_39 = arith.constant 0.000000e+00 : f32
    %82 = vector.broadcast %cst_39 : f32 to vector<64x1xf32>
    %83 = arith.cmpf ogt, %81, %82 : vector<64x1xf32>
    %84 = tpu.reciprocal %81 {approx = true} : vector<64x1xf32> -> vector<64x1xf32>
    %cst_40 = arith.constant 0.000000e+00 : f32
    %85 = vector.broadcast %cst_40 : f32 to vector<64x1xf32>
    %86 = arith.select %83, %84, %85 : vector<64x1xi1>, vector<64x1xf32>
    %87 = vector.broadcast %86 : vector<64x1xf32> to vector<64x64xf32>
    %88 = arith.mulf %79, %87 : vector<64x64xf32>
    %89 = arith.truncf %88 : vector<64x64xf32> to vector<64x64xbf16>
    %cst_41 = arith.constant dense<0.000000e+00> : vector<64x16xf32>
    %90 = tpu.matmul %89, %67, %cst_41 {dimension_numbers = #tpu.dot_dimension_numbers<[1], [0], [0], [1], [0, 0, 1, 1], [], []>} : vector<64x64xbf16>, vector<64x16xbf16>, vector<64x16xf32> -> vector<64x16xf32>
    %c0_42 = arith.constant 0 : index
    %c16 = arith.constant 16 : index
    %91 = vector.load %arg6[%c0_42, %c16] : memref<64x128xf32, #tpu.memory_space<vmem>>, vector<64x16xf32>
    tpu.vector_store %arg6[%c0_42, %c16], %90 {strides = array<i32>} : memref<64x128xf32, #tpu.memory_space<vmem>>, vector<64x16xf32>,
    %92 = vector.extract_strided_slice %40 {offsets = [0, 32], sizes = [64, 16], strides = [1, 1]} : vector<64x128xbf16> to vector<64x16xbf16>
    %93 = vector.extract_strided_slice %41 {offsets = [0, 32], sizes = [64, 16], strides = [1, 1]} : vector<64x128xbf16> to vector<64x16xbf16>
    %cst_43 = arith.constant dense<0.000000e+00> : vector<64x64xf32>
    %94 = tpu.matmul %93, %92, %cst_43 {dimension_numbers = #tpu.dot_dimension_numbers<[1], [1], [0], [0], [0, 0, 1, 0], [], []>} : vector<64x16xbf16>, vector<64x16xbf16>, vector<64x64xf32> -> vector<64x64xf32>
    %cst_44 = arith.constant -9.000000e+15 : f32
    %95 = vector.broadcast %cst_44 : f32 to vector<64x64xf32>
    %96 = arith.select %32, %95, %94 : vector<64x64xi1>, vector<64x64xf32>
    %97 = arith.addf %96, %39 : vector<64x64xf32>
    %cst_45 = arith.constant dense<0xFF800000> : vector<64xf32>
    %98 = vector.multi_reduction <maximumf>, %97, %cst_45 [1] : vector<64x64xf32> to vector<64xf32>
    %99 = vector.shape_cast %98 : vector<64xf32> to vector<64x1xf32>
    %100 = vector.broadcast %99 : vector<64x1xf32> to vector<64x64xf32>
    %101 = arith.subf %97, %100 : vector<64x64xf32>
    %102 = math.exp %101 : vector<64x64xf32>
    %cst_46 = arith.constant 0.000000e+00 : f32
    %103 = vector.broadcast %cst_46 : f32 to vector<64x64xf32>
    %104 = arith.select %36, %102, %103 : vector<64x64xi1>, vector<64x64xf32>
    %cst_47 = arith.constant dense<0.000000e+00> : vector<64xf32>
    %105 = vector.multi_reduction <add>, %104, %cst_47 [1] : vector<64x64xf32> to vector<64xf32>
    %106 = vector.shape_cast %105 : vector<64xf32> to vector<64x1xf32>
    %cst_48 = arith.constant 0.000000e+00 : f32
    %107 = vector.broadcast %cst_48 : f32 to vector<64x1xf32>
    %108 = arith.cmpf ogt, %106, %107 : vector<64x1xf32>
    %109 = tpu.reciprocal %106 {approx = true} : vector<64x1xf32> -> vector<64x1xf32>
    %cst_49 = arith.constant 0.000000e+00 : f32
    %110 = vector.broadcast %cst_49 : f32 to vector<64x1xf32>
    %111 = arith.select %108, %109, %110 : vector<64x1xi1>, vector<64x1xf32>
    %112 = vector.broadcast %111 : vector<64x1xf32> to vector<64x64xf32>
    %113 = arith.mulf %104, %112 : vector<64x64xf32>
    %114 = arith.truncf %113 : vector<64x64xf32> to vector<64x64xbf16>
    %cst_50 = arith.constant dense<0.000000e+00> : vector<64x16xf32>
    %115 = tpu.matmul %114, %92, %cst_50 {dimension_numbers = #tpu.dot_dimension_numbers<[1], [0], [0], [1], [0, 0, 1, 1], [], []>} : vector<64x64xbf16>, vector<64x16xbf16>, vector<64x16xf32> -> vector<64x16xf32>
    %c0_51 = arith.constant 0 : index
    %c32 = arith.constant 32 : index
    %116 = vector.load %arg6[%c0_51, %c32] : memref<64x128xf32, #tpu.memory_space<vmem>>, vector<64x16xf32>
    tpu.vector_store %arg6[%c0_51, %c32], %115 {strides = array<i32>} : memref<64x128xf32, #tpu.memory_space<vmem>>, vector<64x16xf32>,
    %117 = vector.extract_strided_slice %40 {offsets = [0, 48], sizes = [64, 16], strides = [1, 1]} : vector<64x128xbf16> to vector<64x16xbf16>
    %118 = vector.extract_strided_slice %41 {offsets = [0, 48], sizes = [64, 16], strides = [1, 1]} : vector<64x128xbf16> to vector<64x16xbf16>
    %cst_52 = arith.constant dense<0.000000e+00> : vector<64x64xf32>
    %119 = tpu.matmul %118, %117, %cst_52 {dimension_numbers = #tpu.dot_dimension_numbers<[1], [1], [0], [0], [0, 0, 1, 0], [], []>} : vector<64x16xbf16>, vector<64x16xbf16>, vector<64x64xf32> -> vector<64x64xf32>
    %cst_53 = arith.constant -9.000000e+15 : f32
    %120 = vector.broadcast %cst_53 : f32 to vector<64x64xf32>
    %121 = arith.select %32, %120, %119 : vector<64x64xi1>, vector<64x64xf32>
    %122 = arith.addf %121, %39 : vector<64x64xf32>
    %cst_54 = arith.constant dense<0xFF800000> : vector<64xf32>
    %123 = vector.multi_reduction <maximumf>, %122, %cst_54 [1] : vector<64x64xf32> to vector<64xf32>
    %124 = vector.shape_cast %123 : vector<64xf32> to vector<64x1xf32>
    %125 = vector.broadcast %124 : vector<64x1xf32> to vector<64x64xf32>
    %126 = arith.subf %122, %125 : vector<64x64xf32>
    %127 = math.exp %126 : vector<64x64xf32>
    %cst_55 = arith.constant 0.000000e+00 : f32
    %128 = vector.broadcast %cst_55 : f32 to vector<64x64xf32>
    %129 = arith.select %36, %127, %128 : vector<64x64xi1>, vector<64x64xf32>
    %cst_56 = arith.constant dense<0.000000e+00> : vector<64xf32>
    %130 = vector.multi_reduction <add>, %129, %cst_56 [1] : vector<64x64xf32> to vector<64xf32>
    %131 = vector.shape_cast %130 : vector<64xf32> to vector<64x1xf32>
    %cst_57 = arith.constant 0.000000e+00 : f32
    %132 = vector.broadcast %cst_57 : f32 to vector<64x1xf32>
    %133 = arith.cmpf ogt, %131, %132 : vector<64x1xf32>
    %134 = tpu.reciprocal %131 {approx = true} : vector<64x1xf32> -> vector<64x1xf32>
    %cst_58 = arith.constant 0.000000e+00 : f32
    %135 = vector.broadcast %cst_58 : f32 to vector<64x1xf32>
    %136 = arith.select %133, %134, %135 : vector<64x1xi1>, vector<64x1xf32>
    %137 = vector.broadcast %136 : vector<64x1xf32> to vector<64x64xf32>
    %138 = arith.mulf %129, %137 : vector<64x64xf32>
    %139 = arith.truncf %138 : vector<64x64xf32> to vector<64x64xbf16>
    %cst_59 = arith.constant dense<0.000000e+00> : vector<64x16xf32>
    %140 = tpu.matmul %139, %117, %cst_59 {dimension_numbers = #tpu.dot_dimension_numbers<[1], [0], [0], [1], [0, 0, 1, 1], [], []>} : vector<64x64xbf16>, vector<64x16xbf16>, vector<64x16xf32> -> vector<64x16xf32>
    %c0_60 = arith.constant 0 : index
    %c48 = arith.constant 48 : index
    %141 = vector.load %arg6[%c0_60, %c48] : memref<64x128xf32, #tpu.memory_space<vmem>>, vector<64x16xf32>
    tpu.vector_store %arg6[%c0_60, %c48], %140 {strides = array<i32>} : memref<64x128xf32, #tpu.memory_space<vmem>>, vector<64x16xf32>,
    %142 = vector.extract_strided_slice %40 {offsets = [0, 64], sizes = [64, 16], strides = [1, 1]} : vector<64x128xbf16> to vector<64x16xbf16>
    %143 = vector.extract_strided_slice %41 {offsets = [0, 64], sizes = [64, 16], strides = [1, 1]} : vector<64x128xbf16> to vector<64x16xbf16>
    %cst_61 = arith.constant dense<0.000000e+00> : vector<64x64xf32>
    %144 = tpu.matmul %143, %142, %cst_61 {dimension_numbers = #tpu.dot_dimension_numbers<[1], [1], [0], [0], [0, 0, 1, 0], [], []>} : vector<64x16xbf16>, vector<64x16xbf16>, vector<64x64xf32> -> vector<64x64xf32>
    %cst_62 = arith.constant -9.000000e+15 : f32
    %145 = vector.broadcast %cst_62 : f32 to vector<64x64xf32>
    %146 = arith.select %32, %145, %144 : vector<64x64xi1>, vector<64x64xf32>
    %147 = arith.addf %146, %39 : vector<64x64xf32>
    %cst_63 = arith.constant dense<0xFF800000> : vector<64xf32>
    %148 = vector.multi_reduction <maximumf>, %147, %cst_63 [1] : vector<64x64xf32> to vector<64xf32>
    %149 = vector.shape_cast %148 : vector<64xf32> to vector<64x1xf32>
    %150 = vector.broadcast %149 : vector<64x1xf32> to vector<64x64xf32>
    %151 = arith.subf %147, %150 : vector<64x64xf32>
    %152 = math.exp %151 : vector<64x64xf32>
    %cst_64 = arith.constant 0.000000e+00 : f32
    %153 = vector.broadcast %cst_64 : f32 to vector<64x64xf32>
    %154 = arith.select %36, %152, %153 : vector<64x64xi1>, vector<64x64xf32>
    %cst_65 = arith.constant dense<0.000000e+00> : vector<64xf32>
    %155 = vector.multi_reduction <add>, %154, %cst_65 [1] : vector<64x64xf32> to vector<64xf32>
    %156 = vector.shape_cast %155 : vector<64xf32> to vector<64x1xf32>
    %cst_66 = arith.constant 0.000000e+00 : f32
    %157 = vector.broadcast %cst_66 : f32 to vector<64x1xf32>
    %158 = arith.cmpf ogt, %156, %157 : vector<64x1xf32>
    %159 = tpu.reciprocal %156 {approx = true} : vector<64x1xf32> -> vector<64x1xf32>
    %cst_67 = arith.constant 0.000000e+00 : f32
    %160 = vector.broadcast %cst_67 : f32 to vector<64x1xf32>
    %161 = arith.select %158, %159, %160 : vector<64x1xi1>, vector<64x1xf32>
    %162 = vector.broadcast %161 : vector<64x1xf32> to vector<64x64xf32>
    %163 = arith.mulf %154, %162 : vector<64x64xf32>
    %164 = arith.truncf %163 : vector<64x64xf32> to vector<64x64xbf16>
    %cst_68 = arith.constant dense<0.000000e+00> : vector<64x16xf32>
    %165 = tpu.matmul %164, %142, %cst_68 {dimension_numbers = #tpu.dot_dimension_numbers<[1], [0], [0], [1], [0, 0, 1, 1], [], []>} : vector<64x64xbf16>, vector<64x16xbf16>, vector<64x16xf32> -> vector<64x16xf32>
    %c0_69 = arith.constant 0 : index
    %c64 = arith.constant 64 : index
    %166 = vector.load %arg6[%c0_69, %c64] : memref<64x128xf32, #tpu.memory_space<vmem>>, vector<64x16xf32>
    tpu.vector_store %arg6[%c0_69, %c64], %165 {strides = array<i32>} : memref<64x128xf32, #tpu.memory_space<vmem>>, vector<64x16xf32>,
    %167 = vector.extract_strided_slice %40 {offsets = [0, 80], sizes = [64, 16], strides = [1, 1]} : vector<64x128xbf16> to vector<64x16xbf16>
    %168 = vector.extract_strided_slice %41 {offsets = [0, 80], sizes = [64, 16], strides = [1, 1]} : vector<64x128xbf16> to vector<64x16xbf16>
    %cst_70 = arith.constant dense<0.000000e+00> : vector<64x64xf32>
    %169 = tpu.matmul %168, %167, %cst_70 {dimension_numbers = #tpu.dot_dimension_numbers<[1], [1], [0], [0], [0, 0, 1, 0], [], []>} : vector<64x16xbf16>, vector<64x16xbf16>, vector<64x64xf32> -> vector<64x64xf32>
    %cst_71 = arith.constant -9.000000e+15 : f32
    %170 = vector.broadcast %cst_71 : f32 to vector<64x64xf32>
    %171 = arith.select %32, %170, %169 : vector<64x64xi1>, vector<64x64xf32>
    %172 = arith.addf %171, %39 : vector<64x64xf32>
    %cst_72 = arith.constant dense<0xFF800000> : vector<64xf32>
    %173 = vector.multi_reduction <maximumf>, %172, %cst_72 [1] : vector<64x64xf32> to vector<64xf32>
    %174 = vector.shape_cast %173 : vector<64xf32> to vector<64x1xf32>
    %175 = vector.broadcast %174 : vector<64x1xf32> to vector<64x64xf32>
    %176 = arith.subf %172, %175 : vector<64x64xf32>
    %177 = math.exp %176 : vector<64x64xf32>
    %cst_73 = arith.constant 0.000000e+00 : f32
    %178 = vector.broadcast %cst_73 : f32 to vector<64x64xf32>
    %179 = arith.select %36, %177, %178 : vector<64x64xi1>, vector<64x64xf32>
    %cst_74 = arith.constant dense<0.000000e+00> : vector<64xf32>
    %180 = vector.multi_reduction <add>, %179, %cst_74 [1] : vector<64x64xf32> to vector<64xf32>
    %181 = vector.shape_cast %180 : vector<64xf32> to vector<64x1xf32>
    %cst_75 = arith.constant 0.000000e+00 : f32
    %182 = vector.broadcast %cst_75 : f32 to vector<64x1xf32>
    %183 = arith.cmpf ogt, %181, %182 : vector<64x1xf32>
    %184 = tpu.reciprocal %181 {approx = true} : vector<64x1xf32> -> vector<64x1xf32>
    %cst_76 = arith.constant 0.000000e+00 : f32
    %185 = vector.broadcast %cst_76 : f32 to vector<64x1xf32>
    %186 = arith.select %183, %184, %185 : vector<64x1xi1>, vector<64x1xf32>
    %187 = vector.broadcast %186 : vector<64x1xf32> to vector<64x64xf32>
    %188 = arith.mulf %179, %187 : vector<64x64xf32>
    %189 = arith.truncf %188 : vector<64x64xf32> to vector<64x64xbf16>
    %cst_77 = arith.constant dense<0.000000e+00> : vector<64x16xf32>
    %190 = tpu.matmul %189, %167, %cst_77 {dimension_numbers = #tpu.dot_dimension_numbers<[1], [0], [0], [1], [0, 0, 1, 1], [], []>} : vector<64x64xbf16>, vector<64x16xbf16>, vector<64x16xf32> -> vector<64x16xf32>
    %c0_78 = arith.constant 0 : index
    %c80 = arith.constant 80 : index
    %191 = vector.load %arg6[%c0_78, %c80] : memref<64x128xf32, #tpu.memory_space<vmem>>, vector<64x16xf32>
    tpu.vector_store %arg6[%c0_78, %c80], %190 {strides = array<i32>} : memref<64x128xf32, #tpu.memory_space<vmem>>, vector<64x16xf32>,
    %192 = vector.extract_strided_slice %40 {offsets = [0, 96], sizes = [64, 16], strides = [1, 1]} : vector<64x128xbf16> to vector<64x16xbf16>
    %193 = vector.extract_strided_slice %41 {offsets = [0, 96], sizes = [64, 16], strides = [1, 1]} : vector<64x128xbf16> to vector<64x16xbf16>
    %cst_79 = arith.constant dense<0.000000e+00> : vector<64x64xf32>
    %194 = tpu.matmul %193, %192, %cst_79 {dimension_numbers = #tpu.dot_dimension_numbers<[1], [1], [0], [0], [0, 0, 1, 0], [], []>} : vector<64x16xbf16>, vector<64x16xbf16>, vector<64x64xf32> -> vector<64x64xf32>
    %cst_80 = arith.constant -9.000000e+15 : f32
    %195 = vector.broadcast %cst_80 : f32 to vector<64x64xf32>
    %196 = arith.select %32, %195, %194 : vector<64x64xi1>, vector<64x64xf32>
    %197 = arith.addf %196, %39 : vector<64x64xf32>
    %cst_81 = arith.constant dense<0xFF800000> : vector<64xf32>
    %198 = vector.multi_reduction <maximumf>, %197, %cst_81 [1] : vector<64x64xf32> to vector<64xf32>
    %199 = vector.shape_cast %198 : vector<64xf32> to vector<64x1xf32>
    %200 = vector.broadcast %199 : vector<64x1xf32> to vector<64x64xf32>
    %201 = arith.subf %197, %200 : vector<64x64xf32>
    %202 = math.exp %201 : vector<64x64xf32>
    %cst_82 = arith.constant 0.000000e+00 : f32
    %203 = vector.broadcast %cst_82 : f32 to vector<64x64xf32>
    %204 = arith.select %36, %202, %203 : vector<64x64xi1>, vector<64x64xf32>
    %cst_83 = arith.constant dense<0.000000e+00> : vector<64xf32>
    %205 = vector.multi_reduction <add>, %204, %cst_83 [1] : vector<64x64xf32> to vector<64xf32>
    %206 = vector.shape_cast %205 : vector<64xf32> to vector<64x1xf32>
    %cst_84 = arith.constant 0.000000e+00 : f32
    %207 = vector.broadcast %cst_84 : f32 to vector<64x1xf32>
    %208 = arith.cmpf ogt, %206, %207 : vector<64x1xf32>
    %209 = tpu.reciprocal %206 {approx = true} : vector<64x1xf32> -> vector<64x1xf32>
    %cst_85 = arith.constant 0.000000e+00 : f32
    %210 = vector.broadcast %cst_85 : f32 to vector<64x1xf32>
    %211 = arith.select %208, %209, %210 : vector<64x1xi1>, vector<64x1xf32>
    %212 = vector.broadcast %211 : vector<64x1xf32> to vector<64x64xf32>
    %213 = arith.mulf %204, %212 : vector<64x64xf32>
    %214 = arith.truncf %213 : vector<64x64xf32> to vector<64x64xbf16>
    %cst_86 = arith.constant dense<0.000000e+00> : vector<64x16xf32>
    %215 = tpu.matmul %214, %192, %cst_86 {dimension_numbers = #tpu.dot_dimension_numbers<[1], [0], [0], [1], [0, 0, 1, 1], [], []>} : vector<64x64xbf16>, vector<64x16xbf16>, vector<64x16xf32> -> vector<64x16xf32>
    %c0_87 = arith.constant 0 : index
    %c96 = arith.constant 96 : index
    %216 = vector.load %arg6[%c0_87, %c96] : memref<64x128xf32, #tpu.memory_space<vmem>>, vector<64x16xf32>
    tpu.vector_store %arg6[%c0_87, %c96], %215 {strides = array<i32>} : memref<64x128xf32, #tpu.memory_space<vmem>>, vector<64x16xf32>,
    %217 = vector.extract_strided_slice %40 {offsets = [0, 112], sizes = [64, 16], strides = [1, 1]} : vector<64x128xbf16> to vector<64x16xbf16>
    %218 = vector.extract_strided_slice %41 {offsets = [0, 112], sizes = [64, 16], strides = [1, 1]} : vector<64x128xbf16> to vector<64x16xbf16>
    %cst_88 = arith.constant dense<0.000000e+00> : vector<64x64xf32>
    %219 = tpu.matmul %218, %217, %cst_88 {dimension_numbers = #tpu.dot_dimension_numbers<[1], [1], [0], [0], [0, 0, 1, 0], [], []>} : vector<64x16xbf16>, vector<64x16xbf16>, vector<64x64xf32> -> vector<64x64xf32>
    %cst_89 = arith.constant -9.000000e+15 : f32
    %220 = vector.broadcast %cst_89 : f32 to vector<64x64xf32>
    %221 = arith.select %32, %220, %219 : vector<64x64xi1>, vector<64x64xf32>
    %222 = arith.addf %221, %39 : vector<64x64xf32>
    %cst_90 = arith.constant dense<0xFF800000> : vector<64xf32>
    %223 = vector.multi_reduction <maximumf>, %222, %cst_90 [1] : vector<64x64xf32> to vector<64xf32>
    %224 = vector.shape_cast %223 : vector<64xf32> to vector<64x1xf32>
    %225 = vector.broadcast %224 : vector<64x1xf32> to vector<64x64xf32>
    %226 = arith.subf %222, %225 : vector<64x64xf32>
    %227 = math.exp %226 : vector<64x64xf32>
    %cst_91 = arith.constant 0.000000e+00 : f32
    %228 = vector.broadcast %cst_91 : f32 to vector<64x64xf32>
    %229 = arith.select %36, %227, %228 : vector<64x64xi1>, vector<64x64xf32>
    %cst_92 = arith.constant dense<0.000000e+00> : vector<64xf32>
    %230 = vector.multi_reduction <add>, %229, %cst_92 [1] : vector<64x64xf32> to vector<64xf32>
    %231 = vector.shape_cast %230 : vector<64xf32> to vector<64x1xf32>
    %cst_93 = arith.constant 0.000000e+00 : f32
    %232 = vector.broadcast %cst_93 : f32 to vector<64x1xf32>
    %233 = arith.cmpf ogt, %231, %232 : vector<64x1xf32>
    %234 = tpu.reciprocal %231 {approx = true} : vector<64x1xf32> -> vector<64x1xf32>
    %cst_94 = arith.constant 0.000000e+00 : f32
    %235 = vector.broadcast %cst_94 : f32 to vector<64x1xf32>
    %236 = arith.select %233, %234, %235 : vector<64x1xi1>, vector<64x1xf32>
    %237 = vector.broadcast %236 : vector<64x1xf32> to vector<64x64xf32>
    %238 = arith.mulf %229, %237 : vector<64x64xf32>
    %239 = arith.truncf %238 : vector<64x64xf32> to vector<64x64xbf16>
    %cst_95 = arith.constant dense<0.000000e+00> : vector<64x16xf32>
    %240 = tpu.matmul %239, %217, %cst_95 {dimension_numbers = #tpu.dot_dimension_numbers<[1], [0], [0], [1], [0, 0, 1, 1], [], []>} : vector<64x64xbf16>, vector<64x16xbf16>, vector<64x16xf32> -> vector<64x16xf32>
    %c0_96 = arith.constant 0 : index
    %c112 = arith.constant 112 : index
    %241 = vector.load %arg6[%c0_96, %c112] : memref<64x128xf32, #tpu.memory_space<vmem>>, vector<64x16xf32>
    tpu.vector_store %arg6[%c0_96, %c112], %240 {strides = array<i32>} : memref<64x128xf32, #tpu.memory_space<vmem>>, vector<64x16xf32>,
    return
  }
  func.func @transform_0(%arg0: i32) -> (i32, i32) {
    %c0_i32 = arith.constant 0 : i32
    %c0_i32_0 = arith.constant 0 : i32
    %c0_i32_1 = arith.constant 0 : i32
    return %c0_i32, %c0_i32_0 : i32, i32
  }
  func.func @transform_1(%arg0: i32) -> (i32, i32) {
    %c0_i32 = arith.constant 0 : i32
    %c0_i32_0 = arith.constant 0 : i32
    return %arg0, %c0_i32 : i32, i32
  }
  func.func @transform_2(%arg0: i32) -> (i32, i32) {
    %c0_i32 = arith.constant 0 : i32
    %c0_i32_0 = arith.constant 0 : i32
    %c0_i32_1 = arith.constant 0 : i32
    return %c0_i32, %c0_i32_0 : i32, i32
  }
  func.func @transform_3(%arg0: i32) -> (i32, i32) {
    %c0_i32 = arith.constant 0 : i32
    %c0_i32_0 = arith.constant 0 : i32
    return %arg0, %c0_i32 : i32, i32
  }
  func.func @transform_4(%arg0: i32) -> (i32, i32) {
    %c0_i32 = arith.constant 0 : i32
    %c0_i32_0 = arith.constant 0 : i32
    return %arg0, %c0_i32 : i32, i32
  }
  func.func @transform_5(%arg0: i32) -> (i32, i32) {
    %c0_i32 = arith.constant 0 : i32
    %c0_i32_0 = arith.constant 0 : i32
    return %arg0, %c0_i32 : i32, i32
  }
}

</mosaic_0001>

<llo_original>
// kernel: tpu_custom_call.1
$region0: #{tpu_custom_call.1}
  #allocation0 [shape = 'u32[]', space=smem, size = 0x4, offset = 0x4, fixed_abs, tag = 'smem constant byte address 0x4 - core index']
  #allocation1 [shape = 'u32[144,128]{1,0:T(1,128)}', space=vmem, size = 0x12000, scoped, tag = 'internal scratch']
  %s0 = inlined_call_operand.vmem [shape: f32[64,32], index: 0, kind: input, shape index: {}]
  %s1 = inlined_call_operand.vmem [shape: f32[64,32], index: 1, kind: input, shape index: {}]
  %s2 = inlined_call_operand.vmem [shape: f32[32,128], index: 2, kind: input, shape index: {}]
  %s3 = inlined_call_operand.vmem [shape: f32[64,64], index: 3, kind: input, shape index: {}]
  %s4 = inlined_call_operand.vmem [shape: s8[64,64], index: 4, kind: input, shape index: {}]
  %s5 = inlined_call_operand.hbm [shape: f32[64,128], index: 5, kind: output, shape index: {}]
  %s6 = sld [smem:[#allocation0]]
  $region30: #{tpu_custom_call.1} parent=0
    _
  %s8 = ssub.s32 1, %s6
  %s9 = scalar_select 0, %s8, %s6
  $region1: #{tpu_custom_call.1} parent=0
    #allocation2 [shape = 'u8[32768]{0}', space=vmem, size = 0x8000, scoped, tag = 'output window, operand 0, single buffered']
    #allocation3 [shape = 's32[1]{0}', space=sflag, size = 0x4, scoped, tag = 'scoped memory for tpu_custom_call.1']
    %10 = vsyncpa [#allocation3], 0
    // Predicated region
    $region2: #{tpu_custom_call.1} parent=1 // pred_check
      _
    $region3: #{tpu_custom_call.1} parent=1 // pred_check_branch
      %12 = sbr.rel (0) target = $region5
    $region4: #{tpu_custom_call.1} parent=1 // pred_region
      _
    $region5: #{tpu_custom_call.1} parent=1 // pred_fallthru
      _
    // Predicated region
    $region6: #{tpu_custom_call.1} parent=1 // pred_check
      _
    $region7: #{tpu_custom_call.1} parent=1 // pred_check_branch
      %14 = sbr.rel (0) target = $region9
    $region8: #{tpu_custom_call.1} parent=1 // pred_region
      _
    $region9: #{tpu_custom_call.1} parent=1 // pred_fallthru
      _
    // Predicated region
    $region10: #{tpu_custom_call.1} parent=1 // pred_check
      _
    $region11: #{tpu_custom_call.1} parent=1 // pred_check_branch
      %16 = sbr.rel (0) target = $region13
    $region12: #{tpu_custom_call.1} parent=1 // pred_region
      _
    $region13: #{tpu_custom_call.1} parent=1 // pred_fallthru
      _
    // Predicated region
    $region14: #{tpu_custom_call.1} parent=1 // pred_check
      _
    $region15: #{tpu_custom_call.1} parent=1 // pred_check_branch
      %18 = sbr.rel (0) target = $region17
    $region16: #{tpu_custom_call.1} parent=1 // pred_region
      _
    $region17: #{tpu_custom_call.1} parent=1 // pred_fallthru
      _
    // Predicated region
    $region18: #{tpu_custom_call.1} parent=1 // pred_check
      _
    $region19: #{tpu_custom_call.1} parent=1 // pred_check_branch
      %20 = sbr.rel (0) target = $region21
    $region20: #{tpu_custom_call.1} parent=1 // pred_region
      _
    $region21: #{tpu_custom_call.1} parent=1 // pred_fallthru
      _
    %v22 = vld [vmem:[%s0] sm:$0xff]
    %v23 = vld [vmem:[%s0 + $0x8] sm:$0xff]
    %v24 = vld [vmem:[%s0 + $0x10] sm:$0xff]
    %v25 = vld [vmem:[%s0 + $0x18] sm:$0xff]
    %v26 = vld [vmem:[%s0 + $0x20] sm:$0xff]
    %v27 = vld [vmem:[%s0 + $0x28] sm:$0xff]
    %v28 = vld [vmem:[%s0 + $0x30] sm:$0xff]
    %v29 = vld [vmem:[%s0 + $0x38] sm:$0xff]
    %v30 = vld [vmem:[%s2] sm:$0xff]
    %v31 = vld [vmem:[%s2 + $0x8] sm:$0xff]
    %v32 = vld [vmem:[%s2 + $0x10] sm:$0xff]
    %v33 = vld [vmem:[%s2 + $0x18] sm:$0xff]
    %vm34 = vcmask 261120
    %v36 = vsel %vm34, %v22, 0
    %v39 = vsel %vm34, %v23, 0
    %v42 = vsel %vm34, %v24, 0
    %v45 = vsel %vm34, %v25, 0
    %v48 = vsel %vm34, %v26, 0
    %v51 = vsel %vm34, %v27, 0
    %v54 = vsel %vm34, %v28, 0
    %v57 = vsel %vm34, %v29, 0
    %59 = vmatprep.subr.mxu0 0.0
    %60 = vmatpush1.msra.mxu0 %v30
    %61 = vmatprep.subr.mxu0 0.0
    %62 = vmatpush1.msra.mxu0 %v31
    %63 = vmatprep.subr.mxu0 0.0
    %64 = vmatpush1.msra.mxu0 %v32
    %65 = vmatprep.subr.mxu0 0.0
    %66 = vmatpush1.msra.mxu0 %v33
    %67 = vmatprep.subr.mxu0 0.0
    %68 = vmatpush1.msra.mxu0 0.0
    %69 = vmatprep.subr.mxu0 0.0
    %70 = vmatpush1.msra.mxu0 0.0
    %71 = vmatprep.subr.mxu0 0.0
    %72 = vmatpush1.msra.mxu0 0.0
    %73 = vmatprep.subr.mxu0 0.0
    %74 = vmatpush1.msra.mxu0 0.0
    %75 = vmatprep.subr.mxu0 0.0
    %76 = vmatpush1.msra.mxu0 0.0
    %77 = vmatprep.subr.mxu0 0.0
    %78 = vmatpush1.msra.mxu0 0.0
    %79 = vmatprep.subr.mxu0 0.0
    %80 = vmatpush1.msra.mxu0 0.0
    %81 = vmatprep.subr.mxu0 0.0
    %82 = vmatpush1.msra.mxu0 0.0
    %83 = vmatprep.subr.mxu0 0.0
    %84 = vmatpush1.msra.mxu0 0.0
    %85 = vmatprep.subr.mxu0 0.0
    %86 = vmatpush1.msra.mxu0 0.0
    %87 = vmatprep.subr.mxu0 0.0
    %88 = vmatpush1.msra.mxu0 0.0
    %89 = vmatprep.subr.mxu0 0.0
    %90 = vmatpush1.msra.mxu0 0.0
    %91 = vmatprep.subr.mxu0 0.0
    %92 = vmatpush1.msra.mxu0 0.0
    %93 = vmatprep.subr.mxu0 0.0
    %94 = vmatpush1.msra.mxu0 0.0
    %95 = vmatprep.subr.mxu0 0.0
    %96 = vmatpush1.msra.mxu0 0.0
    %97 = vmatprep.subr.mxu0 0.0
    %98 = vmatpush1.msra.mxu0 0.0
    %99 = vmatprep.subr.mxu0 0.0
    %100 = vmatpush1.msra.mxu0 0.0
    %101 = vmatprep.subr.mxu0 0.0
    %102 = vmatpush1.msra.mxu0 0.0
    %103 = vmatprep.subr.mxu0 0.0
    %104 = vmatpush1.msra.mxu0 0.0
    %105 = vmatprep.subr.mxu0 0.0
    %106 = vmatpush1.msra.mxu0 0.0
    %107 = vmatprep.subr.mxu0 0.0
    %108 = vmatpush1.msra.mxu0 0.0
    %109 = vmatprep.subr.mxu0 0.0
    %110 = vmatpush1.msra.mxu0 0.0
    %111 = vmatprep.subr.mxu0 0.0
    %112 = vmatpush1.msra.mxu0 0.0
    %113 = vmatprep.subr.mxu0 0.0
    %114 = vmatpush1.msra.mxu0 0.0
    %115 = vmatprep.subr.mxu0 0.0
    %116 = vmatpush1.msra.mxu0 0.0
    %117 = vmatprep.subr.mxu0 0.0
    %118 = vmatpush1.msra.mxu0 0.0
    %119 = vmatprep.subr.mxu0 0.0
    %120 = vmatpush1.msra.mxu0 0.0
    %121 = vmatprep.subr.mxu0 0.0
    %122 = vmatpush1.msra.mxu0 0.0
    %123 = vmatprep.mubr.f32.mxu0 0.0
    %124 = vmatmul.mubr.f32.gmra.mrb[0].mxu0 %v36
    %v125 = vpop.f32.mrb[0].mxu0
    %v126 = vadd.f32 0.0, %v125
    %v127 = vpop.f32.mrb[0].mxu0
    %128 = vmatprep.mubr.f32.mxu0 0.0
    %129 = vmatmul.mubr.f32.gmra.mrb[0].mxu0 %v39
    %v130 = vpop.f32.mrb[0].mxu0
    %v131 = vadd.f32 0.0, %v130
    %v132 = vpop.f32.mrb[0].mxu0
    %133 = vmatprep.mubr.f32.mxu0 0.0
    %134 = vmatmul.mubr.f32.gmra.mrb[0].mxu0 %v42
    %v135 = vpop.f32.mrb[0].mxu0
    %v136 = vadd.f32 0.0, %v135
    %v137 = vpop.f32.mrb[0].mxu0
    %138 = vmatprep.mubr.f32.mxu0 0.0
    %139 = vmatmul.mubr.f32.gmra.mrb[0].mxu0 %v45
    %v140 = vpop.f32.mrb[0].mxu0
    %v141 = vadd.f32 0.0, %v140
    %v142 = vpop.f32.mrb[0].mxu0
    %143 = vmatprep.mubr.f32.mxu0 0.0
    %144 = vmatmul.mubr.f32.gmra.mrb[0].mxu0 %v48
    %v145 = vpop.f32.mrb[0].mxu0
    %v146 = vadd.f32 0.0, %v145
    %v147 = vpop.f32.mrb[0].mxu0
    %148 = vmatprep.mubr.f32.mxu0 0.0
    %149 = vmatmul.mubr.f32.gmra.mrb[0].mxu0 %v51
    %v150 = vpop.f32.mrb[0].mxu0
    %v151 = vadd.f32 0.0, %v150
    %v152 = vpop.f32.mrb[0].mxu0
    %153 = vmatprep.mubr.f32.mxu0 0.0
    %154 = vmatmul.mubr.f32.gmra.mrb[0].mxu0 %v54
    %v155 = vpop.f32.mrb[0].mxu0
    %v156 = vadd.f32 0.0, %v155
    %v157 = vpop.f32.mrb[0].mxu0
    %158 = vmatprep.mubr.f32.mxu0 0.0
    %159 = vmatmul.mubr.f32.gmra.mrb[0].mxu0 %v57
    %v160 = vpop.f32.mrb[0].mxu0
    %v161 = vadd.f32 0.0, %v160
    %v162 = vpop.f32.mrb[0].mxu0
    %163 = vdwg.mxu0
    %v164 = vld [vmem:[%s1] sm:$0xff]
    %v165 = vld [vmem:[%s1 + $0x8] sm:$0xff]
    %v166 = vld [vmem:[%s1 + $0x10] sm:$0xff]
    %v167 = vld [vmem:[%s1 + $0x18] sm:$0xff]
    %v168 = vld [vmem:[%s1 + $0x20] sm:$0xff]
    %v169 = vld [vmem:[%s1 + $0x28] sm:$0xff]
    %v170 = vld [vmem:[%s1 + $0x30] sm:$0xff]
    %v171 = vld [vmem:[%s1 + $0x38] sm:$0xff]
    %v173 = vsel %vm34, %v164, 0
    %v176 = vsel %vm34, %v165, 0
    %v179 = vsel %vm34, %v166, 0
    %v182 = vsel %vm34, %v167, 0
    %v185 = vsel %vm34, %v168, 0
    %v188 = vsel %vm34, %v169, 0
    %v191 = vsel %vm34, %v170, 0
    %v194 = vsel %vm34, %v171, 0
    %196 = vmatprep.subr.mxu0 0.0
    %197 = vmatpush1.msra.mxu0 %v30
    %198 = vmatprep.subr.mxu0 0.0
    %199 = vmatpush1.msra.mxu0 %v31
    %200 = vmatprep.subr.mxu0 0.0
    %201 = vmatpush1.msra.mxu0 %v32
    %202 = vmatprep.subr.mxu0 0.0
    %203 = vmatpush1.msra.mxu0 %v33
    %204 = vmatprep.subr.mxu0 0.0
    %205 = vmatpush1.msra.mxu0 0.0
    %206 = vmatprep.subr.mxu0 0.0
    %207 = vmatpush1.msra.mxu0 0.0
    %208 = vmatprep.subr.mxu0 0.0
    %209 = vmatpush1.msra.mxu0 0.0
    %210 = vmatprep.subr.mxu0 0.0
    %211 = vmatpush1.msra.mxu0 0.0
    %212 = vmatprep.subr.mxu0 0.0
    %213 = vmatpush1.msra.mxu0 0.0
    %214 = vmatprep.subr.mxu0 0.0
    %215 = vmatpush1.msra.mxu0 0.0
    %216 = vmatprep.subr.mxu0 0.0
    %217 = vmatpush1.msra.mxu0 0.0
    %218 = vmatprep.subr.mxu0 0.0
    %219 = vmatpush1.msra.mxu0 0.0
    %220 = vmatprep.subr.mxu0 0.0
    %221 = vmatpush1.msra.mxu0 0.0
    %222 = vmatprep.subr.mxu0 0.0
    %223 = vmatpush1.msra.mxu0 0.0
    %224 = vmatprep.subr.mxu0 0.0
    %225 = vmatpush1.msra.mxu0 0.0
    %226 = vmatprep.subr.mxu0 0.0
    %227 = vmatpush1.msra.mxu0 0.0
    %228 = vmatprep.subr.mxu0 0.0
    %229 = vmatpush1.msra.mxu0 0.0
    %230 = vmatprep.subr.mxu0 0.0
    %231 = vmatpush1.msra.mxu0 0.0
    %232 = vmatprep.subr.mxu0 0.0
    %233 = vmatpush1.msra.mxu0 0.0
    %234 = vmatprep.subr.mxu0 0.0
    %235 = vmatpush1.msra.mxu0 0.0
    %236 = vmatprep.subr.mxu0 0.0
    %237 = vmatpush1.msra.mxu0 0.0
    %238 = vmatprep.subr.mxu0 0.0
    %239 = vmatpush1.msra.mxu0 0.0
    %240 = vmatprep.subr.mxu0 0.0
    %241 = vmatpush1.msra.mxu0 0.0
    %242 = vmatprep.subr.mxu0 0.0
    %243 = vmatpush1.msra.mxu0 0.0
    %244 = vmatprep.subr.mxu0 0.0
    %245 = vmatpush1.msra.mxu0 0.0
    %246 = vmatprep.subr.mxu0 0.0
    %247 = vmatpush1.msra.mxu0 0.0
    %248 = vmatprep.subr.mxu0 0.0
    %249 = vmatpush1.msra.mxu0 0.0
    %250 = vmatprep.subr.mxu0 0.0
    %251 = vmatpush1.msra.mxu0 0.0
    %252 = vmatprep.subr.mxu0 0.0
    %253 = vmatpush1.msra.mxu0 0.0
    %254 = vmatprep.subr.mxu0 0.0
    %255 = vmatpush1.msra.mxu0 0.0
    %256 = vmatprep.subr.mxu0 0.0
    %257 = vmatpush1.msra.mxu0 0.0
    %258 = vmatprep.subr.mxu0 0.0
    %259 = vmatpush1.msra.mxu0 0.0
    %260 = vmatprep.mubr.f32.mxu0 0.0
    %261 = vmatmul.mubr.f32.gmra.mrb[0].mxu0 %v173
    %v262 = vpop.f32.mrb[0].mxu0
    %v263 = vadd.f32 0.0, %v262
    %v264 = vpop.f32.mrb[0].mxu0
    %265 = vmatprep.mubr.f32.mxu0 0.0
    %266 = vmatmul.mubr.f32.gmra.mrb[0].mxu0 %v176
    %v267 = vpop.f32.mrb[0].mxu0
    %v268 = vadd.f32 0.0, %v267
    %v269 = vpop.f32.mrb[0].mxu0
    %270 = vmatprep.mubr.f32.mxu0 0.0
    %271 = vmatmul.mubr.f32.gmra.mrb[0].mxu0 %v179
    %v272 = vpop.f32.mrb[0].mxu0
    %v273 = vadd.f32 0.0, %v272
    %v274 = vpop.f32.mrb[0].mxu0
    %275 = vmatprep.mubr.f32.mxu0 0.0
    %276 = vmatmul.mubr.f32.gmra.mrb[0].mxu0 %v182
    %v277 = vpop.f32.mrb[0].mxu0
    %v278 = vadd.f32 0.0, %v277
    %v279 = vpop.f32.mrb[0].mxu0
    %280 = vmatprep.mubr.f32.mxu0 0.0
    %281 = vmatmul.mubr.f32.gmra.mrb[0].mxu0 %v185
    %v282 = vpop.f32.mrb[0].mxu0
    %v283 = vadd.f32 0.0, %v282
    %v284 = vpop.f32.mrb[0].mxu0
    %285 = vmatprep.mubr.f32.mxu0 0.0
    %286 = vmatmul.mubr.f32.gmra.mrb[0].mxu0 %v188
    %v287 = vpop.f32.mrb[0].mxu0
    %v288 = vadd.f32 0.0, %v287
    %v289 = vpop.f32.mrb[0].mxu0
    %290 = vmatprep.mubr.f32.mxu0 0.0
    %291 = vmatmul.mubr.f32.gmra.mrb[0].mxu0 %v191
    %v292 = vpop.f32.mrb[0].mxu0
    %v293 = vadd.f32 0.0, %v292
    %v294 = vpop.f32.mrb[0].mxu0
    %295 = vmatprep.mubr.f32.mxu0 0.0
    %296 = vmatmul.mubr.f32.gmra.mrb[0].mxu0 %v194
    %v297 = vpop.f32.mrb[0].mxu0
    %v298 = vadd.f32 0.0, %v297
    %v299 = vpop.f32.mrb[0].mxu0
    %300 = vdwg.mxu0
    %301 = vmatprep.subr.mxu0 0.0
    %302 = vmatpush1.xpose.msra.mxu0 %v126
    %303 = vmatprep.subr.mxu0 0.0
    %304 = vmatpush1.xpose.msra.mxu0 %v131
    %305 = vmatprep.subr.mxu0 0.0
    %306 = vmatpush1.xpose.msra.mxu0 %v136
    %307 = vmatprep.subr.mxu0 0.0
    %308 = vmatpush1.xpose.msra.mxu0 %v141
    %309 = vmatprep.subr.mxu0 0.0
    %310 = vmatpush1.xpose.msra.mxu0 %v146
    %311 = vmatprep.subr.mxu0 0.0
    %312 = vmatpush1.xpose.msra.mxu0 %v151
    %313 = vmatprep.subr.mxu0 0.0
    %314 = vmatpush1.xpose.msra.mxu0 %v156
    %315 = vmatprep.subr.mxu0 0.0
    %316 = vmatpush1.xpose.msra.mxu0 %v161
    %317 = vmatprep.subr.mxu0 0.0
    %318 = vmatpush1.xpose.msra.mxu0 0.0
    %319 = vmatprep.subr.mxu0 0.0
    %320 = vmatpush1.xpose.msra.mxu0 0.0
    %321 = vmatprep.subr.mxu0 0.0
    %322 = vmatpush1.xpose.msra.mxu0 0.0
    %323 = vmatprep.subr.mxu0 0.0
    %324 = vmatpush1.xpose.msra.mxu0 0.0
    %325 = vmatprep.subr.mxu0 0.0
    %326 = vmatpush1.xpose.msra.mxu0 0.0
    %327 = vmatprep.subr.mxu0 0.0
    %328 = vmatpush1.xpose.msra.mxu0 0.0
    %329 = vmatprep.subr.mxu0 0.0
    %330 = vmatpush1.xpose.msra.mxu0 0.0
    %331 = vmatprep.subr.mxu0 0.0
    %332 = vmatpush1.xpose.msra.mxu0 0.0
    %333 = vmatprep.subr.mxu0 0.0
    %334 = vmatpush1.xpose.msra.mxu0 0.0
    %335 = vmatprep.subr.mxu0 0.0
    %336 = vmatpush1.xpose.msra.mxu0 0.0
    %337 = vmatprep.subr.mxu0 0.0
    %338 = vmatpush1.xpose.msra.mxu0 0.0
    %339 = vmatprep.subr.mxu0 0.0
    %340 = vmatpush1.xpose.msra.mxu0 0.0
    %341 = vmatprep.subr.mxu0 0.0
    %342 = vmatpush1.xpose.msra.mxu0 0.0
    %343 = vmatprep.subr.mxu0 0.0
    %344 = vmatpush1.xpose.msra.mxu0 0.0
    %345 = vmatprep.subr.mxu0 0.0
    %346 = vmatpush1.xpose.msra.mxu0 0.0
    %347 = vmatprep.subr.mxu0 0.0
    %348 = vmatpush1.xpose.msra.mxu0 0.0
    %349 = vmatprep.subr.mxu0 0.0
    %350 = vmatpush1.xpose.msra.mxu0 0.0
    %351 = vmatprep.subr.mxu0 0.0
    %352 = vmatpush1.xpose.msra.mxu0 0.0
    %353 = vmatprep.subr.mxu0 0.0
    %354 = vmatpush1.xpose.msra.mxu0 0.0
    %355 = vmatprep.subr.mxu0 0.0
    %356 = vmatpush1.xpose.msra.mxu0 0.0
    %357 = vmatprep.subr.mxu0 0.0
    %358 = vmatpush1.xpose.msra.mxu0 0.0
    %359 = vmatprep.subr.mxu0 0.0
    %360 = vmatpush1.xpose.msra.mxu0 0.0
    %361 = vmatprep.subr.mxu0 0.0
    %362 = vmatpush1.xpose.msra.mxu0 0.0
    %363 = vmatprep.subr.mxu0 0.0
    %364 = vmatpush1.xpose.msra.mxu0 0.0
    %365 = vmatprep.mubr.f32.mxu0 0.0
    %366 = vmatmul.mubr.f32.gmra.mrb[0].mxu0 %v263
    %v367 = vpop.f32.mrb[0].mxu0
    %v368 = vadd.f32 0.0, %v367
    %v369 = vpop.f32.mrb[0].mxu0
    %370 = vmatprep.mubr.f32.mxu0 0.0
    %371 = vmatmul.mubr.f32.gmra.mrb[0].mxu0 %v268
    %v372 = vpop.f32.mrb[0].mxu0
    %v373 = vadd.f32 0.0, %v372
    %v374 = vpop.f32.mrb[0].mxu0
    %375 = vmatprep.mubr.f32.mxu0 0.0
    %376 = vmatmul.mubr.f32.gmra.mrb[0].mxu0 %v273
    %v377 = vpop.f32.mrb[0].mxu0
    %v378 = vadd.f32 0.0, %v377
    %v379 = vpop.f32.mrb[0].mxu0
    %380 = vmatprep.mubr.f32.mxu0 0.0
    %381 = vmatmul.mubr.f32.gmra.mrb[0].mxu0 %v278
    %v382 = vpop.f32.mrb[0].mxu0
    %v383 = vadd.f32 0.0, %v382
    %v384 = vpop.f32.mrb[0].mxu0
    %385 = vmatprep.mubr.f32.mxu0 0.0
    %386 = vmatmul.mubr.f32.gmra.mrb[0].mxu0 %v283
    %v387 = vpop.f32.mrb[0].mxu0
    %v388 = vadd.f32 0.0, %v387
    %v389 = vpop.f32.mrb[0].mxu0
    %390 = vmatprep.mubr.f32.mxu0 0.0
    %391 = vmatmul.mubr.f32.gmra.mrb[0].mxu0 %v288
    %v392 = vpop.f32.mrb[0].mxu0
    %v393 = vadd.f32 0.0, %v392
    %v394 = vpop.f32.mrb[0].mxu0
    %395 = vmatprep.mubr.f32.mxu0 0.0
    %396 = vmatmul.mubr.f32.gmra.mrb[0].mxu0 %v293
    %v397 = vpop.f32.mrb[0].mxu0
    %v398 = vadd.f32 0.0, %v397
    %v399 = vpop.f32.mrb[0].mxu0
    %400 = vmatprep.mubr.f32.mxu0 0.0
    %401 = vmatmul.mubr.f32.gmra.mrb[0].mxu0 %v298
    %v402 = vpop.f32.mrb[0].mxu0
    %v403 = vadd.f32 0.0, %v402
    %v404 = vpop.f32.mrb[0].mxu0
    %405 = vdwg.mxu0
    %v406 = vld [vmem:[%s3] sm:$0xff]
    %v407 = vld [vmem:[%s3 + $0x8] sm:$0xff]
    %v408 = vld [vmem:[%s3 + $0x10] sm:$0xff]
    %v409 = vld [vmem:[%s3 + $0x18] sm:$0xff]
    %v410 = vld [vmem:[%s3 + $0x20] sm:$0xff]
    %v411 = vld [vmem:[%s3 + $0x28] sm:$0xff]
    %v412 = vld [vmem:[%s3 + $0x30] sm:$0xff]
    %v413 = vld [vmem:[%s3 + $0x38] sm:$0xff]
    %v414 = vmul.f32 %v406, %v368
    %v415 = vmul.f32 %v407, %v373
    %v416 = vmul.f32 %v408, %v378
    %v417 = vmul.f32 %v409, %v383
    %v418 = vmul.f32 %v410, %v388
    %v419 = vmul.f32 %v411, %v393
    %v420 = vmul.f32 %v412, %v398
    %v421 = vmul.f32 %v413, %v403
    %vm422 = vcmask 523264
    %v423 = vsel %vm422, %v414, -inf
    %424 = vmax.xlane.f32.xlu0 %v423
    %v425 = vpop.xlane.xlu0 %424
    %v426 = vsel %vm422, %v415, -inf
    %427 = vmax.xlane.f32.xlu0 %v426
    %v428 = vpop.xlane.xlu0 %427
    %v429 = vsel %vm422, %v416, -inf
    %430 = vmax.xlane.f32.xlu0 %v429
    %v431 = vpop.xlane.xlu0 %430
    %v432 = vsel %vm422, %v417, -inf
    %433 = vmax.xlane.f32.xlu0 %v432
    %v434 = vpop.xlane.xlu0 %433
    %v435 = vsel %vm422, %v418, -inf
    %436 = vmax.xlane.f32.xlu0 %v435
    %v437 = vpop.xlane.xlu0 %436
    %v438 = vsel %vm422, %v419, -inf
    %439 = vmax.xlane.f32.xlu0 %v438
    %v440 = vpop.xlane.xlu0 %439
    %v441 = vsel %vm422, %v420, -inf
    %442 = vmax.xlane.f32.xlu0 %v441
    %v443 = vpop.xlane.xlu0 %442
    %v444 = vsel %vm422, %v421, -inf
    %445 = vmax.xlane.f32.xlu0 %v444
    %v446 = vpop.xlane.xlu0 %445
    %vm447 = vcmp.eq.f32.partialorder %v414, %v425
    %vm448 = vcmp.eq.f32.partialorder %v415, %v428
    %vm449 = vcmp.eq.f32.partialorder %v416, %v431
    %vm450 = vcmp.eq.f32.partialorder %v417, %v434
    %vm451 = vcmp.eq.f32.partialorder %v418, %v437
    %vm452 = vcmp.eq.f32.partialorder %v419, %v440
    %vm453 = vcmp.eq.f32.partialorder %v420, %v443
    %vm454 = vcmp.eq.f32.partialorder %v421, %v446
    %v455 = vsel %vm447, -inf, %v414
    %v456 = vsel %vm448, -inf, %v415
    %v457 = vsel %vm449, -inf, %v416
    %v458 = vsel %vm450, -inf, %v417
    %v459 = vsel %vm451, -inf, %v418
    %v460 = vsel %vm452, -inf, %v419
    %v461 = vsel %vm453, -inf, %v420
    %v462 = vsel %vm454, -inf, %v421
    %v463 = vsel %vm422, %v455, -inf
    %464 = vmax.xlane.f32.xlu0 %v463
    %v465 = vpop.xlane.xlu0 %464
    %v466 = vsel %vm422, %v456, -inf
    %467 = vmax.xlane.f32.xlu0 %v466
    %v468 = vpop.xlane.xlu0 %467
    %v469 = vsel %vm422, %v457, -inf
    %470 = vmax.xlane.f32.xlu0 %v469
    %v471 = vpop.xlane.xlu0 %470
    %v472 = vsel %vm422, %v458, -inf
    %473 = vmax.xlane.f32.xlu0 %v472
    %v474 = vpop.xlane.xlu0 %473
    %v475 = vsel %vm422, %v459, -inf
    %476 = vmax.xlane.f32.xlu0 %v475
    %v477 = vpop.xlane.xlu0 %476
    %v478 = vsel %vm422, %v460, -inf
    %479 = vmax.xlane.f32.xlu0 %v478
    %v480 = vpop.xlane.xlu0 %479
    %v481 = vsel %vm422, %v461, -inf
    %482 = vmax.xlane.f32.xlu0 %v481
    %v483 = vpop.xlane.xlu0 %482
    %v484 = vsel %vm422, %v462, -inf
    %485 = vmax.xlane.f32.xlu0 %v484
    %v486 = vpop.xlane.xlu0 %485
    %vm487 = vcmp.eq.f32.partialorder %v455, %v465
    %vm488 = vcmp.eq.f32.partialorder %v456, %v468
    %vm489 = vcmp.eq.f32.partialorder %v457, %v471
    %vm490 = vcmp.eq.f32.partialorder %v458, %v474
    %vm491 = vcmp.eq.f32.partialorder %v459, %v477
    %vm492 = vcmp.eq.f32.partialorder %v460, %v480
    %vm493 = vcmp.eq.f32.partialorder %v461, %v483
    %vm494 = vcmp.eq.f32.partialorder %v462, %v486
    %v495 = vsel %vm487, -inf, %v455
    %v496 = vsel %vm488, -inf, %v456
    %v497 = vsel %vm489, -inf, %v457
    %v498 = vsel %vm490, -inf, %v458
    %v499 = vsel %vm491, -inf, %v459
    %v500 = vsel %vm492, -inf, %v460
    %v501 = vsel %vm493, -inf, %v461
    %v502 = vsel %vm494, -inf, %v462
    %v503 = vsel %vm422, %v495, -inf
    %504 = vmax.xlane.f32.xlu0 %v503
    %v505 = vpop.xlane.xlu0 %504
    %v506 = vsel %vm422, %v496, -inf
    %507 = vmax.xlane.f32.xlu0 %v506
    %v508 = vpop.xlane.xlu0 %507
    %v509 = vsel %vm422, %v497, -inf
    %510 = vmax.xlane.f32.xlu0 %v509
    %v511 = vpop.xlane.xlu0 %510
    %v512 = vsel %vm422, %v498, -inf
    %513 = vmax.xlane.f32.xlu0 %v512
    %v514 = vpop.xlane.xlu0 %513
    %v515 = vsel %vm422, %v499, -inf
    %516 = vmax.xlane.f32.xlu0 %v515
    %v517 = vpop.xlane.xlu0 %516
    %v518 = vsel %vm422, %v500, -inf
    %519 = vmax.xlane.f32.xlu0 %v518
    %v520 = vpop.xlane.xlu0 %519
    %v521 = vsel %vm422, %v501, -inf
    %522 = vmax.xlane.f32.xlu0 %v521
    %v523 = vpop.xlane.xlu0 %522
    %v524 = vsel %vm422, %v502, -inf
    %525 = vmax.xlane.f32.xlu0 %v524
    %v526 = vpop.xlane.xlu0 %525
    %vm527 = vcmp.eq.f32.partialorder %v495, %v505
    %vm528 = vcmp.eq.f32.partialorder %v496, %v508
    %vm529 = vcmp.eq.f32.partialorder %v497, %v511
    %vm530 = vcmp.eq.f32.partialorder %v498, %v514
    %vm531 = vcmp.eq.f32.partialorder %v499, %v517
    %vm532 = vcmp.eq.f32.partialorder %v500, %v520
    %vm533 = vcmp.eq.f32.partialorder %v501, %v523
    %vm534 = vcmp.eq.f32.partialorder %v502, %v526
    %v535 = vsel %vm527, -inf, %v495
    %v536 = vsel %vm528, -inf, %v496
    %v537 = vsel %vm529, -inf, %v497
    %v538 = vsel %vm530, -inf, %v498
    %v539 = vsel %vm531, -inf, %v499
    %v540 = vsel %vm532, -inf, %v500
    %v541 = vsel %vm533, -inf, %v501
    %v542 = vsel %vm534, -inf, %v502
    %v543 = vsel %vm422, %v535, -inf
    %544 = vmax.xlane.f32.xlu0 %v543
    %v545 = vpop.xlane.xlu0 %544
    %v546 = vsel %vm422, %v536, -inf
    %547 = vmax.xlane.f32.xlu0 %v546
    %v548 = vpop.xlane.xlu0 %547
    %v549 = vsel %vm422, %v537, -inf
    %550 = vmax.xlane.f32.xlu0 %v549
    %v551 = vpop.xlane.xlu0 %550
    %v552 = vsel %vm422, %v538, -inf
    %553 = vmax.xlane.f32.xlu0 %v552
    %v554 = vpop.xlane.xlu0 %553
    %v555 = vsel %vm422, %v539, -inf
    %556 = vmax.xlane.f32.xlu0 %v555
    %v557 = vpop.xlane.xlu0 %556
    %v558 = vsel %vm422, %v540, -inf
    %559 = vmax.xlane.f32.xlu0 %v558
    %v560 = vpop.xlane.xlu0 %559
    %v561 = vsel %vm422, %v541, -inf
    %562 = vmax.xlane.f32.xlu0 %v561
    %v563 = vpop.xlane.xlu0 %562
    %v564 = vsel %vm422, %v542, -inf
    %565 = vmax.xlane.f32.xlu0 %v564
    %v566 = vpop.xlane.xlu0 %565
    %v567 = vmax.f32 %v545, 0.0
    %v568 = vmax.f32 %v548, 0.0
    %v569 = vmax.f32 %v551, 0.0
    %v570 = vmax.f32 %v554, 0.0
    %v571 = vmax.f32 %v557, 0.0
    %v572 = vmax.f32 %v560, 0.0
    %v573 = vmax.f32 %v563, 0.0
    %v574 = vmax.f32 %v566, 0.0
    %vm575 = vcmp.lt.f32.partialorder %v414, %v567
    %vm576 = vcmp.lt.f32.partialorder %v415, %v568
    %vm577 = vcmp.lt.f32.partialorder %v416, %v569
    %vm578 = vcmp.lt.f32.partialorder %v417, %v570
    %vm579 = vcmp.lt.f32.partialorder %v418, %v571
    %vm580 = vcmp.lt.f32.partialorder %v419, %v572
    %vm581 = vcmp.lt.f32.partialorder %v420, %v573
    %vm582 = vcmp.lt.f32.partialorder %v421, %v574
    %v583 = vld [vmem:[%s4] sm:$0xff]
    %v584 = vld [vmem:[%s4 + $0x8] sm:$0xff]
    %v585 = vunpack.c.0.s8 %v583
    %v586 = vunpack.c.1.s8 %v583
    %v587 = vunpack.c.2.s8 %v583
    %v588 = vunpack.c.3.s8 %v583
    %v589 = vunpack.c.0.s8 %v584
    %v590 = vunpack.c.1.s8 %v584
    %v591 = vunpack.c.2.s8 %v584
    %v592 = vunpack.c.3.s8 %v584
    %v593 = vcvt.s32.f32 %v585
    %v594 = vcvt.s32.f32 %v586
    %v595 = vcvt.s32.f32 %v587
    %v596 = vcvt.s32.f32 %v588
    %v597 = vcvt.s32.f32 %v589
    %v598 = vcvt.s32.f32 %v590
    %v599 = vcvt.s32.f32 %v591
    %v600 = vcvt.s32.f32 %v592
    %vm601 = vcmp.gt.f32.partialorder %v593, 0.0
    %vm602 = vcmp.gt.f32.partialorder %v594, 0.0
    %vm603 = vcmp.gt.f32.partialorder %v595, 0.0
    %vm604 = vcmp.gt.f32.partialorder %v596, 0.0
    %vm605 = vcmp.gt.f32.partialorder %v597, 0.0
    %vm606 = vcmp.gt.f32.partialorder %v598, 0.0
    %vm607 = vcmp.gt.f32.partialorder %v599, 0.0
    %vm608 = vcmp.gt.f32.partialorder %v600, 0.0
    %v609 = vsel %vm601, 0.0, -3e+38
    %v610 = vsel %vm602, 0.0, -3e+38
    %v611 = vsel %vm603, 0.0, -3e+38
    %v612 = vsel %vm604, 0.0, -3e+38
    %v613 = vsel %vm605, 0.0, -3e+38
    %v614 = vsel %vm606, 0.0, -3e+38
    %v615 = vsel %vm607, 0.0, -3e+38
    %v616 = vsel %vm608, 0.0, -3e+38
    %v617 = vpack.c.bf16 %v131, %v126
    %v618 = vpack.c.bf16 %v141, %v136
    %v619 = vpack.c.bf16 %v151, %v146
    %v620 = vpack.c.bf16 %v161, %v156
    %v621 = vpack.c.bf16 %v268, %v263
    %v622 = vpack.c.bf16 %v278, %v273
    %v623 = vpack.c.bf16 %v288, %v283
    %v624 = vpack.c.bf16 %v298, %v293
    %vm625 = vcmask 130048
    %v627 = vsel %vm625, %v621, 0
    %v630 = vsel %vm625, %v622, 0
    %v633 = vsel %vm625, %v623, 0
    %v636 = vsel %vm625, %v624, 0
    %v639 = vsel %vm625, %v617, 0
    %v642 = vsel %vm625, %v618, 0
    %v645 = vsel %vm625, %v619, 0
    %v648 = vsel %vm625, %v620, 0
    %650 = vmatprep.subr.bf16.mxu0 0
    %651 = vmatpush1.bf16.xpose.msra.mxu0 %v639
    %652 = vmatprep.subr.bf16.mxu0 0
    %653 = vmatpush1.bf16.xpose.msra.mxu0 %v642
    %654 = vmatprep.subr.bf16.mxu0 0
    %655 = vmatpush1.bf16.xpose.msra.mxu0 %v645
    %656 = vmatprep.subr.bf16.mxu0 0
    %657 = vmatpush1.bf16.xpose.msra.mxu0 %v648
    %658 = vmatprep.subr.bf16.mxu0 0
    %659 = vmatpush1.bf16.xpose.msra.mxu0 0
    %660 = vmatprep.subr.bf16.mxu0 0
    %661 = vmatpush1.bf16.xpose.msra.mxu0 0
    %662 = vmatprep.subr.bf16.mxu0 0
    %663 = vmatpush1.bf16.xpose.msra.mxu0 0
    %664 = vmatprep.subr.bf16.mxu0 0
    %665 = vmatpush1.bf16.xpose.msra.mxu0 0
    %666 = vmatprep.subr.bf16.mxu0 0
    %667 = vmatpush1.bf16.xpose.msra.mxu0 0
    %668 = vmatprep.subr.bf16.mxu0 0
    %669 = vmatpush1.bf16.xpose.msra.mxu0 0
    %670 = vmatprep.subr.bf16.mxu0 0
    %671 = vmatpush1.bf16.xpose.msra.mxu0 0
    %672 = vmatprep.subr.bf16.mxu0 0
    %673 = vmatpush1.bf16.xpose.msra.mxu0 0
    %674 = vmatprep.subr.bf16.mxu0 0
    %675 = vmatpush1.bf16.xpose.msra.mxu0 0
    %676 = vmatprep.subr.bf16.mxu0 0
    %677 = vmatpush1.bf16.xpose.msra.mxu0 0
    %678 = vmatprep.subr.bf16.mxu0 0
    %679 = vmatpush1.bf16.xpose.msra.mxu0 0
    %680 = vmatprep.subr.bf16.mxu0 0
    %681 = vmatpush1.bf16.xpose.msra.mxu0 0
    %682 = vmatprep.mubr.bf16.mxu0 0
    %683 = vmatmul.mubr.bf16.gmra.mrb[0].mxu0 %v627
    %v684 = vpop.f32.mrb[0].mxu0
    %v685 = vadd.f32 0.0, %v684
    %v686 = vpop.f32.mrb[0].mxu0
    %v687 = vpop.f32.mrb[0].mxu0
    %v688 = vadd.f32 0.0, %v687
    %v689 = vpop.f32.mrb[0].mxu0
    %690 = vmatprep.mubr.bf16.mxu0 0
    %691 = vmatmul.mubr.bf16.gmra.mrb[0].mxu0 %v630
    %v692 = vpop.f32.mrb[0].mxu0
    %v693 = vadd.f32 0.0, %v692
    %v694 = vpop.f32.mrb[0].mxu0
    %v695 = vpop.f32.mrb[0].mxu0
    %v696 = vadd.f32 0.0, %v695
    %v697 = vpop.f32.mrb[0].mxu0
    %698 = vmatprep.mubr.bf16.mxu0 0
    %699 = vmatmul.mubr.bf16.gmra.mrb[0].mxu0 %v633
    %v700 = vpop.f32.mrb[0].mxu0
    %v701 = vadd.f32 0.0, %v700
    %v702 = vpop.f32.mrb[0].mxu0
    %v703 = vpop.f32.mrb[0].mxu0
    %v704 = vadd.f32 0.0, %v703
    %v705 = vpop.f32.mrb[0].mxu0
    %706 = vmatprep.mubr.bf16.mxu0 0
    %707 = vmatmul.mubr.bf16.gmra.mrb[0].mxu0 %v636
    %v708 = vpop.f32.mrb[0].mxu0
    %v709 = vadd.f32 0.0, %v708
    %v710 = vpop.f32.mrb[0].mxu0
    %v711 = vpop.f32.mrb[0].mxu0
    %v712 = vadd.f32 0.0, %v711
    %v713 = vpop.f32.mrb[0].mxu0
    %714 = vdwg.mxu0
    %v715 = vsel %vm575, -9e+15, %v685
    %v716 = vsel %vm576, -9e+15, %v688
    %v717 = vsel %vm577, -9e+15, %v693
    %v718 = vsel %vm578, -9e+15, %v696
    %v719 = vsel %vm579, -9e+15, %v701
    %v720 = vsel %vm580, -9e+15, %v704
    %v721 = vsel %vm581, -9e+15, %v709
    %v722 = vsel %vm582, -9e+15, %v712
    %v723 = vadd.f32 %v715, %v609
    %v724 = vadd.f32 %v716, %v610
    %v725 = vadd.f32 %v717, %v611
    %v726 = vadd.f32 %v718, %v612
    %v727 = vadd.f32 %v719, %v613
    %v728 = vadd.f32 %v720, %v614
    %v729 = vadd.f32 %v721, %v615
    %v730 = vadd.f32 %v722, %v616
    %v731 = vsel %vm422, %v723, -inf
    %732 = vmax.xlane.f32.xlu0 %v731
    %v733 = vpop.xlane.xlu0 %732
    %v734 = vsel %vm422, %v724, -inf
    %735 = vmax.xlane.f32.xlu0 %v734
    %v736 = vpop.xlane.xlu0 %735
    %v737 = vsel %vm422, %v725, -inf
    %738 = vmax.xlane.f32.xlu0 %v737
    %v739 = vpop.xlane.xlu0 %738
    %v740 = vsel %vm422, %v726, -inf
    %741 = vmax.xlane.f32.xlu0 %v740
    %v742 = vpop.xlane.xlu0 %741
    %v743 = vsel %vm422, %v727, -inf
    %744 = vmax.xlane.f32.xlu0 %v743
    %v745 = vpop.xlane.xlu0 %744
    %v746 = vsel %vm422, %v728, -inf
    %747 = vmax.xlane.f32.xlu0 %v746
    %v748 = vpop.xlane.xlu0 %747
    %v749 = vsel %vm422, %v729, -inf
    %750 = vmax.xlane.f32.xlu0 %v749
    %v751 = vpop.xlane.xlu0 %750
    %v752 = vsel %vm422, %v730, -inf
    %753 = vmax.xlane.f32.xlu0 %v752
    %v754 = vpop.xlane.xlu0 %753
    %v755 = vsub.f32 %v723, %v733
    %v756 = vsub.f32 %v724, %v736
    %v757 = vsub.f32 %v725, %v739
    %v758 = vsub.f32 %v726, %v742
    %v759 = vsub.f32 %v727, %v745
    %v760 = vsub.f32 %v728, %v748
    %v761 = vsub.f32 %v729, %v751
    %v762 = vsub.f32 %v730, %v754
    %v763 = vmul.f32 %v755, 1.442695
    %v764 = vpow.pop %v763
    %v765 = vmul.f32 %v756, 1.442695
    %v766 = vpow.pop %v765
    %v767 = vmul.f32 %v757, 1.442695
    %v768 = vpow.pop %v767
    %v769 = vmul.f32 %v758, 1.442695
    %v770 = vpow.pop %v769
    %v771 = vmul.f32 %v759, 1.442695
    %v772 = vpow.pop %v771
    %v773 = vmul.f32 %v760, 1.442695
    %v774 = vpow.pop %v773
    %v775 = vmul.f32 %v761, 1.442695
    %v776 = vpow.pop %v775
    %v777 = vmul.f32 %v762, 1.442695
    %v778 = vpow.pop %v777
    %v779 = vsel %vm601, %v764, 0.0
    %v780 = vsel %vm602, %v766, 0.0
    %v781 = vsel %vm603, %v768, 0.0
    %v782 = vsel %vm604, %v770, 0.0
    %v783 = vsel %vm605, %v772, 0.0
    %v784 = vsel %vm606, %v774, 0.0
    %v785 = vsel %vm607, %v776, 0.0
    %v786 = vsel %vm608, %v778, 0.0
    %v787 = vsel %vm422, %v779, 0.0
    %788 = vadd.xlane.f32.xlu0 %v787
    %v789 = vpop.xlane.xlu0 %788
    %v790 = vsel %vm422, %v780, 0.0
    %791 = vadd.xlane.f32.xlu0 %v790
    %v792 = vpop.xlane.xlu0 %791
    %v793 = vsel %vm422, %v781, 0.0
    %794 = vadd.xlane.f32.xlu0 %v793
    %v795 = vpop.xlane.xlu0 %794
    %v796 = vsel %vm422, %v782, 0.0
    %797 = vadd.xlane.f32.xlu0 %v796
    %v798 = vpop.xlane.xlu0 %797
    %v799 = vsel %vm422, %v783, 0.0
    %800 = vadd.xlane.f32.xlu0 %v799
    %v801 = vpop.xlane.xlu0 %800
    %v802 = vsel %vm422, %v784, 0.0
    %803 = vadd.xlane.f32.xlu0 %v802
    %v804 = vpop.xlane.xlu0 %803
    %v805 = vsel %vm422, %v785, 0.0
    %806 = vadd.xlane.f32.xlu0 %v805
    %v807 = vpop.xlane.xlu0 %806
    %v808 = vsel %vm422, %v786, 0.0
    %809 = vadd.xlane.f32.xlu0 %v808
    %v810 = vpop.xlane.xlu0 %809
    %vm811 = vcmp.gt.f32.partialorder %v789, 0.0
    %vm812 = vcmp.gt.f32.partialorder %v792, 0.0
    %vm813 = vcmp.gt.f32.partialorder %v795, 0.0
    %vm814 = vcmp.gt.f32.partialorder %v798, 0.0
    %vm815 = vcmp.gt.f32.partialorder %v801, 0.0
    %vm816 = vcmp.gt.f32.partialorder %v804, 0.0
    %vm817 = vcmp.gt.f32.partialorder %v807, 0.0
    %vm818 = vcmp.gt.f32.partialorder %v810, 0.0
    %v819 = vrcp.pop %v789
    %v820 = vrcp.pop %v792
    %v821 = vrcp.pop %v795
    %v822 = vrcp.pop %v798
    %v823 = vrcp.pop %v801
    %v824 = vrcp.pop %v804
    %v825 = vrcp.pop %v807
    %v826 = vrcp.pop %v810
    %v827 = vsel %vm811, %v819, 0.0
    %v828 = vsel %vm812, %v820, 0.0
    %v829 = vsel %vm813, %v821, 0.0
    %v830 = vsel %vm814, %v822, 0.0
    %v831 = vsel %vm815, %v823, 0.0
    %v832 = vsel %vm816, %v824, 0.0
    %v833 = vsel %vm817, %v825, 0.0
    %v834 = vsel %vm818, %v826, 0.0
    %v835 = vmul.f32 %v779, %v827
    %v836 = vmul.f32 %v780, %v828
    %v837 = vmul.f32 %v781, %v829
    %v838 = vmul.f32 %v782, %v830
    %v839 = vmul.f32 %v783, %v831
    %v840 = vmul.f32 %v784, %v832
    %v841 = vmul.f32 %v785, %v833
    %v842 = vmul.f32 %v786, %v834
    %v843 = vpack.c.bf16 %v836, %v835
    %v844 = vpack.c.bf16 %v838, %v837
    %v845 = vpack.c.bf16 %v840, %v839
    %v846 = vpack.c.bf16 %v842, %v841
    %v848 = vsel %vm422, %v843, 0
    %v851 = vsel %vm422, %v844, 0
    %v854 = vsel %vm422, %v845, 0
    %v857 = vsel %vm422, %v846, 0
    %859 = vmatprep.subr.bf16.mxu0 0
    %860 = vmatpush1.bf16.msra.mxu0 %v617
    %861 = vmatprep.subr.bf16.mxu0 0
    %862 = vmatpush1.bf16.msra.mxu0 %v618
    %863 = vmatprep.subr.bf16.mxu0 0
    %864 = vmatpush1.bf16.msra.mxu0 %v619
    %865 = vmatprep.subr.bf16.mxu0 0
    %866 = vmatpush1.bf16.msra.mxu0 %v620
    %867 = vmatprep.subr.bf16.mxu0 0
    %868 = vmatpush1.bf16.msra.mxu0 0
    %869 = vmatprep.subr.bf16.mxu0 0
    %870 = vmatpush1.bf16.msra.mxu0 0
    %871 = vmatprep.subr.bf16.mxu0 0
    %872 = vmatpush1.bf16.msra.mxu0 0
    %873 = vmatprep.subr.bf16.mxu0 0
    %874 = vmatpush1.bf16.msra.mxu0 0
    %875 = vmatprep.subr.bf16.mxu0 0
    %876 = vmatpush1.bf16.msra.mxu0 0
    %877 = vmatprep.subr.bf16.mxu0 0
    %878 = vmatpush1.bf16.msra.mxu0 0
    %879 = vmatprep.subr.bf16.mxu0 0
    %880 = vmatpush1.bf16.msra.mxu0 0
    %881 = vmatprep.subr.bf16.mxu0 0
    %882 = vmatpush1.bf16.msra.mxu0 0
    %883 = vmatprep.subr.bf16.mxu0 0
    %884 = vmatpush1.bf16.msra.mxu0 0
    %885 = vmatprep.subr.bf16.mxu0 0
    %886 = vmatpush1.bf16.msra.mxu0 0
    %887 = vmatprep.subr.bf16.mxu0 0
    %888 = vmatpush1.bf16.msra.mxu0 0
    %889 = vmatprep.subr.bf16.mxu0 0
    %890 = vmatpush1.bf16.msra.mxu0 0
    %891 = vmatprep.mubr.bf16.mxu0 0
    %892 = vmatmul.mubr.bf16.gmra.mrb[0].mxu0 %v848
    %v893 = vpop.f32.mrb[0].mxu0
    %v894 = vadd.f32 0.0, %v893
    %v895 = vpop.f32.mrb[0].mxu0
    %v896 = vpop.f32.mrb[0].mxu0
    %v897 = vadd.f32 0.0, %v896
    %v898 = vpop.f32.mrb[0].mxu0
    %899 = vmatprep.mubr.bf16.mxu0 0
    %900 = vmatmul.mubr.bf16.gmra.mrb[0].mxu0 %v851
    %v901 = vpop.f32.mrb[0].mxu0
    %v902 = vadd.f32 0.0, %v901
    %v903 = vpop.f32.mrb[0].mxu0
    %v904 = vpop.f32.mrb[0].mxu0
    %v905 = vadd.f32 0.0, %v904
    %v906 = vpop.f32.mrb[0].mxu0
    %907 = vmatprep.mubr.bf16.mxu0 0
    %908 = vmatmul.mubr.bf16.gmra.mrb[0].mxu0 %v854
    %v909 = vpop.f32.mrb[0].mxu0
    %v910 = vadd.f32 0.0, %v909
    %v911 = vpop.f32.mrb[0].mxu0
    %v912 = vpop.f32.mrb[0].mxu0
    %v913 = vadd.f32 0.0, %v912
    %v914 = vpop.f32.mrb[0].mxu0
    %915 = vmatprep.mubr.bf16.mxu0 0
    %916 = vmatmul.mubr.bf16.gmra.mrb[0].mxu0 %v857
    %v917 = vpop.f32.mrb[0].mxu0
    %v918 = vadd.f32 0.0, %v917
    %v919 = vpop.f32.mrb[0].mxu0
    %v920 = vpop.f32.mrb[0].mxu0
    %v921 = vadd.f32 0.0, %v920
    %v922 = vpop.f32.mrb[0].mxu0
    %923 = vdwg.mxu0
    %924 = vst.msk [vmem:[#allocation2] sm:$0xff] %vm625, %v894
    %925 = vst.msk [vmem:[#allocation2 + $0x8] sm:$0xff] %vm625, %v897
    %926 = vst.msk [vmem:[#allocation2 + $0x10] sm:$0xff] %vm625, %v902
    %927 = vst.msk [vmem:[#allocation2 + $0x18] sm:$0xff] %vm625, %v905
    %928 = vst.msk [vmem:[#allocation2 + $0x20] sm:$0xff] %vm625, %v910
    %929 = vst.msk [vmem:[#allocation2 + $0x28] sm:$0xff] %vm625, %v913
    %930 = vst.msk [vmem:[#allocation2 + $0x30] sm:$0xff] %vm625, %v918
    %931 = vst.msk [vmem:[#allocation2 + $0x38] sm:$0xff] %vm625, %v921
    %936 = vrot.lane.b32.xlu0 %v621, 112
    %v937 = vpop.permute.xlu0 %936
    %938 = vrot.lane.b32.xlu0 %v622, 112
    %v939 = vpop.permute.xlu0 %938
    %940 = vrot.lane.b32.xlu0 %v623, 112
    %v941 = vpop.permute.xlu0 %940
    %942 = vrot.lane.b32.xlu0 %v624, 112
    %v943 = vpop.permute.xlu0 %942
    %948 = vrot.lane.b32.xlu0 %v617, 112
    %v949 = vpop.permute.xlu0 %948
    %950 = vrot.lane.b32.xlu0 %v618, 112
    %v951 = vpop.permute.xlu0 %950
    %952 = vrot.lane.b32.xlu0 %v619, 112
    %v953 = vpop.permute.xlu0 %952
    %954 = vrot.lane.b32.xlu0 %v620, 112
    %v955 = vpop.permute.xlu0 %954
    %v957 = vsel %vm625, %v937, 0
    %v960 = vsel %vm625, %v939, 0
    %v963 = vsel %vm625, %v941, 0
    %v966 = vsel %vm625, %v943, 0
    %v969 = vsel %vm625, %v949, 0
    %v972 = vsel %vm625, %v951, 0
    %v975 = vsel %vm625, %v953, 0
    %v978 = vsel %vm625, %v955, 0
    %980 = vmatprep.subr.bf16.mxu0 0
    %981 = vmatpush1.bf16.xpose.msra.mxu0 %v969
    %982 = vmatprep.subr.bf16.mxu0 0
    %983 = vmatpush1.bf16.xpose.msra.mxu0 %v972
    %984 = vmatprep.subr.bf16.mxu0 0
    %985 = vmatpush1.bf16.xpose.msra.mxu0 %v975
    %986 = vmatprep.subr.bf16.mxu0 0
    %987 = vmatpush1.bf16.xpose.msra.mxu0 %v978
    %988 = vmatprep.subr.bf16.mxu0 0
    %989 = vmatpush1.bf16.xpose.msra.mxu0 0
    %990 = vmatprep.subr.bf16.mxu0 0
    %991 = vmatpush1.bf16.xpose.msra.mxu0 0
    %992 = vmatprep.subr.bf16.mxu0 0
    %993 = vmatpush1.bf16.xpose.msra.mxu0 0
    %994 = vmatprep.subr.bf16.mxu0 0
    %995 = vmatpush1.bf16.xpose.msra.mxu0 0
    %996 = vmatprep.subr.bf16.mxu0 0
    %997 = vmatpush1.bf16.xpose.msra.mxu0 0
    %998 = vmatprep.subr.bf16.mxu0 0
    %999 = vmatpush1.bf16.xpose.msra.mxu0 0
    %1000 = vmatprep.subr.bf16.mxu0 0
    %1001 = vmatpush1.bf16.xpose.msra.mxu0 0
    %1002 = vmatprep.subr.bf16.mxu0 0
    %1003 = vmatpush1.bf16.xpose.msra.mxu0 0
    %1004 = vmatprep.subr.bf16.mxu0 0
    %1005 = vmatpush1.bf16.xpose.msra.mxu0 0
    %1006 = vmatprep.subr.bf16.mxu0 0
    %1007 = vmatpush1.bf16.xpose.msra.mxu0 0
    %1008 = vmatprep.subr.bf16.mxu0 0
    %1009 = vmatpush1.bf16.xpose.msra.mxu0 0
    %1010 = vmatprep.subr.bf16.mxu0 0
    %1011 = vmatpush1.bf16.xpose.msra.mxu0 0
    %1012 = vmatprep.mubr.bf16.mxu0 0
    %1013 = vmatmul.mubr.bf16.gmra.mrb[0].mxu0 %v957
    %v1014 = vpop.f32.mrb[0].mxu0
    %v1015 = vadd.f32 0.0, %v1014
    %v1016 = vpop.f32.mrb[0].mxu0
    %v1017 = vpop.f32.mrb[0].mxu0
    %v1018 = vadd.f32 0.0, %v1017
    %v1019 = vpop.f32.mrb[0].mxu0
    %1020 = vmatprep.mubr.bf16.mxu0 0
    %1021 = vmatmul.mubr.bf16.gmra.mrb[0].mxu0 %v960
    %v1022 = vpop.f32.mrb[0].mxu0
    %v1023 = vadd.f32 0.0, %v1022
    %v1024 = vpop.f32.mrb[0].mxu0
    %v1025 = vpop.f32.mrb[0].mxu0
    %v1026 = vadd.f32 0.0, %v1025
    %v1027 = vpop.f32.mrb[0].mxu0
    %1028 = vmatprep.mubr.bf16.mxu0 0
    %1029 = vmatmul.mubr.bf16.gmra.mrb[0].mxu0 %v963
    %v1030 = vpop.f32.mrb[0].mxu0
    %v1031 = vadd.f32 0.0, %v1030
    %v1032 = vpop.f32.mrb[0].mxu0
    %v1033 = vpop.f32.mrb[0].mxu0
    %v1034 = vadd.f32 0.0, %v1033
    %v1035 = vpop.f32.mrb[0].mxu0
    %1036 = vmatprep.mubr.bf16.mxu0 0
    %1037 = vmatmul.mubr.bf16.gmra.mrb[0].mxu0 %v966
    %v1038 = vpop.f32.mrb[0].mxu0
    %v1039 = vadd.f32 0.0, %v1038
    %v1040 = vpop.f32.mrb[0].mxu0
    %v1041 = vpop.f32.mrb[0].mxu0
    %v1042 = vadd.f32 0.0, %v1041
    %v1043 = vpop.f32.mrb[0].mxu0
    %1044 = vdwg.mxu0
    %v1045 = vsel %vm575, -9e+15, %v1015
    %v1046 = vsel %vm576, -9e+15, %v1018
    %v1047 = vsel %vm577, -9e+15, %v1023
    %v1048 = vsel %vm578, -9e+15, %v1026
    %v1049 = vsel %vm579, -9e+15, %v1031
    %v1050 = vsel %vm580, -9e+15, %v1034
    %v1051 = vsel %vm581, -9e+15, %v1039
    %v1052 = vsel %vm582, -9e+15, %v1042
    %v1053 = vadd.f32 %v1045, %v609
    %v1054 = vadd.f32 %v1046, %v610
    %v1055 = vadd.f32 %v1047, %v611
    %v1056 = vadd.f32 %v1048, %v612
    %v1057 = vadd.f32 %v1049, %v613
    %v1058 = vadd.f32 %v1050, %v614
    %v1059 = vadd.f32 %v1051, %v615
    %v1060 = vadd.f32 %v1052, %v616
    %v1061 = vsel %vm422, %v1053, -inf
    %1062 = vmax.xlane.f32.xlu0 %v1061
    %v1063 = vpop.xlane.xlu0 %1062
    %v1064 = vsel %vm422, %v1054, -inf
    %1065 = vmax.xlane.f32.xlu0 %v1064
    %v1066 = vpop.xlane.xlu0 %1065
    %v1067 = vsel %vm422, %v1055, -inf
    %1068 = vmax.xlane.f32.xlu0 %v1067
    %v1069 = vpop.xlane.xlu0 %1068
    %v1070 = vsel %vm422, %v1056, -inf
    %1071 = vmax.xlane.f32.xlu0 %v1070
    %v1072 = vpop.xlane.xlu0 %1071
    %v1073 = vsel %vm422, %v1057, -inf
    %1074 = vmax.xlane.f32.xlu0 %v1073
    %v1075 = vpop.xlane.xlu0 %1074
    %v1076 = vsel %vm422, %v1058, -inf
    %1077 = vmax.xlane.f32.xlu0 %v1076
    %v1078 = vpop.xlane.xlu0 %1077
    %v1079 = vsel %vm422, %v1059, -inf
    %1080 = vmax.xlane.f32.xlu0 %v1079
    %v1081 = vpop.xlane.xlu0 %1080
    %v1082 = vsel %vm422, %v1060, -inf
    %1083 = vmax.xlane.f32.xlu0 %v1082
    %v1084 = vpop.xlane.xlu0 %1083
    %v1085 = vsub.f32 %v1053, %v1063
    %v1086 = vsub.f32 %v1054, %v1066
    %v1087 = vsub.f32 %v1055, %v1069
    %v1088 = vsub.f32 %v1056, %v1072
    %v1089 = vsub.f32 %v1057, %v1075
    %v1090 = vsub.f32 %v1058, %v1078
    %v1091 = vsub.f32 %v1059, %v1081
    %v1092 = vsub.f32 %v1060, %v1084
    %v1093 = vmul.f32 %v1085, 1.442695
    %v1094 = vpow.pop %v1093
    %v1095 = vmul.f32 %v1086, 1.442695
    %v1096 = vpow.pop %v1095
    %v1097 = vmul.f32 %v1087, 1.442695
    %v1098 = vpow.pop %v1097
    %v1099 = vmul.f32 %v1088, 1.442695
    %v1100 = vpow.pop %v1099
    %v1101 = vmul.f32 %v1089, 1.442695
    %v1102 = vpow.pop %v1101
    %v1103 = vmul.f32 %v1090, 1.442695
    %v1104 = vpow.pop %v1103
    %v1105 = vmul.f32 %v1091, 1.442695
    %v1106 = vpow.pop %v1105
    %v1107 = vmul.f32 %v1092, 1.442695
    %v1108 = vpow.pop %v1107
    %v1109 = vsel %vm601, %v1094, 0.0
    %v1110 = vsel %vm602, %v1096, 0.0
    %v1111 = vsel %vm603, %v1098, 0.0
    %v1112 = vsel %vm604, %v1100, 0.0
    %v1113 = vsel %vm605, %v1102, 0.0
    %v1114 = vsel %vm606, %v1104, 0.0
    %v1115 = vsel %vm607, %v1106, 0.0
    %v1116 = vsel %vm608, %v1108, 0.0
    %v1117 = vsel %vm422, %v1109, 0.0
    %1118 = vadd.xlane.f32.xlu0 %v1117
    %v1119 = vpop.xlane.xlu0 %1118
    %v1120 = vsel %vm422, %v1110, 0.0
    %1121 = vadd.xlane.f32.xlu0 %v1120
    %v1122 = vpop.xlane.xlu0 %1121
    %v1123 = vsel %vm422, %v1111, 0.0
    %1124 = vadd.xlane.f32.xlu0 %v1123
    %v1125 = vpop.xlane.xlu0 %1124
    %v1126 = vsel %vm422, %v1112, 0.0
    %1127 = vadd.xlane.f32.xlu0 %v1126
    %v1128 = vpop.xlane.xlu0 %1127
    %v1129 = vsel %vm422, %v1113, 0.0
    %1130 = vadd.xlane.f32.xlu0 %v1129
    %v1131 = vpop.xlane.xlu0 %1130
    %v1132 = vsel %vm422, %v1114, 0.0
    %1133 = vadd.xlane.f32.xlu0 %v1132
    %v1134 = vpop.xlane.xlu0 %1133
    %v1135 = vsel %vm422, %v1115, 0.0
    %1136 = vadd.xlane.f32.xlu0 %v1135
    %v1137 = vpop.xlane.xlu0 %1136
    %v1138 = vsel %vm422, %v1116, 0.0
    %1139 = vadd.xlane.f32.xlu0 %v1138
    %v1140 = vpop.xlane.xlu0 %1139
    %vm1141 = vcmp.gt.f32.partialorder %v1119, 0.0
    %vm1142 = vcmp.gt.f32.partialorder %v1122, 0.0
    %vm1143 = vcmp.gt.f32.partialorder %v1125, 0.0
    %vm1144 = vcmp.gt.f32.partialorder %v1128, 0.0
    %vm1145 = vcmp.gt.f32.partialorder %v1131, 0.0
    %vm1146 = vcmp.gt.f32.partialorder %v1134, 0.0
    %vm1147 = vcmp.gt.f32.partialorder %v1137, 0.0
    %vm1148 = vcmp.gt.f32.partialorder %v1140, 0.0
    %v1149 = vrcp.pop %v1119
    %v1150 = vrcp.pop %v1122
    %v1151 = vrcp.pop %v1125
    %v1152 = vrcp.pop %v1128
    %v1153 = vrcp.pop %v1131
    %v1154 = vrcp.pop %v1134
    %v1155 = vrcp.pop %v1137
    %v1156 = vrcp.pop %v1140
    %v1157 = vsel %vm1141, %v1149, 0.0
    %v1158 = vsel %vm1142, %v1150, 0.0
    %v1159 = vsel %vm1143, %v1151, 0.0
    %v1160 = vsel %vm1144, %v1152, 0.0
    %v1161 = vsel %vm1145, %v1153, 0.0
    %v1162 = vsel %vm1146, %v1154, 0.0
    %v1163 = vsel %vm1147, %v1155, 0.0
    %v1164 = vsel %vm1148, %v1156, 0.0
    %v1165 = vmul.f32 %v1109, %v1157
    %v1166 = vmul.f32 %v1110, %v1158
    %v1167 = vmul.f32 %v1111, %v1159
    %v1168 = vmul.f32 %v1112, %v1160
    %v1169 = vmul.f32 %v1113, %v1161
    %v1170 = vmul.f32 %v1114, %v1162
    %v1171 = vmul.f32 %v1115, %v1163
    %v1172 = vmul.f32 %v1116, %v1164
    %v1173 = vpack.c.bf16 %v1166, %v1165
    %v1174 = vpack.c.bf16 %v1168, %v1167
    %v1175 = vpack.c.bf16 %v1170, %v1169
    %v1176 = vpack.c.bf16 %v1172, %v1171
    %v1182 = vsel %vm422, %v1173, 0
    %v1185 = vsel %vm422, %v1174, 0
    %v1188 = vsel %vm422, %v1175, 0
    %v1191 = vsel %vm422, %v1176, 0
    %1193 = vmatprep.subr.bf16.mxu0 0
    %1194 = vmatpush1.bf16.msra.mxu0 %v949
    %1195 = vmatprep.subr.bf16.mxu0 0
    %1196 = vmatpush1.bf16.msra.mxu0 %v951
    %1197 = vmatprep.subr.bf16.mxu0 0
    %1198 = vmatpush1.bf16.msra.mxu0 %v953
    %1199 = vmatprep.subr.bf16.mxu0 0
    %1200 = vmatpush1.bf16.msra.mxu0 %v955
    %1201 = vmatprep.subr.bf16.mxu0 0
    %1202 = vmatpush1.bf16.msra.mxu0 0
    %1203 = vmatprep.subr.bf16.mxu0 0
    %1204 = vmatpush1.bf16.msra.mxu0 0
    %1205 = vmatprep.subr.bf16.mxu0 0
    %1206 = vmatpush1.bf16.msra.mxu0 0
    %1207 = vmatprep.subr.bf16.mxu0 0
    %1208 = vmatpush1.bf16.msra.mxu0 0
    %1209 = vmatprep.subr.bf16.mxu0 0
    %1210 = vmatpush1.bf16.msra.mxu0 0
    %1211 = vmatprep.subr.bf16.mxu0 0
    %1212 = vmatpush1.bf16.msra.mxu0 0
    %1213 = vmatprep.subr.bf16.mxu0 0
    %1214 = vmatpush1.bf16.msra.mxu0 0
    %1215 = vmatprep.subr.bf16.mxu0 0
    %1216 = vmatpush1.bf16.msra.mxu0 0
    %1217 = vmatprep.subr.bf16.mxu0 0
    %1218 = vmatpush1.bf16.msra.mxu0 0
    %1219 = vmatprep.subr.bf16.mxu0 0
    %1220 = vmatpush1.bf16.msra.mxu0 0
    %1221 = vmatprep.subr.bf16.mxu0 0
    %1222 = vmatpush1.bf16.msra.mxu0 0
    %1223 = vmatprep.subr.bf16.mxu0 0
    %1224 = vmatpush1.bf16.msra.mxu0 0
    %1225 = vmatprep.mubr.bf16.mxu0 0
    %1226 = vmatmul.mubr.bf16.gmra.mrb[0].mxu0 %v1182
    %v1227 = vpop.f32.mrb[0].mxu0
    %v1228 = vadd.f32 0.0, %v1227
    %v1229 = vpop.f32.mrb[0].mxu0
    %v1230 = vpop.f32.mrb[0].mxu0
    %v1231 = vadd.f32 0.0, %v1230
    %v1232 = vpop.f32.mrb[0].mxu0
    %1233 = vmatprep.mubr.bf16.mxu0 0
    %1234 = vmatmul.mubr.bf16.gmra.mrb[0].mxu0 %v1185
    %v1235 = vpop.f32.mrb[0].mxu0
    %v1236 = vadd.f32 0.0, %v1235
    %v1237 = vpop.f32.mrb[0].mxu0
    %v1238 = vpop.f32.mrb[0].mxu0
    %v1239 = vadd.f32 0.0, %v1238
    %v1240 = vpop.f32.mrb[0].mxu0
    %1241 = vmatprep.mubr.bf16.mxu0 0
    %1242 = vmatmul.mubr.bf16.gmra.mrb[0].mxu0 %v1188
    %v1243 = vpop.f32.mrb[0].mxu0
    %v1244 = vadd.f32 0.0, %v1243
    %v1245 = vpop.f32.mrb[0].mxu0
    %v1246 = vpop.f32.mrb[0].mxu0
    %v1247 = vadd.f32 0.0, %v1246
    %v1248 = vpop.f32.mrb[0].mxu0
    %1249 = vmatprep.mubr.bf16.mxu0 0
    %1250 = vmatmul.mubr.bf16.gmra.mrb[0].mxu0 %v1191
    %v1251 = vpop.f32.mrb[0].mxu0
    %v1252 = vadd.f32 0.0, %v1251
    %v1253 = vpop.f32.mrb[0].mxu0
    %v1254 = vpop.f32.mrb[0].mxu0
    %v1255 = vadd.f32 0.0, %v1254
    %v1256 = vpop.f32.mrb[0].mxu0
    %1257 = vdwg.mxu0
    %1266 = vrot.lane.b32.xlu0 %v1228, 16
    %v1267 = vpop.permute.xlu0 %1266
    %1268 = vrot.lane.b32.xlu0 %v1231, 16
    %v1269 = vpop.permute.xlu0 %1268
    %1270 = vrot.lane.b32.xlu0 %v1236, 16
    %v1271 = vpop.permute.xlu0 %1270
    %1272 = vrot.lane.b32.xlu0 %v1239, 16
    %v1273 = vpop.permute.xlu0 %1272
    %1274 = vrot.lane.b32.xlu0 %v1244, 16
    %v1275 = vpop.permute.xlu0 %1274
    %1276 = vrot.lane.b32.xlu0 %v1247, 16
    %v1277 = vpop.permute.xlu0 %1276
    %1278 = vrot.lane.b32.xlu0 %v1252, 16
    %v1279 = vpop.permute.xlu0 %1278
    %1280 = vrot.lane.b32.xlu0 %v1255, 16
    %v1281 = vpop.permute.xlu0 %1280
    %vm1290 = vcmask 261248
    %1291 = vst.msk [vmem:[#allocation2] sm:$0xff] %vm1290, %v1267
    %1292 = vst.msk [vmem:[#allocation2 + $0x8] sm:$0xff] %vm1290, %v1269
    %1293 = vst.msk [vmem:[#allocation2 + $0x10] sm:$0xff] %vm1290, %v1271
    %1294 = vst.msk [vmem:[#allocation2 + $0x18] sm:$0xff] %vm1290, %v1273
    %1295 = vst.msk [vmem:[#allocation2 + $0x20] sm:$0xff] %vm1290, %v1275
    %1296 = vst.msk [vmem:[#allocation2 + $0x28] sm:$0xff] %vm1290, %v1277
    %1297 = vst.msk [vmem:[#allocation2 + $0x30] sm:$0xff] %vm1290, %v1279
    %1298 = vst.msk [vmem:[#allocation2 + $0x38] sm:$0xff] %vm1290, %v1281
    %1299 = vrot.lane.b32.xlu0 %v621, 96
    %v1300 = vpop.permute.xlu0 %1299
    %1301 = vrot.lane.b32.xlu0 %v622, 96
    %v1302 = vpop.permute.xlu0 %1301
    %1303 = vrot.lane.b32.xlu0 %v623, 96
    %v1304 = vpop.permute.xlu0 %1303
    %1305 = vrot.lane.b32.xlu0 %v624, 96
    %v1306 = vpop.permute.xlu0 %1305
    %1307 = vrot.lane.b32.xlu0 %v617, 96
    %v1308 = vpop.permute.xlu0 %1307
    %1309 = vrot.lane.b32.xlu0 %v618, 96
    %v1310 = vpop.permute.xlu0 %1309
    %1311 = vrot.lane.b32.xlu0 %v619, 96
    %v1312 = vpop.permute.xlu0 %1311
    %1313 = vrot.lane.b32.xlu0 %v620, 96
    %v1314 = vpop.permute.xlu0 %1313
    %v1316 = vsel %vm625, %v1300, 0
    %v1319 = vsel %vm625, %v1302, 0
    %v1322 = vsel %vm625, %v1304, 0
    %v1325 = vsel %vm625, %v1306, 0
    %v1328 = vsel %vm625, %v1308, 0
    %v1331 = vsel %vm625, %v1310, 0
    %v1334 = vsel %vm625, %v1312, 0
    %v1337 = vsel %vm625, %v1314, 0
    %1339 = vmatprep.subr.bf16.mxu0 0
    %1340 = vmatpush1.bf16.xpose.msra.mxu0 %v1328
    %1341 = vmatprep.subr.bf16.mxu0 0
    %1342 = vmatpush1.bf16.xpose.msra.mxu0 %v1331
    %1343 = vmatprep.subr.bf16.mxu0 0
    %1344 = vmatpush1.bf16.xpose.msra.mxu0 %v1334
    %1345 = vmatprep.subr.bf16.mxu0 0
    %1346 = vmatpush1.bf16.xpose.msra.mxu0 %v1337
    %1347 = vmatprep.subr.bf16.mxu0 0
    %1348 = vmatpush1.bf16.xpose.msra.mxu0 0
    %1349 = vmatprep.subr.bf16.mxu0 0
    %1350 = vmatpush1.bf16.xpose.msra.mxu0 0
    %1351 = vmatprep.subr.bf16.mxu0 0
    %1352 = vmatpush1.bf16.xpose.msra.mxu0 0
    %1353 = vmatprep.subr.bf16.mxu0 0
    %1354 = vmatpush1.bf16.xpose.msra.mxu0 0
    %1355 = vmatprep.subr.bf16.mxu0 0
    %1356 = vmatpush1.bf16.xpose.msra.mxu0 0
    %1357 = vmatprep.subr.bf16.mxu0 0
    %1358 = vmatpush1.bf16.xpose.msra.mxu0 0
    %1359 = vmatprep.subr.bf16.mxu0 0
    %1360 = vmatpush1.bf16.xpose.msra.mxu0 0
    %1361 = vmatprep.subr.bf16.mxu0 0
    %1362 = vmatpush1.bf16.xpose.msra.mxu0 0
    %1363 = vmatprep.subr.bf16.mxu0 0
    %1364 = vmatpush1.bf16.xpose.msra.mxu0 0
    %1365 = vmatprep.subr.bf16.mxu0 0
    %1366 = vmatpush1.bf16.xpose.msra.mxu0 0
    %1367 = vmatprep.subr.bf16.mxu0 0
    %1368 = vmatpush1.bf16.xpose.msra.mxu0 0
    %1369 = vmatprep.subr.bf16.mxu0 0
    %1370 = vmatpush1.bf16.xpose.msra.mxu0 0
    %1371 = vmatprep.mubr.bf16.mxu0 0
    %1372 = vmatmul.mubr.bf16.gmra.mrb[0].mxu0 %v1316
    %v1373 = vpop.f32.mrb[0].mxu0
    %v1374 = vadd.f32 0.0, %v1373
    %v1375 = vpop.f32.mrb[0].mxu0
    %v1376 = vpop.f32.mrb[0].mxu0
    %v1377 = vadd.f32 0.0, %v1376
    %v1378 = vpop.f32.mrb[0].mxu0
    %1379 = vmatprep.mubr.bf16.mxu0 0
    %1380 = vmatmul.mubr.bf16.gmra.mrb[0].mxu0 %v1319
    %v1381 = vpop.f32.mrb[0].mxu0
    %v1382 = vadd.f32 0.0, %v1381
    %v1383 = vpop.f32.mrb[0].mxu0
    %v1384 = vpop.f32.mrb[0].mxu0
    %v1385 = vadd.f32 0.0, %v1384
    %v1386 = vpop.f32.mrb[0].mxu0
    %1387 = vmatprep.mubr.bf16.mxu0 0
    %1388 = vmatmul.mubr.bf16.gmra.mrb[0].mxu0 %v1322
    %v1389 = vpop.f32.mrb[0].mxu0
    %v1390 = vadd.f32 0.0, %v1389
    %v1391 = vpop.f32.mrb[0].mxu0
    %v1392 = vpop.f32.mrb[0].mxu0
    %v1393 = vadd.f32 0.0, %v1392
    %v1394 = vpop.f32.mrb[0].mxu0
    %1395 = vmatprep.mubr.bf16.mxu0 0
    %1396 = vmatmul.mubr.bf16.gmra.mrb[0].mxu0 %v1325
    %v1397 = vpop.f32.mrb[0].mxu0
    %v1398 = vadd.f32 0.0, %v1397
    %v1399 = vpop.f32.mrb[0].mxu0
    %v1400 = vpop.f32.mrb[0].mxu0
    %v1401 = vadd.f32 0.0, %v1400
    %v1402 = vpop.f32.mrb[0].mxu0
    %1403 = vdwg.mxu0
    %v1404 = vsel %vm575, -9e+15, %v1374
    %v1405 = vsel %vm576, -9e+15, %v1377
    %v1406 = vsel %vm577, -9e+15, %v1382
    %v1407 = vsel %vm578, -9e+15, %v1385
    %v1408 = vsel %vm579, -9e+15, %v1390
    %v1409 = vsel %vm580, -9e+15, %v1393
    %v1410 = vsel %vm581, -9e+15, %v1398
    %v1411 = vsel %vm582, -9e+15, %v1401
    %v1412 = vadd.f32 %v1404, %v609
    %v1413 = vadd.f32 %v1405, %v610
    %v1414 = vadd.f32 %v1406, %v611
    %v1415 = vadd.f32 %v1407, %v612
    %v1416 = vadd.f32 %v1408, %v613
    %v1417 = vadd.f32 %v1409, %v614
    %v1418 = vadd.f32 %v1410, %v615
    %v1419 = vadd.f32 %v1411, %v616
    %v1420 = vsel %vm422, %v1412, -inf
    %1421 = vmax.xlane.f32.xlu0 %v1420
    %v1422 = vpop.xlane.xlu0 %1421
    %v1423 = vsel %vm422, %v1413, -inf
    %1424 = vmax.xlane.f32.xlu0 %v1423
    %v1425 = vpop.xlane.xlu0 %1424
    %v1426 = vsel %vm422, %v1414, -inf
    %1427 = vmax.xlane.f32.xlu0 %v1426
    %v1428 = vpop.xlane.xlu0 %1427
    %v1429 = vsel %vm422, %v1415, -inf
    %1430 = vmax.xlane.f32.xlu0 %v1429
    %v1431 = vpop.xlane.xlu0 %1430
    %v1432 = vsel %vm422, %v1416, -inf
    %1433 = vmax.xlane.f32.xlu0 %v1432
    %v1434 = vpop.xlane.xlu0 %1433
    %v1435 = vsel %vm422, %v1417, -inf
    %1436 = vmax.xlane.f32.xlu0 %v1435
    %v1437 = vpop.xlane.xlu0 %1436
    %v1438 = vsel %vm422, %v1418, -inf
    %1439 = vmax.xlane.f32.xlu0 %v1438
    %v1440 = vpop.xlane.xlu0 %1439
    %v1441 = vsel %vm422, %v1419, -inf
    %1442 = vmax.xlane.f32.xlu0 %v1441
    %v1443 = vpop.xlane.xlu0 %1442
    %v1444 = vsub.f32 %v1412, %v1422
    %v1445 = vsub.f32 %v1413, %v1425
    %v1446 = vsub.f32 %v1414, %v1428
    %v1447 = vsub.f32 %v1415, %v1431
    %v1448 = vsub.f32 %v1416, %v1434
    %v1449 = vsub.f32 %v1417, %v1437
    %v1450 = vsub.f32 %v1418, %v1440
    %v1451 = vsub.f32 %v1419, %v1443
    %v1452 = vmul.f32 %v1444, 1.442695
    %v1453 = vpow.pop %v1452
    %v1454 = vmul.f32 %v1445, 1.442695
    %v1455 = vpow.pop %v1454
    %v1456 = vmul.f32 %v1446, 1.442695
    %v1457 = vpow.pop %v1456
    %v1458 = vmul.f32 %v1447, 1.442695
    %v1459 = vpow.pop %v1458
    %v1460 = vmul.f32 %v1448, 1.442695
    %v1461 = vpow.pop %v1460
    %v1462 = vmul.f32 %v1449, 1.442695
    %v1463 = vpow.pop %v1462
    %v1464 = vmul.f32 %v1450, 1.442695
    %v1465 = vpow.pop %v1464
    %v1466 = vmul.f32 %v1451, 1.442695
    %v1467 = vpow.pop %v1466
    %v1468 = vsel %vm601, %v1453, 0.0
    %v1469 = vsel %vm602, %v1455, 0.0
    %v1470 = vsel %vm603, %v1457, 0.0
    %v1471 = vsel %vm604, %v1459, 0.0
    %v1472 = vsel %vm605, %v1461, 0.0
    %v1473 = vsel %vm606, %v1463, 0.0
    %v1474 = vsel %vm607, %v1465, 0.0
    %v1475 = vsel %vm608, %v1467, 0.0
    %v1476 = vsel %vm422, %v1468, 0.0
    %1477 = vadd.xlane.f32.xlu0 %v1476
    %v1478 = vpop.xlane.xlu0 %1477
    %v1479 = vsel %vm422, %v1469, 0.0
    %1480 = vadd.xlane.f32.xlu0 %v1479
    %v1481 = vpop.xlane.xlu0 %1480
    %v1482 = vsel %vm422, %v1470, 0.0
    %1483 = vadd.xlane.f32.xlu0 %v1482
    %v1484 = vpop.xlane.xlu0 %1483
    %v1485 = vsel %vm422, %v1471, 0.0
    %1486 = vadd.xlane.f32.xlu0 %v1485
    %v1487 = vpop.xlane.xlu0 %1486
    %v1488 = vsel %vm422, %v1472, 0.0
    %1489 = vadd.xlane.f32.xlu0 %v1488
    %v1490 = vpop.xlane.xlu0 %1489
    %v1491 = vsel %vm422, %v1473, 0.0
    %1492 = vadd.xlane.f32.xlu0 %v1491
    %v1493 = vpop.xlane.xlu0 %1492
    %v1494 = vsel %vm422, %v1474, 0.0
    %1495 = vadd.xlane.f32.xlu0 %v1494
    %v1496 = vpop.xlane.xlu0 %1495
    %v1497 = vsel %vm422, %v1475, 0.0
    %1498 = vadd.xlane.f32.xlu0 %v1497
    %v1499 = vpop.xlane.xlu0 %1498
    %vm1500 = vcmp.gt.f32.partialorder %v1478, 0.0
    %vm1501 = vcmp.gt.f32.partialorder %v1481, 0.0
    %vm1502 = vcmp.gt.f32.partialorder %v1484, 0.0
    %vm1503 = vcmp.gt.f32.partialorder %v1487, 0.0
    %vm1504 = vcmp.gt.f32.partialorder %v1490, 0.0
    %vm1505 = vcmp.gt.f32.partialorder %v1493, 0.0
    %vm1506 = vcmp.gt.f32.partialorder %v1496, 0.0
    %vm1507 = vcmp.gt.f32.partialorder %v1499, 0.0
    %v1508 = vrcp.pop %v1478
    %v1509 = vrcp.pop %v1481
    %v1510 = vrcp.pop %v1484
    %v1511 = vrcp.pop %v1487
    %v1512 = vrcp.pop %v1490
    %v1513 = vrcp.pop %v1493
    %v1514 = vrcp.pop %v1496
    %v1515 = vrcp.pop %v1499
    %v1516 = vsel %vm1500, %v1508, 0.0
    %v1517 = vsel %vm1501, %v1509, 0.0
    %v1518 = vsel %vm1502, %v1510, 0.0
    %v1519 = vsel %vm1503, %v1511, 0.0
    %v1520 = vsel %vm1504, %v1512, 0.0
    %v1521 = vsel %vm1505, %v1513, 0.0
    %v1522 = vsel %vm1506, %v1514, 0.0
    %v1523 = vsel %vm1507, %v1515, 0.0
    %v1524 = vmul.f32 %v1468, %v1516
    %v1525 = vmul.f32 %v1469, %v1517
    %v1526 = vmul.f32 %v1470, %v1518
    %v1527 = vmul.f32 %v1471, %v1519
    %v1528 = vmul.f32 %v1472, %v1520
    %v1529 = vmul.f32 %v1473, %v1521
    %v1530 = vmul.f32 %v1474, %v1522
    %v1531 = vmul.f32 %v1475, %v1523
    %v1532 = vpack.c.bf16 %v1525, %v1524
    %v1533 = vpack.c.bf16 %v1527, %v1526
    %v1534 = vpack.c.bf16 %v1529, %v1528
    %v1535 = vpack.c.bf16 %v1531, %v1530
    %v1541 = vsel %vm422, %v1532, 0
    %v1544 = vsel %vm422, %v1533, 0
    %v1547 = vsel %vm422, %v1534, 0
    %v1550 = vsel %vm422, %v1535, 0
    %1552 = vmatprep.subr.bf16.mxu0 0
    %1553 = vmatpush1.bf16.msra.mxu0 %v1308
    %1554 = vmatprep.subr.bf16.mxu0 0
    %1555 = vmatpush1.bf16.msra.mxu0 %v1310
    %1556 = vmatprep.subr.bf16.mxu0 0
    %1557 = vmatpush1.bf16.msra.mxu0 %v1312
    %1558 = vmatprep.subr.bf16.mxu0 0
    %1559 = vmatpush1.bf16.msra.mxu0 %v1314
    %1560 = vmatprep.subr.bf16.mxu0 0
    %1561 = vmatpush1.bf16.msra.mxu0 0
    %1562 = vmatprep.subr.bf16.mxu0 0
    %1563 = vmatpush1.bf16.msra.mxu0 0
    %1564 = vmatprep.subr.bf16.mxu0 0
    %1565 = vmatpush1.bf16.msra.mxu0 0
    %1566 = vmatprep.subr.bf16.mxu0 0
    %1567 = vmatpush1.bf16.msra.mxu0 0
    %1568 = vmatprep.subr.bf16.mxu0 0
    %1569 = vmatpush1.bf16.msra.mxu0 0
    %1570 = vmatprep.subr.bf16.mxu0 0
    %1571 = vmatpush1.bf16.msra.mxu0 0
    %1572 = vmatprep.subr.bf16.mxu0 0
    %1573 = vmatpush1.bf16.msra.mxu0 0
    %1574 = vmatprep.subr.bf16.mxu0 0
    %1575 = vmatpush1.bf16.msra.mxu0 0
    %1576 = vmatprep.subr.bf16.mxu0 0
    %1577 = vmatpush1.bf16.msra.mxu0 0
    %1578 = vmatprep.subr.bf16.mxu0 0
    %1579 = vmatpush1.bf16.msra.mxu0 0
    %1580 = vmatprep.subr.bf16.mxu0 0
    %1581 = vmatpush1.bf16.msra.mxu0 0
    %1582 = vmatprep.subr.bf16.mxu0 0
    %1583 = vmatpush1.bf16.msra.mxu0 0
    %1584 = vmatprep.mubr.bf16.mxu0 0
    %1585 = vmatmul.mubr.bf16.gmra.mrb[0].mxu0 %v1541
    %v1586 = vpop.f32.mrb[0].mxu0
    %v1587 = vadd.f32 0.0, %v1586
    %v1588 = vpop.f32.mrb[0].mxu0
    %v1589 = vpop.f32.mrb[0].mxu0
    %v1590 = vadd.f32 0.0, %v1589
    %v1591 = vpop.f32.mrb[0].mxu0
    %1592 = vmatprep.mubr.bf16.mxu0 0
    %1593 = vmatmul.mubr.bf16.gmra.mrb[0].mxu0 %v1544
    %v1594 = vpop.f32.mrb[0].mxu0
    %v1595 = vadd.f32 0.0, %v1594
    %v1596 = vpop.f32.mrb[0].mxu0
    %v1597 = vpop.f32.mrb[0].mxu0
    %v1598 = vadd.f32 0.0, %v1597
    %v1599 = vpop.f32.mrb[0].mxu0
    %1600 = vmatprep.mubr.bf16.mxu0 0
    %1601 = vmatmul.mubr.bf16.gmra.mrb[0].mxu0 %v1547
    %v1602 = vpop.f32.mrb[0].mxu0
    %v1603 = vadd.f32 0.0, %v1602
    %v1604 = vpop.f32.mrb[0].mxu0
    %v1605 = vpop.f32.mrb[0].mxu0
    %v1606 = vadd.f32 0.0, %v1605
    %v1607 = vpop.f32.mrb[0].mxu0
    %1608 = vmatprep.mubr.bf16.mxu0 0
    %1609 = vmatmul.mubr.bf16.gmra.mrb[0].mxu0 %v1550
    %v1610 = vpop.f32.mrb[0].mxu0
    %v1611 = vadd.f32 0.0, %v1610
    %v1612 = vpop.f32.mrb[0].mxu0
    %v1613 = vpop.f32.mrb[0].mxu0
    %v1614 = vadd.f32 0.0, %v1613
    %v1615 = vpop.f32.mrb[0].mxu0
    %1616 = vdwg.mxu0
    %1625 = vrot.lane.b32.xlu0 %v1587, 32
    %v1626 = vpop.permute.xlu0 %1625
    %1627 = vrot.lane.b32.xlu0 %v1590, 32
    %v1628 = vpop.permute.xlu0 %1627
    %1629 = vrot.lane.b32.xlu0 %v1595, 32
    %v1630 = vpop.permute.xlu0 %1629
    %1631 = vrot.lane.b32.xlu0 %v1598, 32
    %v1632 = vpop.permute.xlu0 %1631
    %1633 = vrot.lane.b32.xlu0 %v1603, 32
    %v1634 = vpop.permute.xlu0 %1633
    %1635 = vrot.lane.b32.xlu0 %v1606, 32
    %v1636 = vpop.permute.xlu0 %1635
    %1637 = vrot.lane.b32.xlu0 %v1611, 32
    %v1638 = vpop.permute.xlu0 %1637
    %1639 = vrot.lane.b32.xlu0 %v1614, 32
    %v1640 = vpop.permute.xlu0 %1639
    %vm1649 = vcmask 392448
    %1650 = vst.msk [vmem:[#allocation2] sm:$0xff] %vm1649, %v1626
    %1651 = vst.msk [vmem:[#allocation2 + $0x8] sm:$0xff] %vm1649, %v1628
    %1652 = vst.msk [vmem:[#allocation2 + $0x10] sm:$0xff] %vm1649, %v1630
    %1653 = vst.msk [vmem:[#allocation2 + $0x18] sm:$0xff] %vm1649, %v1632
    %1654 = vst.msk [vmem:[#allocation2 + $0x20] sm:$0xff] %vm1649, %v1634
    %1655 = vst.msk [vmem:[#allocation2 + $0x28] sm:$0xff] %vm1649, %v1636
    %1656 = vst.msk [vmem:[#allocation2 + $0x30] sm:$0xff] %vm1649, %v1638
    %1657 = vst.msk [vmem:[#allocation2 + $0x38] sm:$0xff] %vm1649, %v1640
    %1658 = vrot.lane.b32.xlu0 %v621, 80
    %v1659 = vpop.permute.xlu0 %1658
    %1660 = vrot.lane.b32.xlu0 %v622, 80
    %v1661 = vpop.permute.xlu0 %1660
    %1662 = vrot.lane.b32.xlu0 %v623, 80
    %v1663 = vpop.permute.xlu0 %1662
    %1664 = vrot.lane.b32.xlu0 %v624, 80
    %v1665 = vpop.permute.xlu0 %1664
    %1666 = vrot.lane.b32.xlu0 %v617, 80
    %v1667 = vpop.permute.xlu0 %1666
    %1668 = vrot.lane.b32.xlu0 %v618, 80
    %v1669 = vpop.permute.xlu0 %1668
    %1670 = vrot.lane.b32.xlu0 %v619, 80
    %v1671 = vpop.permute.xlu0 %1670
    %1672 = vrot.lane.b32.xlu0 %v620, 80
    %v1673 = vpop.permute.xlu0 %1672
    %v1675 = vsel %vm625, %v1659, 0
    %v1678 = vsel %vm625, %v1661, 0
    %v1681 = vsel %vm625, %v1663, 0
    %v1684 = vsel %vm625, %v1665, 0
    %v1687 = vsel %vm625, %v1667, 0
    %v1690 = vsel %vm625, %v1669, 0
    %v1693 = vsel %vm625, %v1671, 0
    %v1696 = vsel %vm625, %v1673, 0
    %1698 = vmatprep.subr.bf16.mxu0 0
    %1699 = vmatpush1.bf16.xpose.msra.mxu0 %v1687
    %1700 = vmatprep.subr.bf16.mxu0 0
    %1701 = vmatpush1.bf16.xpose.msra.mxu0 %v1690
    %1702 = vmatprep.subr.bf16.mxu0 0
    %1703 = vmatpush1.bf16.xpose.msra.mxu0 %v1693
    %1704 = vmatprep.subr.bf16.mxu0 0
    %1705 = vmatpush1.bf16.xpose.msra.mxu0 %v1696
    %1706 = vmatprep.subr.bf16.mxu0 0
    %1707 = vmatpush1.bf16.xpose.msra.mxu0 0
    %1708 = vmatprep.subr.bf16.mxu0 0
    %1709 = vmatpush1.bf16.xpose.msra.mxu0 0
    %1710 = vmatprep.subr.bf16.mxu0 0
    %1711 = vmatpush1.bf16.xpose.msra.mxu0 0
    %1712 = vmatprep.subr.bf16.mxu0 0
    %1713 = vmatpush1.bf16.xpose.msra.mxu0 0
    %1714 = vmatprep.subr.bf16.mxu0 0
    %1715 = vmatpush1.bf16.xpose.msra.mxu0 0
    %1716 = vmatprep.subr.bf16.mxu0 0
    %1717 = vmatpush1.bf16.xpose.msra.mxu0 0
    %1718 = vmatprep.subr.bf16.mxu0 0
    %1719 = vmatpush1.bf16.xpose.msra.mxu0 0
    %1720 = vmatprep.subr.bf16.mxu0 0
    %1721 = vmatpush1.bf16.xpose.msra.mxu0 0
    %1722 = vmatprep.subr.bf16.mxu0 0
    %1723 = vmatpush1.bf16.xpose.msra.mxu0 0
    %1724 = vmatprep.subr.bf16.mxu0 0
    %1725 = vmatpush1.bf16.xpose.msra.mxu0 0
    %1726 = vmatprep.subr.bf16.mxu0 0
    %1727 = vmatpush1.bf16.xpose.msra.mxu0 0
    %1728 = vmatprep.subr.bf16.mxu0 0
    %1729 = vmatpush1.bf16.xpose.msra.mxu0 0
    %1730 = vmatprep.mubr.bf16.mxu0 0
    %1731 = vmatmul.mubr.bf16.gmra.mrb[0].mxu0 %v1675
    %v1732 = vpop.f32.mrb[0].mxu0
    %v1733 = vadd.f32 0.0, %v1732
    %v1734 = vpop.f32.mrb[0].mxu0
    %v1735 = vpop.f32.mrb[0].mxu0
    %v1736 = vadd.f32 0.0, %v1735
    %v1737 = vpop.f32.mrb[0].mxu0
    %1738 = vmatprep.mubr.bf16.mxu0 0
    %1739 = vmatmul.mubr.bf16.gmra.mrb[0].mxu0 %v1678
    %v1740 = vpop.f32.mrb[0].mxu0
    %v1741 = vadd.f32 0.0, %v1740
    %v1742 = vpop.f32.mrb[0].mxu0
    %v1743 = vpop.f32.mrb[0].mxu0
    %v1744 = vadd.f32 0.0, %v1743
    %v1745 = vpop.f32.mrb[0].mxu0
    %1746 = vmatprep.mubr.bf16.mxu0 0
    %1747 = vmatmul.mubr.bf16.gmra.mrb[0].mxu0 %v1681
    %v1748 = vpop.f32.mrb[0].mxu0
    %v1749 = vadd.f32 0.0, %v1748
    %v1750 = vpop.f32.mrb[0].mxu0
    %v1751 = vpop.f32.mrb[0].mxu0
    %v1752 = vadd.f32 0.0, %v1751
    %v1753 = vpop.f32.mrb[0].mxu0
    %1754 = vmatprep.mubr.bf16.mxu0 0
    %1755 = vmatmul.mubr.bf16.gmra.mrb[0].mxu0 %v1684
    %v1756 = vpop.f32.mrb[0].mxu0
    %v1757 = vadd.f32 0.0, %v1756
    %v1758 = vpop.f32.mrb[0].mxu0
    %v1759 = vpop.f32.mrb[0].mxu0
    %v1760 = vadd.f32 0.0, %v1759
    %v1761 = vpop.f32.mrb[0].mxu0
    %1762 = vdwg.mxu0
    %v1763 = vsel %vm575, -9e+15, %v1733
    %v1764 = vsel %vm576, -9e+15, %v1736
    %v1765 = vsel %vm577, -9e+15, %v1741
    %v1766 = vsel %vm578, -9e+15, %v1744
    %v1767 = vsel %vm579, -9e+15, %v1749
    %v1768 = vsel %vm580, -9e+15, %v1752
    %v1769 = vsel %vm581, -9e+15, %v1757
    %v1770 = vsel %vm582, -9e+15, %v1760
    %v1771 = vadd.f32 %v1763, %v609
    %v1772 = vadd.f32 %v1764, %v610
    %v1773 = vadd.f32 %v1765, %v611
    %v1774 = vadd.f32 %v1766, %v612
    %v1775 = vadd.f32 %v1767, %v613
    %v1776 = vadd.f32 %v1768, %v614
    %v1777 = vadd.f32 %v1769, %v615
    %v1778 = vadd.f32 %v1770, %v616
    %v1779 = vsel %vm422, %v1771, -inf
    %1780 = vmax.xlane.f32.xlu0 %v1779
    %v1781 = vpop.xlane.xlu0 %1780
    %v1782 = vsel %vm422, %v1772, -inf
    %1783 = vmax.xlane.f32.xlu0 %v1782
    %v1784 = vpop.xlane.xlu0 %1783
    %v1785 = vsel %vm422, %v1773, -inf
    %1786 = vmax.xlane.f32.xlu0 %v1785
    %v1787 = vpop.xlane.xlu0 %1786
    %v1788 = vsel %vm422, %v1774, -inf
    %1789 = vmax.xlane.f32.xlu0 %v1788
    %v1790 = vpop.xlane.xlu0 %1789
    %v1791 = vsel %vm422, %v1775, -inf
    %1792 = vmax.xlane.f32.xlu0 %v1791
    %v1793 = vpop.xlane.xlu0 %1792
    %v1794 = vsel %vm422, %v1776, -inf
    %1795 = vmax.xlane.f32.xlu0 %v1794
    %v1796 = vpop.xlane.xlu0 %1795
    %v1797 = vsel %vm422, %v1777, -inf
    %1798 = vmax.xlane.f32.xlu0 %v1797
    %v1799 = vpop.xlane.xlu0 %1798
    %v1800 = vsel %vm422, %v1778, -inf
    %1801 = vmax.xlane.f32.xlu0 %v1800
    %v1802 = vpop.xlane.xlu0 %1801
    %v1803 = vsub.f32 %v1771, %v1781
    %v1804 = vsub.f32 %v1772, %v1784
    %v1805 = vsub.f32 %v1773, %v1787
    %v1806 = vsub.f32 %v1774, %v1790
    %v1807 = vsub.f32 %v1775, %v1793
    %v1808 = vsub.f32 %v1776, %v1796
    %v1809 = vsub.f32 %v1777, %v1799
    %v1810 = vsub.f32 %v1778, %v1802
    %v1811 = vmul.f32 %v1803, 1.442695
    %v1812 = vpow.pop %v1811
    %v1813 = vmul.f32 %v1804, 1.442695
    %v1814 = vpow.pop %v1813
    %v1815 = vmul.f32 %v1805, 1.442695
    %v1816 = vpow.pop %v1815
    %v1817 = vmul.f32 %v1806, 1.442695
    %v1818 = vpow.pop %v1817
    %v1819 = vmul.f32 %v1807, 1.442695
    %v1820 = vpow.pop %v1819
    %v1821 = vmul.f32 %v1808, 1.442695
    %v1822 = vpow.pop %v1821
    %v1823 = vmul.f32 %v1809, 1.442695
    %v1824 = vpow.pop %v1823
    %v1825 = vmul.f32 %v1810, 1.442695
    %v1826 = vpow.pop %v1825
    %v1827 = vsel %vm601, %v1812, 0.0
    %v1828 = vsel %vm602, %v1814, 0.0
    %v1829 = vsel %vm603, %v1816, 0.0
    %v1830 = vsel %vm604, %v1818, 0.0
    %v1831 = vsel %vm605, %v1820, 0.0
    %v1832 = vsel %vm606, %v1822, 0.0
    %v1833 = vsel %vm607, %v1824, 0.0
    %v1834 = vsel %vm608, %v1826, 0.0
    %v1835 = vsel %vm422, %v1827, 0.0
    %1836 = vadd.xlane.f32.xlu0 %v1835
    %v1837 = vpop.xlane.xlu0 %1836
    %v1838 = vsel %vm422, %v1828, 0.0
    %1839 = vadd.xlane.f32.xlu0 %v1838
    %v1840 = vpop.xlane.xlu0 %1839
    %v1841 = vsel %vm422, %v1829, 0.0
    %1842 = vadd.xlane.f32.xlu0 %v1841
    %v1843 = vpop.xlane.xlu0 %1842
    %v1844 = vsel %vm422, %v1830, 0.0
    %1845 = vadd.xlane.f32.xlu0 %v1844
    %v1846 = vpop.xlane.xlu0 %1845
    %v1847 = vsel %vm422, %v1831, 0.0
    %1848 = vadd.xlane.f32.xlu0 %v1847
    %v1849 = vpop.xlane.xlu0 %1848
    %v1850 = vsel %vm422, %v1832, 0.0
    %1851 = vadd.xlane.f32.xlu0 %v1850
    %v1852 = vpop.xlane.xlu0 %1851
    %v1853 = vsel %vm422, %v1833, 0.0
    %1854 = vadd.xlane.f32.xlu0 %v1853
    %v1855 = vpop.xlane.xlu0 %1854
    %v1856 = vsel %vm422, %v1834, 0.0
    %1857 = vadd.xlane.f32.xlu0 %v1856
    %v1858 = vpop.xlane.xlu0 %1857
    %vm1859 = vcmp.gt.f32.partialorder %v1837, 0.0
    %vm1860 = vcmp.gt.f32.partialorder %v1840, 0.0
    %vm1861 = vcmp.gt.f32.partialorder %v1843, 0.0
    %vm1862 = vcmp.gt.f32.partialorder %v1846, 0.0
    %vm1863 = vcmp.gt.f32.partialorder %v1849, 0.0
    %vm1864 = vcmp.gt.f32.partialorder %v1852, 0.0
    %vm1865 = vcmp.gt.f32.partialorder %v1855, 0.0
    %vm1866 = vcmp.gt.f32.partialorder %v1858, 0.0
    %v1867 = vrcp.pop %v1837
    %v1868 = vrcp.pop %v1840
    %v1869 = vrcp.pop %v1843
    %v1870 = vrcp.pop %v1846
    %v1871 = vrcp.pop %v1849
    %v1872 = vrcp.pop %v1852
    %v1873 = vrcp.pop %v1855
    %v1874 = vrcp.pop %v1858
    %v1875 = vsel %vm1859, %v1867, 0.0
    %v1876 = vsel %vm1860, %v1868, 0.0
    %v1877 = vsel %vm1861, %v1869, 0.0
    %v1878 = vsel %vm1862, %v1870, 0.0
    %v1879 = vsel %vm1863, %v1871, 0.0
    %v1880 = vsel %vm1864, %v1872, 0.0
    %v1881 = vsel %vm1865, %v1873, 0.0
    %v1882 = vsel %vm1866, %v1874, 0.0
    %v1883 = vmul.f32 %v1827, %v1875
    %v1884 = vmul.f32 %v1828, %v1876
    %v1885 = vmul.f32 %v1829, %v1877
    %v1886 = vmul.f32 %v1830, %v1878
    %v1887 = vmul.f32 %v1831, %v1879
    %v1888 = vmul.f32 %v1832, %v1880
    %v1889 = vmul.f32 %v1833, %v1881
    %v1890 = vmul.f32 %v1834, %v1882
    %v1891 = vpack.c.bf16 %v1884, %v1883
    %v1892 = vpack.c.bf16 %v1886, %v1885
    %v1893 = vpack.c.bf16 %v1888, %v1887
    %v1894 = vpack.c.bf16 %v1890, %v1889
    %v1900 = vsel %vm422, %v1891, 0
    %v1903 = vsel %vm422, %v1892, 0
    %v1906 = vsel %vm422, %v1893, 0
    %v1909 = vsel %vm422, %v1894, 0
    %1911 = vmatprep.subr.bf16.mxu0 0
    %1912 = vmatpush1.bf16.msra.mxu0 %v1667
    %1913 = vmatprep.subr.bf16.mxu0 0
    %1914 = vmatpush1.bf16.msra.mxu0 %v1669
    %1915 = vmatprep.subr.bf16.mxu0 0
    %1916 = vmatpush1.bf16.msra.mxu0 %v1671
    %1917 = vmatprep.subr.bf16.mxu0 0
    %1918 = vmatpush1.bf16.msra.mxu0 %v1673
    %1919 = vmatprep.subr.bf16.mxu0 0
    %1920 = vmatpush1.bf16.msra.mxu0 0
    %1921 = vmatprep.subr.bf16.mxu0 0
    %1922 = vmatpush1.bf16.msra.mxu0 0
    %1923 = vmatprep.subr.bf16.mxu0 0
    %1924 = vmatpush1.bf16.msra.mxu0 0
    %1925 = vmatprep.subr.bf16.mxu0 0
    %1926 = vmatpush1.bf16.msra.mxu0 0
    %1927 = vmatprep.subr.bf16.mxu0 0
    %1928 = vmatpush1.bf16.msra.mxu0 0
    %1929 = vmatprep.subr.bf16.mxu0 0
    %1930 = vmatpush1.bf16.msra.mxu0 0
    %1931 = vmatprep.subr.bf16.mxu0 0
    %1932 = vmatpush1.bf16.msra.mxu0 0
    %1933 = vmatprep.subr.bf16.mxu0 0
    %1934 = vmatpush1.bf16.msra.mxu0 0
    %1935 = vmatprep.subr.bf16.mxu0 0
    %1936 = vmatpush1.bf16.msra.mxu0 0
    %1937 = vmatprep.subr.bf16.mxu0 0
    %1938 = vmatpush1.bf16.msra.mxu0 0
    %1939 = vmatprep.subr.bf16.mxu0 0
    %1940 = vmatpush1.bf16.msra.mxu0 0
    %1941 = vmatprep.subr.bf16.mxu0 0
    %1942 = vmatpush1.bf16.msra.mxu0 0
    %1943 = vmatprep.mubr.bf16.mxu0 0
    %1944 = vmatmul.mubr.bf16.gmra.mrb[0].mxu0 %v1900
    %v1945 = vpop.f32.mrb[0].mxu0
    %v1946 = vadd.f32 0.0, %v1945
    %v1947 = vpop.f32.mrb[0].mxu0
    %v1948 = vpop.f32.mrb[0].mxu0
    %v1949 = vadd.f32 0.0, %v1948
    %v1950 = vpop.f32.mrb[0].mxu0
    %1951 = vmatprep.mubr.bf16.mxu0 0
    %1952 = vmatmul.mubr.bf16.gmra.mrb[0].mxu0 %v1903
    %v1953 = vpop.f32.mrb[0].mxu0
    %v1954 = vadd.f32 0.0, %v1953
    %v1955 = vpop.f32.mrb[0].mxu0
    %v1956 = vpop.f32.mrb[0].mxu0
    %v1957 = vadd.f32 0.0, %v1956
    %v1958 = vpop.f32.mrb[0].mxu0
    %1959 = vmatprep.mubr.bf16.mxu0 0
    %1960 = vmatmul.mubr.bf16.gmra.mrb[0].mxu0 %v1906
    %v1961 = vpop.f32.mrb[0].mxu0
    %v1962 = vadd.f32 0.0, %v1961
    %v1963 = vpop.f32.mrb[0].mxu0
    %v1964 = vpop.f32.mrb[0].mxu0
    %v1965 = vadd.f32 0.0, %v1964
    %v1966 = vpop.f32.mrb[0].mxu0
    %1967 = vmatprep.mubr.bf16.mxu0 0
    %1968 = vmatmul.mubr.bf16.gmra.mrb[0].mxu0 %v1909
    %v1969 = vpop.f32.mrb[0].mxu0
    %v1970 = vadd.f32 0.0, %v1969
    %v1971 = vpop.f32.mrb[0].mxu0
    %v1972 = vpop.f32.mrb[0].mxu0
    %v1973 = vadd.f32 0.0, %v1972
    %v1974 = vpop.f32.mrb[0].mxu0
    %1975 = vdwg.mxu0
    %1984 = vrot.lane.b32.xlu0 %v1946, 48
    %v1985 = vpop.permute.xlu0 %1984
    %1986 = vrot.lane.b32.xlu0 %v1949, 48
    %v1987 = vpop.permute.xlu0 %1986
    %1988 = vrot.lane.b32.xlu0 %v1954, 48
    %v1989 = vpop.permute.xlu0 %1988
    %1990 = vrot.lane.b32.xlu0 %v1957, 48
    %v1991 = vpop.permute.xlu0 %1990
    %1992 = vrot.lane.b32.xlu0 %v1962, 48
    %v1993 = vpop.permute.xlu0 %1992
    %1994 = vrot.lane.b32.xlu0 %v1965, 48
    %v1995 = vpop.permute.xlu0 %1994
    %1996 = vrot.lane.b32.xlu0 %v1970, 48
    %v1997 = vpop.permute.xlu0 %1996
    %1998 = vrot.lane.b32.xlu0 %v1973, 48
    %v1999 = vpop.permute.xlu0 %1998
    %vm2008 = vcmask 523648
    %2009 = vst.msk [vmem:[#allocation2] sm:$0xff] %vm2008, %v1985
    %2010 = vst.msk [vmem:[#allocation2 + $0x8] sm:$0xff] %vm2008, %v1987
    %2011 = vst.msk [vmem:[#allocation2 + $0x10] sm:$0xff] %vm2008, %v1989
    %2012 = vst.msk [vmem:[#allocation2 + $0x18] sm:$0xff] %vm2008, %v1991
    %2013 = vst.msk [vmem:[#allocation2 + $0x20] sm:$0xff] %vm2008, %v1993
    %2014 = vst.msk [vmem:[#allocation2 + $0x28] sm:$0xff] %vm2008, %v1995
    %2015 = vst.msk [vmem:[#allocation2 + $0x30] sm:$0xff] %vm2008, %v1997
    %2016 = vst.msk [vmem:[#allocation2 + $0x38] sm:$0xff] %vm2008, %v1999
    %2017 = vrot.lane.b32.xlu0 %v621, 64
    %v2018 = vpop.permute.xlu0 %2017
    %2019 = vrot.lane.b32.xlu0 %v622, 64
    %v2020 = vpop.permute.xlu0 %2019
    %2021 = vrot.lane.b32.xlu0 %v623, 64
    %v2022 = vpop.permute.xlu0 %2021
    %2023 = vrot.lane.b32.xlu0 %v624, 64
    %v2024 = vpop.permute.xlu0 %2023
    %2025 = vrot.lane.b32.xlu0 %v617, 64
    %v2026 = vpop.permute.xlu0 %2025
    %2027 = vrot.lane.b32.xlu0 %v618, 64
    %v2028 = vpop.permute.xlu0 %2027
    %2029 = vrot.lane.b32.xlu0 %v619, 64
    %v2030 = vpop.permute.xlu0 %2029
    %2031 = vrot.lane.b32.xlu0 %v620, 64
    %v2032 = vpop.permute.xlu0 %2031
    %v2034 = vsel %vm625, %v2018, 0
    %v2037 = vsel %vm625, %v2020, 0
    %v2040 = vsel %vm625, %v2022, 0
    %v2043 = vsel %vm625, %v2024, 0
    %v2046 = vsel %vm625, %v2026, 0
    %v2049 = vsel %vm625, %v2028, 0
    %v2052 = vsel %vm625, %v2030, 0
    %v2055 = vsel %vm625, %v2032, 0
    %2057 = vmatprep.subr.bf16.mxu0 0
    %2058 = vmatpush1.bf16.xpose.msra.mxu0 %v2046
    %2059 = vmatprep.subr.bf16.mxu0 0
    %2060 = vmatpush1.bf16.xpose.msra.mxu0 %v2049
    %2061 = vmatprep.subr.bf16.mxu0 0
    %2062 = vmatpush1.bf16.xpose.msra.mxu0 %v2052
    %2063 = vmatprep.subr.bf16.mxu0 0
    %2064 = vmatpush1.bf16.xpose.msra.mxu0 %v2055
    %2065 = vmatprep.subr.bf16.mxu0 0
    %2066 = vmatpush1.bf16.xpose.msra.mxu0 0
    %2067 = vmatprep.subr.bf16.mxu0 0
    %2068 = vmatpush1.bf16.xpose.msra.mxu0 0
    %2069 = vmatprep.subr.bf16.mxu0 0
    %2070 = vmatpush1.bf16.xpose.msra.mxu0 0
    %2071 = vmatprep.subr.bf16.mxu0 0
    %2072 = vmatpush1.bf16.xpose.msra.mxu0 0
    %2073 = vmatprep.subr.bf16.mxu0 0
    %2074 = vmatpush1.bf16.xpose.msra.mxu0 0
    %2075 = vmatprep.subr.bf16.mxu0 0
    %2076 = vmatpush1.bf16.xpose.msra.mxu0 0
    %2077 = vmatprep.subr.bf16.mxu0 0
    %2078 = vmatpush1.bf16.xpose.msra.mxu0 0
    %2079 = vmatprep.subr.bf16.mxu0 0
    %2080 = vmatpush1.bf16.xpose.msra.mxu0 0
    %2081 = vmatprep.subr.bf16.mxu0 0
    %2082 = vmatpush1.bf16.xpose.msra.mxu0 0
    %2083 = vmatprep.subr.bf16.mxu0 0
    %2084 = vmatpush1.bf16.xpose.msra.mxu0 0
    %2085 = vmatprep.subr.bf16.mxu0 0
    %2086 = vmatpush1.bf16.xpose.msra.mxu0 0
    %2087 = vmatprep.subr.bf16.mxu0 0
    %2088 = vmatpush1.bf16.xpose.msra.mxu0 0
    %2089 = vmatprep.mubr.bf16.mxu0 0
    %2090 = vmatmul.mubr.bf16.gmra.mrb[0].mxu0 %v2034
    %v2091 = vpop.f32.mrb[0].mxu0
    %v2092 = vadd.f32 0.0, %v2091
    %v2093 = vpop.f32.mrb[0].mxu0
    %v2094 = vpop.f32.mrb[0].mxu0
    %v2095 = vadd.f32 0.0, %v2094
    %v2096 = vpop.f32.mrb[0].mxu0
    %2097 = vmatprep.mubr.bf16.mxu0 0
    %2098 = vmatmul.mubr.bf16.gmra.mrb[0].mxu0 %v2037
    %v2099 = vpop.f32.mrb[0].mxu0
    %v2100 = vadd.f32 0.0, %v2099
    %v2101 = vpop.f32.mrb[0].mxu0
    %v2102 = vpop.f32.mrb[0].mxu0
    %v2103 = vadd.f32 0.0, %v2102
    %v2104 = vpop.f32.mrb[0].mxu0
    %2105 = vmatprep.mubr.bf16.mxu0 0
    %2106 = vmatmul.mubr.bf16.gmra.mrb[0].mxu0 %v2040
    %v2107 = vpop.f32.mrb[0].mxu0
    %v2108 = vadd.f32 0.0, %v2107
    %v2109 = vpop.f32.mrb[0].mxu0
    %v2110 = vpop.f32.mrb[0].mxu0
    %v2111 = vadd.f32 0.0, %v2110
    %v2112 = vpop.f32.mrb[0].mxu0
    %2113 = vmatprep.mubr.bf16.mxu0 0
    %2114 = vmatmul.mubr.bf16.gmra.mrb[0].mxu0 %v2043
    %v2115 = vpop.f32.mrb[0].mxu0
    %v2116 = vadd.f32 0.0, %v2115
    %v2117 = vpop.f32.mrb[0].mxu0
    %v2118 = vpop.f32.mrb[0].mxu0
    %v2119 = vadd.f32 0.0, %v2118
    %v2120 = vpop.f32.mrb[0].mxu0
    %2121 = vdwg.mxu0
    %v2122 = vsel %vm575, -9e+15, %v2092
    %v2123 = vsel %vm576, -9e+15, %v2095
    %v2124 = vsel %vm577, -9e+15, %v2100
    %v2125 = vsel %vm578, -9e+15, %v2103
    %v2126 = vsel %vm579, -9e+15, %v2108
    %v2127 = vsel %vm580, -9e+15, %v2111
    %v2128 = vsel %vm581, -9e+15, %v2116
    %v2129 = vsel %vm582, -9e+15, %v2119
    %v2130 = vadd.f32 %v2122, %v609
    %v2131 = vadd.f32 %v2123, %v610
    %v2132 = vadd.f32 %v2124, %v611
    %v2133 = vadd.f32 %v2125, %v612
    %v2134 = vadd.f32 %v2126, %v613
    %v2135 = vadd.f32 %v2127, %v614
    %v2136 = vadd.f32 %v2128, %v615
    %v2137 = vadd.f32 %v2129, %v616
    %v2138 = vsel %vm422, %v2130, -inf
    %2139 = vmax.xlane.f32.xlu0 %v2138
    %v2140 = vpop.xlane.xlu0 %2139
    %v2141 = vsel %vm422, %v2131, -inf
    %2142 = vmax.xlane.f32.xlu0 %v2141
    %v2143 = vpop.xlane.xlu0 %2142
    %v2144 = vsel %vm422, %v2132, -inf
    %2145 = vmax.xlane.f32.xlu0 %v2144
    %v2146 = vpop.xlane.xlu0 %2145
    %v2147 = vsel %vm422, %v2133, -inf
    %2148 = vmax.xlane.f32.xlu0 %v2147
    %v2149 = vpop.xlane.xlu0 %2148
    %v2150 = vsel %vm422, %v2134, -inf
    %2151 = vmax.xlane.f32.xlu0 %v2150
    %v2152 = vpop.xlane.xlu0 %2151
    %v2153 = vsel %vm422, %v2135, -inf
    %2154 = vmax.xlane.f32.xlu0 %v2153
    %v2155 = vpop.xlane.xlu0 %2154
    %v2156 = vsel %vm422, %v2136, -inf
    %2157 = vmax.xlane.f32.xlu0 %v2156
    %v2158 = vpop.xlane.xlu0 %2157
    %v2159 = vsel %vm422, %v2137, -inf
    %2160 = vmax.xlane.f32.xlu0 %v2159
    %v2161 = vpop.xlane.xlu0 %2160
    %v2162 = vsub.f32 %v2130, %v2140
    %v2163 = vsub.f32 %v2131, %v2143
    %v2164 = vsub.f32 %v2132, %v2146
    %v2165 = vsub.f32 %v2133, %v2149
    %v2166 = vsub.f32 %v2134, %v2152
    %v2167 = vsub.f32 %v2135, %v2155
    %v2168 = vsub.f32 %v2136, %v2158
    %v2169 = vsub.f32 %v2137, %v2161
    %v2170 = vmul.f32 %v2162, 1.442695
    %v2171 = vpow.pop %v2170
    %v2172 = vmul.f32 %v2163, 1.442695
    %v2173 = vpow.pop %v2172
    %v2174 = vmul.f32 %v2164, 1.442695
    %v2175 = vpow.pop %v2174
    %v2176 = vmul.f32 %v2165, 1.442695
    %v2177 = vpow.pop %v2176
    %v2178 = vmul.f32 %v2166, 1.442695
    %v2179 = vpow.pop %v2178
    %v2180 = vmul.f32 %v2167, 1.442695
    %v2181 = vpow.pop %v2180
    %v2182 = vmul.f32 %v2168, 1.442695
    %v2183 = vpow.pop %v2182
    %v2184 = vmul.f32 %v2169, 1.442695
    %v2185 = vpow.pop %v2184
    %v2186 = vsel %vm601, %v2171, 0.0
    %v2187 = vsel %vm602, %v2173, 0.0
    %v2188 = vsel %vm603, %v2175, 0.0
    %v2189 = vsel %vm604, %v2177, 0.0
    %v2190 = vsel %vm605, %v2179, 0.0
    %v2191 = vsel %vm606, %v2181, 0.0
    %v2192 = vsel %vm607, %v2183, 0.0
    %v2193 = vsel %vm608, %v2185, 0.0
    %v2194 = vsel %vm422, %v2186, 0.0
    %2195 = vadd.xlane.f32.xlu0 %v2194
    %v2196 = vpop.xlane.xlu0 %2195
    %v2197 = vsel %vm422, %v2187, 0.0
    %2198 = vadd.xlane.f32.xlu0 %v2197
    %v2199 = vpop.xlane.xlu0 %2198
    %v2200 = vsel %vm422, %v2188, 0.0
    %2201 = vadd.xlane.f32.xlu0 %v2200
    %v2202 = vpop.xlane.xlu0 %2201
    %v2203 = vsel %vm422, %v2189, 0.0
    %2204 = vadd.xlane.f32.xlu0 %v2203
    %v2205 = vpop.xlane.xlu0 %2204
    %v2206 = vsel %vm422, %v2190, 0.0
    %2207 = vadd.xlane.f32.xlu0 %v2206
    %v2208 = vpop.xlane.xlu0 %2207
    %v2209 = vsel %vm422, %v2191, 0.0
    %2210 = vadd.xlane.f32.xlu0 %v2209
    %v2211 = vpop.xlane.xlu0 %2210
    %v2212 = vsel %vm422, %v2192, 0.0
    %2213 = vadd.xlane.f32.xlu0 %v2212
    %v2214 = vpop.xlane.xlu0 %2213
    %v2215 = vsel %vm422, %v2193, 0.0
    %2216 = vadd.xlane.f32.xlu0 %v2215
    %v2217 = vpop.xlane.xlu0 %2216
    %vm2218 = vcmp.gt.f32.partialorder %v2196, 0.0
    %vm2219 = vcmp.gt.f32.partialorder %v2199, 0.0
    %vm2220 = vcmp.gt.f32.partialorder %v2202, 0.0
    %vm2221 = vcmp.gt.f32.partialorder %v2205, 0.0
    %vm2222 = vcmp.gt.f32.partialorder %v2208, 0.0
    %vm2223 = vcmp.gt.f32.partialorder %v2211, 0.0
    %vm2224 = vcmp.gt.f32.partialorder %v2214, 0.0
    %vm2225 = vcmp.gt.f32.partialorder %v2217, 0.0
    %v2226 = vrcp.pop %v2196
    %v2227 = vrcp.pop %v2199
    %v2228 = vrcp.pop %v2202
    %v2229 = vrcp.pop %v2205
    %v2230 = vrcp.pop %v2208
    %v2231 = vrcp.pop %v2211
    %v2232 = vrcp.pop %v2214
    %v2233 = vrcp.pop %v2217
    %v2234 = vsel %vm2218, %v2226, 0.0
    %v2235 = vsel %vm2219, %v2227, 0.0
    %v2236 = vsel %vm2220, %v2228, 0.0
    %v2237 = vsel %vm2221, %v2229, 0.0
    %v2238 = vsel %vm2222, %v2230, 0.0
    %v2239 = vsel %vm2223, %v2231, 0.0
    %v2240 = vsel %vm2224, %v2232, 0.0
    %v2241 = vsel %vm2225, %v2233, 0.0
    %v2242 = vmul.f32 %v2186, %v2234
    %v2243 = vmul.f32 %v2187, %v2235
    %v2244 = vmul.f32 %v2188, %v2236
    %v2245 = vmul.f32 %v2189, %v2237
    %v2246 = vmul.f32 %v2190, %v2238
    %v2247 = vmul.f32 %v2191, %v2239
    %v2248 = vmul.f32 %v2192, %v2240
    %v2249 = vmul.f32 %v2193, %v2241
    %v2250 = vpack.c.bf16 %v2243, %v2242
    %v2251 = vpack.c.bf16 %v2245, %v2244
    %v2252 = vpack.c.bf16 %v2247, %v2246
    %v2253 = vpack.c.bf16 %v2249, %v2248
    %v2259 = vsel %vm422, %v2250, 0
    %v2262 = vsel %vm422, %v2251, 0
    %v2265 = vsel %vm422, %v2252, 0
    %v2268 = vsel %vm422, %v2253, 0
    %2270 = vmatprep.subr.bf16.mxu0 0
    %2271 = vmatpush1.bf16.msra.mxu0 %v2026
    %2272 = vmatprep.subr.bf16.mxu0 0
    %2273 = vmatpush1.bf16.msra.mxu0 %v2028
    %2274 = vmatprep.subr.bf16.mxu0 0
    %2275 = vmatpush1.bf16.msra.mxu0 %v2030
    %2276 = vmatprep.subr.bf16.mxu0 0
    %2277 = vmatpush1.bf16.msra.mxu0 %v2032
    %2278 = vmatprep.subr.bf16.mxu0 0
    %2279 = vmatpush1.bf16.msra.mxu0 0
    %2280 = vmatprep.subr.bf16.mxu0 0
    %2281 = vmatpush1.bf16.msra.mxu0 0
    %2282 = vmatprep.subr.bf16.mxu0 0
    %2283 = vmatpush1.bf16.msra.mxu0 0
    %2284 = vmatprep.subr.bf16.mxu0 0
    %2285 = vmatpush1.bf16.msra.mxu0 0
    %2286 = vmatprep.subr.bf16.mxu0 0
    %2287 = vmatpush1.bf16.msra.mxu0 0
    %2288 = vmatprep.subr.bf16.mxu0 0
    %2289 = vmatpush1.bf16.msra.mxu0 0
    %2290 = vmatprep.subr.bf16.mxu0 0
    %2291 = vmatpush1.bf16.msra.mxu0 0
    %2292 = vmatprep.subr.bf16.mxu0 0
    %2293 = vmatpush1.bf16.msra.mxu0 0
    %2294 = vmatprep.subr.bf16.mxu0 0
    %2295 = vmatpush1.bf16.msra.mxu0 0
    %2296 = vmatprep.subr.bf16.mxu0 0
    %2297 = vmatpush1.bf16.msra.mxu0 0
    %2298 = vmatprep.subr.bf16.mxu0 0
    %2299 = vmatpush1.bf16.msra.mxu0 0
    %2300 = vmatprep.subr.bf16.mxu0 0
    %2301 = vmatpush1.bf16.msra.mxu0 0
    %2302 = vmatprep.mubr.bf16.mxu0 0
    %2303 = vmatmul.mubr.bf16.gmra.mrb[0].mxu0 %v2259
    %v2304 = vpop.f32.mrb[0].mxu0
    %v2305 = vadd.f32 0.0, %v2304
    %v2306 = vpop.f32.mrb[0].mxu0
    %v2307 = vpop.f32.mrb[0].mxu0
    %v2308 = vadd.f32 0.0, %v2307
    %v2309 = vpop.f32.mrb[0].mxu0
    %2310 = vmatprep.mubr.bf16.mxu0 0
    %2311 = vmatmul.mubr.bf16.gmra.mrb[0].mxu0 %v2262
    %v2312 = vpop.f32.mrb[0].mxu0
    %v2313 = vadd.f32 0.0, %v2312
    %v2314 = vpop.f32.mrb[0].mxu0
    %v2315 = vpop.f32.mrb[0].mxu0
    %v2316 = vadd.f32 0.0, %v2315
    %v2317 = vpop.f32.mrb[0].mxu0
    %2318 = vmatprep.mubr.bf16.mxu0 0
    %2319 = vmatmul.mubr.bf16.gmra.mrb[0].mxu0 %v2265
    %v2320 = vpop.f32.mrb[0].mxu0
    %v2321 = vadd.f32 0.0, %v2320
    %v2322 = vpop.f32.mrb[0].mxu0
    %v2323 = vpop.f32.mrb[0].mxu0
    %v2324 = vadd.f32 0.0, %v2323
    %v2325 = vpop.f32.mrb[0].mxu0
    %2326 = vmatprep.mubr.bf16.mxu0 0
    %2327 = vmatmul.mubr.bf16.gmra.mrb[0].mxu0 %v2268
    %v2328 = vpop.f32.mrb[0].mxu0
    %v2329 = vadd.f32 0.0, %v2328
    %v2330 = vpop.f32.mrb[0].mxu0
    %v2331 = vpop.f32.mrb[0].mxu0
    %v2332 = vadd.f32 0.0, %v2331
    %v2333 = vpop.f32.mrb[0].mxu0
    %2334 = vdwg.mxu0
    %2343 = vrot.lane.b32.xlu0 %v2305, 64
    %v2344 = vpop.permute.xlu0 %2343
    %2345 = vrot.lane.b32.xlu0 %v2308, 64
    %v2346 = vpop.permute.xlu0 %2345
    %2347 = vrot.lane.b32.xlu0 %v2313, 64
    %v2348 = vpop.permute.xlu0 %2347
    %2349 = vrot.lane.b32.xlu0 %v2316, 64
    %v2350 = vpop.permute.xlu0 %2349
    %2351 = vrot.lane.b32.xlu0 %v2321, 64
    %v2352 = vpop.permute.xlu0 %2351
    %2353 = vrot.lane.b32.xlu0 %v2324, 64
    %v2354 = vpop.permute.xlu0 %2353
    %2355 = vrot.lane.b32.xlu0 %v2329, 64
    %v2356 = vpop.permute.xlu0 %2355
    %2357 = vrot.lane.b32.xlu0 %v2332, 64
    %v2358 = vpop.permute.xlu0 %2357
    %vm2367 = vcmask 654848
    %2368 = vst.msk [vmem:[#allocation2] sm:$0xff] %vm2367, %v2344
    %2369 = vst.msk [vmem:[#allocation2 + $0x8] sm:$0xff] %vm2367, %v2346
    %2370 = vst.msk [vmem:[#allocation2 + $0x10] sm:$0xff] %vm2367, %v2348
    %2371 = vst.msk [vmem:[#allocation2 + $0x18] sm:$0xff] %vm2367, %v2350
    %2372 = vst.msk [vmem:[#allocation2 + $0x20] sm:$0xff] %vm2367, %v2352
    %2373 = vst.msk [vmem:[#allocation2 + $0x28] sm:$0xff] %vm2367, %v2354
    %2374 = vst.msk [vmem:[#allocation2 + $0x30] sm:$0xff] %vm2367, %v2356
    %2375 = vst.msk [vmem:[#allocation2 + $0x38] sm:$0xff] %vm2367, %v2358
    %2376 = vrot.lane.b32.xlu0 %v621, 48
    %v2377 = vpop.permute.xlu0 %2376
    %2378 = vrot.lane.b32.xlu0 %v622, 48
    %v2379 = vpop.permute.xlu0 %2378
    %2380 = vrot.lane.b32.xlu0 %v623, 48
    %v2381 = vpop.permute.xlu0 %2380
    %2382 = vrot.lane.b32.xlu0 %v624, 48
    %v2383 = vpop.permute.xlu0 %2382
    %2384 = vrot.lane.b32.xlu0 %v617, 48
    %v2385 = vpop.permute.xlu0 %2384
    %2386 = vrot.lane.b32.xlu0 %v618, 48
    %v2387 = vpop.permute.xlu0 %2386
    %2388 = vrot.lane.b32.xlu0 %v619, 48
    %v2389 = vpop.permute.xlu0 %2388
    %2390 = vrot.lane.b32.xlu0 %v620, 48
    %v2391 = vpop.permute.xlu0 %2390
    %v2393 = vsel %vm625, %v2377, 0
    %v2396 = vsel %vm625, %v2379, 0
    %v2399 = vsel %vm625, %v2381, 0
    %v2402 = vsel %vm625, %v2383, 0
    %v2405 = vsel %vm625, %v2385, 0
    %v2408 = vsel %vm625, %v2387, 0
    %v2411 = vsel %vm625, %v2389, 0
    %v2414 = vsel %vm625, %v2391, 0
    %2416 = vmatprep.subr.bf16.mxu0 0
    %2417 = vmatpush1.bf16.xpose.msra.mxu0 %v2405
    %2418 = vmatprep.subr.bf16.mxu0 0
    %2419 = vmatpush1.bf16.xpose.msra.mxu0 %v2408
    %2420 = vmatprep.subr.bf16.mxu0 0
    %2421 = vmatpush1.bf16.xpose.msra.mxu0 %v2411
    %2422 = vmatprep.subr.bf16.mxu0 0
    %2423 = vmatpush1.bf16.xpose.msra.mxu0 %v2414
    %2424 = vmatprep.subr.bf16.mxu0 0
    %2425 = vmatpush1.bf16.xpose.msra.mxu0 0
    %2426 = vmatprep.subr.bf16.mxu0 0
    %2427 = vmatpush1.bf16.xpose.msra.mxu0 0
    %2428 = vmatprep.subr.bf16.mxu0 0
    %2429 = vmatpush1.bf16.xpose.msra.mxu0 0
    %2430 = vmatprep.subr.bf16.mxu0 0
    %2431 = vmatpush1.bf16.xpose.msra.mxu0 0
    %2432 = vmatprep.subr.bf16.mxu0 0
    %2433 = vmatpush1.bf16.xpose.msra.mxu0 0
    %2434 = vmatprep.subr.bf16.mxu0 0
    %2435 = vmatpush1.bf16.xpose.msra.mxu0 0
    %2436 = vmatprep.subr.bf16.mxu0 0
    %2437 = vmatpush1.bf16.xpose.msra.mxu0 0
    %2438 = vmatprep.subr.bf16.mxu0 0
    %2439 = vmatpush1.bf16.xpose.msra.mxu0 0
    %2440 = vmatprep.subr.bf16.mxu0 0
    %2441 = vmatpush1.bf16.xpose.msra.mxu0 0
    %2442 = vmatprep.subr.bf16.mxu0 0
    %2443 = vmatpush1.bf16.xpose.msra.mxu0 0
    %2444 = vmatprep.subr.bf16.mxu0 0
    %2445 = vmatpush1.bf16.xpose.msra.mxu0 0
    %2446 = vmatprep.subr.bf16.mxu0 0
    %2447 = vmatpush1.bf16.xpose.msra.mxu0 0
    %2448 = vmatprep.mubr.bf16.mxu0 0
    %2449 = vmatmul.mubr.bf16.gmra.mrb[0].mxu0 %v2393
    %v2450 = vpop.f32.mrb[0].mxu0
    %v2451 = vadd.f32 0.0, %v2450
    %v2452 = vpop.f32.mrb[0].mxu0
    %v2453 = vpop.f32.mrb[0].mxu0
    %v2454 = vadd.f32 0.0, %v2453
    %v2455 = vpop.f32.mrb[0].mxu0
    %2456 = vmatprep.mubr.bf16.mxu0 0
    %2457 = vmatmul.mubr.bf16.gmra.mrb[0].mxu0 %v2396
    %v2458 = vpop.f32.mrb[0].mxu0
    %v2459 = vadd.f32 0.0, %v2458
    %v2460 = vpop.f32.mrb[0].mxu0
    %v2461 = vpop.f32.mrb[0].mxu0
    %v2462 = vadd.f32 0.0, %v2461
    %v2463 = vpop.f32.mrb[0].mxu0
    %2464 = vmatprep.mubr.bf16.mxu0 0
    %2465 = vmatmul.mubr.bf16.gmra.mrb[0].mxu0 %v2399
    %v2466 = vpop.f32.mrb[0].mxu0
    %v2467 = vadd.f32 0.0, %v2466
    %v2468 = vpop.f32.mrb[0].mxu0
    %v2469 = vpop.f32.mrb[0].mxu0
    %v2470 = vadd.f32 0.0, %v2469
    %v2471 = vpop.f32.mrb[0].mxu0
    %2472 = vmatprep.mubr.bf16.mxu0 0
    %2473 = vmatmul.mubr.bf16.gmra.mrb[0].mxu0 %v2402
    %v2474 = vpop.f32.mrb[0].mxu0
    %v2475 = vadd.f32 0.0, %v2474
    %v2476 = vpop.f32.mrb[0].mxu0
    %v2477 = vpop.f32.mrb[0].mxu0
    %v2478 = vadd.f32 0.0, %v2477
    %v2479 = vpop.f32.mrb[0].mxu0
    %2480 = vdwg.mxu0
    %v2481 = vsel %vm575, -9e+15, %v2451
    %v2482 = vsel %vm576, -9e+15, %v2454
    %v2483 = vsel %vm577, -9e+15, %v2459
    %v2484 = vsel %vm578, -9e+15, %v2462
    %v2485 = vsel %vm579, -9e+15, %v2467
    %v2486 = vsel %vm580, -9e+15, %v2470
    %v2487 = vsel %vm581, -9e+15, %v2475
    %v2488 = vsel %vm582, -9e+15, %v2478
    %v2489 = vadd.f32 %v2481, %v609
    %v2490 = vadd.f32 %v2482, %v610
    %v2491 = vadd.f32 %v2483, %v611
    %v2492 = vadd.f32 %v2484, %v612
    %v2493 = vadd.f32 %v2485, %v613
    %v2494 = vadd.f32 %v2486, %v614
    %v2495 = vadd.f32 %v2487, %v615
    %v2496 = vadd.f32 %v2488, %v616
    %v2497 = vsel %vm422, %v2489, -inf
    %2498 = vmax.xlane.f32.xlu0 %v2497
    %v2499 = vpop.xlane.xlu0 %2498
    %v2500 = vsel %vm422, %v2490, -inf
    %2501 = vmax.xlane.f32.xlu0 %v2500
    %v2502 = vpop.xlane.xlu0 %2501
    %v2503 = vsel %vm422, %v2491, -inf
    %2504 = vmax.xlane.f32.xlu0 %v2503
    %v2505 = vpop.xlane.xlu0 %2504
    %v2506 = vsel %vm422, %v2492, -inf
    %2507 = vmax.xlane.f32.xlu0 %v2506
    %v2508 = vpop.xlane.xlu0 %2507
    %v2509 = vsel %vm422, %v2493, -inf
    %2510 = vmax.xlane.f32.xlu0 %v2509
    %v2511 = vpop.xlane.xlu0 %2510
    %v2512 = vsel %vm422, %v2494, -inf
    %2513 = vmax.xlane.f32.xlu0 %v2512
    %v2514 = vpop.xlane.xlu0 %2513
    %v2515 = vsel %vm422, %v2495, -inf
    %2516 = vmax.xlane.f32.xlu0 %v2515
    %v2517 = vpop.xlane.xlu0 %2516
    %v2518 = vsel %vm422, %v2496, -inf
    %2519 = vmax.xlane.f32.xlu0 %v2518
    %v2520 = vpop.xlane.xlu0 %2519
    %v2521 = vsub.f32 %v2489, %v2499
    %v2522 = vsub.f32 %v2490, %v2502
    %v2523 = vsub.f32 %v2491, %v2505
    %v2524 = vsub.f32 %v2492, %v2508
    %v2525 = vsub.f32 %v2493, %v2511
    %v2526 = vsub.f32 %v2494, %v2514
    %v2527 = vsub.f32 %v2495, %v2517
    %v2528 = vsub.f32 %v2496, %v2520
    %v2529 = vmul.f32 %v2521, 1.442695
    %v2530 = vpow.pop %v2529
    %v2531 = vmul.f32 %v2522, 1.442695
    %v2532 = vpow.pop %v2531
    %v2533 = vmul.f32 %v2523, 1.442695
    %v2534 = vpow.pop %v2533
    %v2535 = vmul.f32 %v2524, 1.442695
    %v2536 = vpow.pop %v2535
    %v2537 = vmul.f32 %v2525, 1.442695
    %v2538 = vpow.pop %v2537
    %v2539 = vmul.f32 %v2526, 1.442695
    %v2540 = vpow.pop %v2539
    %v2541 = vmul.f32 %v2527, 1.442695
    %v2542 = vpow.pop %v2541
    %v2543 = vmul.f32 %v2528, 1.442695
    %v2544 = vpow.pop %v2543
    %v2545 = vsel %vm601, %v2530, 0.0
    %v2546 = vsel %vm602, %v2532, 0.0
    %v2547 = vsel %vm603, %v2534, 0.0
    %v2548 = vsel %vm604, %v2536, 0.0
    %v2549 = vsel %vm605, %v2538, 0.0
    %v2550 = vsel %vm606, %v2540, 0.0
    %v2551 = vsel %vm607, %v2542, 0.0
    %v2552 = vsel %vm608, %v2544, 0.0
    %v2553 = vsel %vm422, %v2545, 0.0
    %2554 = vadd.xlane.f32.xlu0 %v2553
    %v2555 = vpop.xlane.xlu0 %2554
    %v2556 = vsel %vm422, %v2546, 0.0
    %2557 = vadd.xlane.f32.xlu0 %v2556
    %v2558 = vpop.xlane.xlu0 %2557
    %v2559 = vsel %vm422, %v2547, 0.0
    %2560 = vadd.xlane.f32.xlu0 %v2559
    %v2561 = vpop.xlane.xlu0 %2560
    %v2562 = vsel %vm422, %v2548, 0.0
    %2563 = vadd.xlane.f32.xlu0 %v2562
    %v2564 = vpop.xlane.xlu0 %2563
    %v2565 = vsel %vm422, %v2549, 0.0
    %2566 = vadd.xlane.f32.xlu0 %v2565
    %v2567 = vpop.xlane.xlu0 %2566
    %v2568 = vsel %vm422, %v2550, 0.0
    %2569 = vadd.xlane.f32.xlu0 %v2568
    %v2570 = vpop.xlane.xlu0 %2569
    %v2571 = vsel %vm422, %v2551, 0.0
    %2572 = vadd.xlane.f32.xlu0 %v2571
    %v2573 = vpop.xlane.xlu0 %2572
    %v2574 = vsel %vm422, %v2552, 0.0
    %2575 = vadd.xlane.f32.xlu0 %v2574
    %v2576 = vpop.xlane.xlu0 %2575
    %vm2577 = vcmp.gt.f32.partialorder %v2555, 0.0
    %vm2578 = vcmp.gt.f32.partialorder %v2558, 0.0
    %vm2579 = vcmp.gt.f32.partialorder %v2561, 0.0
    %vm2580 = vcmp.gt.f32.partialorder %v2564, 0.0
    %vm2581 = vcmp.gt.f32.partialorder %v2567, 0.0
    %vm2582 = vcmp.gt.f32.partialorder %v2570, 0.0
    %vm2583 = vcmp.gt.f32.partialorder %v2573, 0.0
    %vm2584 = vcmp.gt.f32.partialorder %v2576, 0.0
    %v2585 = vrcp.pop %v2555
    %v2586 = vrcp.pop %v2558
    %v2587 = vrcp.pop %v2561
    %v2588 = vrcp.pop %v2564
    %v2589 = vrcp.pop %v2567
    %v2590 = vrcp.pop %v2570
    %v2591 = vrcp.pop %v2573
    %v2592 = vrcp.pop %v2576
    %v2593 = vsel %vm2577, %v2585, 0.0
    %v2594 = vsel %vm2578, %v2586, 0.0
    %v2595 = vsel %vm2579, %v2587, 0.0
    %v2596 = vsel %vm2580, %v2588, 0.0
    %v2597 = vsel %vm2581, %v2589, 0.0
    %v2598 = vsel %vm2582, %v2590, 0.0
    %v2599 = vsel %vm2583, %v2591, 0.0
    %v2600 = vsel %vm2584, %v2592, 0.0
    %v2601 = vmul.f32 %v2545, %v2593
    %v2602 = vmul.f32 %v2546, %v2594
    %v2603 = vmul.f32 %v2547, %v2595
    %v2604 = vmul.f32 %v2548, %v2596
    %v2605 = vmul.f32 %v2549, %v2597
    %v2606 = vmul.f32 %v2550, %v2598
    %v2607 = vmul.f32 %v2551, %v2599
    %v2608 = vmul.f32 %v2552, %v2600
    %v2609 = vpack.c.bf16 %v2602, %v2601
    %v2610 = vpack.c.bf16 %v2604, %v2603
    %v2611 = vpack.c.bf16 %v2606, %v2605
    %v2612 = vpack.c.bf16 %v2608, %v2607
    %v2618 = vsel %vm422, %v2609, 0
    %v2621 = vsel %vm422, %v2610, 0
    %v2624 = vsel %vm422, %v2611, 0
    %v2627 = vsel %vm422, %v2612, 0
    %2629 = vmatprep.subr.bf16.mxu0 0
    %2630 = vmatpush1.bf16.msra.mxu0 %v2385
    %2631 = vmatprep.subr.bf16.mxu0 0
    %2632 = vmatpush1.bf16.msra.mxu0 %v2387
    %2633 = vmatprep.subr.bf16.mxu0 0
    %2634 = vmatpush1.bf16.msra.mxu0 %v2389
    %2635 = vmatprep.subr.bf16.mxu0 0
    %2636 = vmatpush1.bf16.msra.mxu0 %v2391
    %2637 = vmatprep.subr.bf16.mxu0 0
    %2638 = vmatpush1.bf16.msra.mxu0 0
    %2639 = vmatprep.subr.bf16.mxu0 0
    %2640 = vmatpush1.bf16.msra.mxu0 0
    %2641 = vmatprep.subr.bf16.mxu0 0
    %2642 = vmatpush1.bf16.msra.mxu0 0
    %2643 = vmatprep.subr.bf16.mxu0 0
    %2644 = vmatpush1.bf16.msra.mxu0 0
    %2645 = vmatprep.subr.bf16.mxu0 0
    %2646 = vmatpush1.bf16.msra.mxu0 0
    %2647 = vmatprep.subr.bf16.mxu0 0
    %2648 = vmatpush1.bf16.msra.mxu0 0
    %2649 = vmatprep.subr.bf16.mxu0 0
    %2650 = vmatpush1.bf16.msra.mxu0 0
    %2651 = vmatprep.subr.bf16.mxu0 0
    %2652 = vmatpush1.bf16.msra.mxu0 0
    %2653 = vmatprep.subr.bf16.mxu0 0
    %2654 = vmatpush1.bf16.msra.mxu0 0
    %2655 = vmatprep.subr.bf16.mxu0 0
    %2656 = vmatpush1.bf16.msra.mxu0 0
    %2657 = vmatprep.subr.bf16.mxu0 0
    %2658 = vmatpush1.bf16.msra.mxu0 0
    %2659 = vmatprep.subr.bf16.mxu0 0
    %2660 = vmatpush1.bf16.msra.mxu0 0
    %2661 = vmatprep.mubr.bf16.mxu0 0
    %2662 = vmatmul.mubr.bf16.gmra.mrb[0].mxu0 %v2618
    %v2663 = vpop.f32.mrb[0].mxu0
    %v2664 = vadd.f32 0.0, %v2663
    %v2665 = vpop.f32.mrb[0].mxu0
    %v2666 = vpop.f32.mrb[0].mxu0
    %v2667 = vadd.f32 0.0, %v2666
    %v2668 = vpop.f32.mrb[0].mxu0
    %2669 = vmatprep.mubr.bf16.mxu0 0
    %2670 = vmatmul.mubr.bf16.gmra.mrb[0].mxu0 %v2621
    %v2671 = vpop.f32.mrb[0].mxu0
    %v2672 = vadd.f32 0.0, %v2671
    %v2673 = vpop.f32.mrb[0].mxu0
    %v2674 = vpop.f32.mrb[0].mxu0
    %v2675 = vadd.f32 0.0, %v2674
    %v2676 = vpop.f32.mrb[0].mxu0
    %2677 = vmatprep.mubr.bf16.mxu0 0
    %2678 = vmatmul.mubr.bf16.gmra.mrb[0].mxu0 %v2624
    %v2679 = vpop.f32.mrb[0].mxu0
    %v2680 = vadd.f32 0.0, %v2679
    %v2681 = vpop.f32.mrb[0].mxu0
    %v2682 = vpop.f32.mrb[0].mxu0
    %v2683 = vadd.f32 0.0, %v2682
    %v2684 = vpop.f32.mrb[0].mxu0
    %2685 = vmatprep.mubr.bf16.mxu0 0
    %2686 = vmatmul.mubr.bf16.gmra.mrb[0].mxu0 %v2627
    %v2687 = vpop.f32.mrb[0].mxu0
    %v2688 = vadd.f32 0.0, %v2687
    %v2689 = vpop.f32.mrb[0].mxu0
    %v2690 = vpop.f32.mrb[0].mxu0
    %v2691 = vadd.f32 0.0, %v2690
    %v2692 = vpop.f32.mrb[0].mxu0
    %2693 = vdwg.mxu0
    %2702 = vrot.lane.b32.xlu0 %v2664, 80
    %v2703 = vpop.permute.xlu0 %2702
    %2704 = vrot.lane.b32.xlu0 %v2667, 80
    %v2705 = vpop.permute.xlu0 %2704
    %2706 = vrot.lane.b32.xlu0 %v2672, 80
    %v2707 = vpop.permute.xlu0 %2706
    %2708 = vrot.lane.b32.xlu0 %v2675, 80
    %v2709 = vpop.permute.xlu0 %2708
    %2710 = vrot.lane.b32.xlu0 %v2680, 80
    %v2711 = vpop.permute.xlu0 %2710
    %2712 = vrot.lane.b32.xlu0 %v2683, 80
    %v2713 = vpop.permute.xlu0 %2712
    %2714 = vrot.lane.b32.xlu0 %v2688, 80
    %v2715 = vpop.permute.xlu0 %2714
    %2716 = vrot.lane.b32.xlu0 %v2691, 80
    %v2717 = vpop.permute.xlu0 %2716
    %vm2726 = vcmask 786048
    %2727 = vst.msk [vmem:[#allocation2] sm:$0xff] %vm2726, %v2703
    %2728 = vst.msk [vmem:[#allocation2 + $0x8] sm:$0xff] %vm2726, %v2705
    %2729 = vst.msk [vmem:[#allocation2 + $0x10] sm:$0xff] %vm2726, %v2707
    %2730 = vst.msk [vmem:[#allocation2 + $0x18] sm:$0xff] %vm2726, %v2709
    %2731 = vst.msk [vmem:[#allocation2 + $0x20] sm:$0xff] %vm2726, %v2711
    %2732 = vst.msk [vmem:[#allocation2 + $0x28] sm:$0xff] %vm2726, %v2713
    %2733 = vst.msk [vmem:[#allocation2 + $0x30] sm:$0xff] %vm2726, %v2715
    %2734 = vst.msk [vmem:[#allocation2 + $0x38] sm:$0xff] %vm2726, %v2717
    %2735 = vrot.lane.b32.xlu0 %v621, 32
    %v2736 = vpop.permute.xlu0 %2735
    %2737 = vrot.lane.b32.xlu0 %v622, 32
    %v2738 = vpop.permute.xlu0 %2737
    %2739 = vrot.lane.b32.xlu0 %v623, 32
    %v2740 = vpop.permute.xlu0 %2739
    %2741 = vrot.lane.b32.xlu0 %v624, 32
    %v2742 = vpop.permute.xlu0 %2741
    %2743 = vrot.lane.b32.xlu0 %v617, 32
    %v2744 = vpop.permute.xlu0 %2743
    %2745 = vrot.lane.b32.xlu0 %v618, 32
    %v2746 = vpop.permute.xlu0 %2745
    %2747 = vrot.lane.b32.xlu0 %v619, 32
    %v2748 = vpop.permute.xlu0 %2747
    %2749 = vrot.lane.b32.xlu0 %v620, 32
    %v2750 = vpop.permute.xlu0 %2749
    %v2752 = vsel %vm625, %v2736, 0
    %v2755 = vsel %vm625, %v2738, 0
    %v2758 = vsel %vm625, %v2740, 0
    %v2761 = vsel %vm625, %v2742, 0
    %v2764 = vsel %vm625, %v2744, 0
    %v2767 = vsel %vm625, %v2746, 0
    %v2770 = vsel %vm625, %v2748, 0
    %v2773 = vsel %vm625, %v2750, 0
    %2775 = vmatprep.subr.bf16.mxu0 0
    %2776 = vmatpush1.bf16.xpose.msra.mxu0 %v2764
    %2777 = vmatprep.subr.bf16.mxu0 0
    %2778 = vmatpush1.bf16.xpose.msra.mxu0 %v2767
    %2779 = vmatprep.subr.bf16.mxu0 0
    %2780 = vmatpush1.bf16.xpose.msra.mxu0 %v2770
    %2781 = vmatprep.subr.bf16.mxu0 0
    %2782 = vmatpush1.bf16.xpose.msra.mxu0 %v2773
    %2783 = vmatprep.subr.bf16.mxu0 0
    %2784 = vmatpush1.bf16.xpose.msra.mxu0 0
    %2785 = vmatprep.subr.bf16.mxu0 0
    %2786 = vmatpush1.bf16.xpose.msra.mxu0 0
    %2787 = vmatprep.subr.bf16.mxu0 0
    %2788 = vmatpush1.bf16.xpose.msra.mxu0 0
    %2789 = vmatprep.subr.bf16.mxu0 0
    %2790 = vmatpush1.bf16.xpose.msra.mxu0 0
    %2791 = vmatprep.subr.bf16.mxu0 0
    %2792 = vmatpush1.bf16.xpose.msra.mxu0 0
    %2793 = vmatprep.subr.bf16.mxu0 0
    %2794 = vmatpush1.bf16.xpose.msra.mxu0 0
    %2795 = vmatprep.subr.bf16.mxu0 0
    %2796 = vmatpush1.bf16.xpose.msra.mxu0 0
    %2797 = vmatprep.subr.bf16.mxu0 0
    %2798 = vmatpush1.bf16.xpose.msra.mxu0 0
    %2799 = vmatprep.subr.bf16.mxu0 0
    %2800 = vmatpush1.bf16.xpose.msra.mxu0 0
    %2801 = vmatprep.subr.bf16.mxu0 0
    %2802 = vmatpush1.bf16.xpose.msra.mxu0 0
    %2803 = vmatprep.subr.bf16.mxu0 0
    %2804 = vmatpush1.bf16.xpose.msra.mxu0 0
    %2805 = vmatprep.subr.bf16.mxu0 0
    %2806 = vmatpush1.bf16.xpose.msra.mxu0 0
    %2807 = vmatprep.mubr.bf16.mxu0 0
    %2808 = vmatmul.mubr.bf16.gmra.mrb[0].mxu0 %v2752
    %v2809 = vpop.f32.mrb[0].mxu0
    %v2810 = vadd.f32 0.0, %v2809
    %v2811 = vpop.f32.mrb[0].mxu0
    %v2812 = vpop.f32.mrb[0].mxu0
    %v2813 = vadd.f32 0.0, %v2812
    %v2814 = vpop.f32.mrb[0].mxu0
    %2815 = vmatprep.mubr.bf16.mxu0 0
    %2816 = vmatmul.mubr.bf16.gmra.mrb[0].mxu0 %v2755
    %v2817 = vpop.f32.mrb[0].mxu0
    %v2818 = vadd.f32 0.0, %v2817
    %v2819 = vpop.f32.mrb[0].mxu0
    %v2820 = vpop.f32.mrb[0].mxu0
    %v2821 = vadd.f32 0.0, %v2820
    %v2822 = vpop.f32.mrb[0].mxu0
    %2823 = vmatprep.mubr.bf16.mxu0 0
    %2824 = vmatmul.mubr.bf16.gmra.mrb[0].mxu0 %v2758
    %v2825 = vpop.f32.mrb[0].mxu0
    %v2826 = vadd.f32 0.0, %v2825
    %v2827 = vpop.f32.mrb[0].mxu0
    %v2828 = vpop.f32.mrb[0].mxu0
    %v2829 = vadd.f32 0.0, %v2828
    %v2830 = vpop.f32.mrb[0].mxu0
    %2831 = vmatprep.mubr.bf16.mxu0 0
    %2832 = vmatmul.mubr.bf16.gmra.mrb[0].mxu0 %v2761
    %v2833 = vpop.f32.mrb[0].mxu0
    %v2834 = vadd.f32 0.0, %v2833
    %v2835 = vpop.f32.mrb[0].mxu0
    %v2836 = vpop.f32.mrb[0].mxu0
    %v2837 = vadd.f32 0.0, %v2836
    %v2838 = vpop.f32.mrb[0].mxu0
    %2839 = vdwg.mxu0
    %v2840 = vsel %vm575, -9e+15, %v2810
    %v2841 = vsel %vm576, -9e+15, %v2813
    %v2842 = vsel %vm577, -9e+15, %v2818
    %v2843 = vsel %vm578, -9e+15, %v2821
    %v2844 = vsel %vm579, -9e+15, %v2826
    %v2845 = vsel %vm580, -9e+15, %v2829
    %v2846 = vsel %vm581, -9e+15, %v2834
    %v2847 = vsel %vm582, -9e+15, %v2837
    %v2848 = vadd.f32 %v2840, %v609
    %v2849 = vadd.f32 %v2841, %v610
    %v2850 = vadd.f32 %v2842, %v611
    %v2851 = vadd.f32 %v2843, %v612
    %v2852 = vadd.f32 %v2844, %v613
    %v2853 = vadd.f32 %v2845, %v614
    %v2854 = vadd.f32 %v2846, %v615
    %v2855 = vadd.f32 %v2847, %v616
    %v2856 = vsel %vm422, %v2848, -inf
    %2857 = vmax.xlane.f32.xlu0 %v2856
    %v2858 = vpop.xlane.xlu0 %2857
    %v2859 = vsel %vm422, %v2849, -inf
    %2860 = vmax.xlane.f32.xlu0 %v2859
    %v2861 = vpop.xlane.xlu0 %2860
    %v2862 = vsel %vm422, %v2850, -inf
    %2863 = vmax.xlane.f32.xlu0 %v2862
    %v2864 = vpop.xlane.xlu0 %2863
    %v2865 = vsel %vm422, %v2851, -inf
    %2866 = vmax.xlane.f32.xlu0 %v2865
    %v2867 = vpop.xlane.xlu0 %2866
    %v2868 = vsel %vm422, %v2852, -inf
    %2869 = vmax.xlane.f32.xlu0 %v2868
    %v2870 = vpop.xlane.xlu0 %2869
    %v2871 = vsel %vm422, %v2853, -inf
    %2872 = vmax.xlane.f32.xlu0 %v2871
    %v2873 = vpop.xlane.xlu0 %2872
    %v2874 = vsel %vm422, %v2854, -inf
    %2875 = vmax.xlane.f32.xlu0 %v2874
    %v2876 = vpop.xlane.xlu0 %2875
    %v2877 = vsel %vm422, %v2855, -inf
    %2878 = vmax.xlane.f32.xlu0 %v2877
    %v2879 = vpop.xlane.xlu0 %2878
    %v2880 = vsub.f32 %v2848, %v2858
    %v2881 = vsub.f32 %v2849, %v2861
    %v2882 = vsub.f32 %v2850, %v2864
    %v2883 = vsub.f32 %v2851, %v2867
    %v2884 = vsub.f32 %v2852, %v2870
    %v2885 = vsub.f32 %v2853, %v2873
    %v2886 = vsub.f32 %v2854, %v2876
    %v2887 = vsub.f32 %v2855, %v2879
    %v2888 = vmul.f32 %v2880, 1.442695
    %v2889 = vpow.pop %v2888
    %v2890 = vmul.f32 %v2881, 1.442695
    %v2891 = vpow.pop %v2890
    %v2892 = vmul.f32 %v2882, 1.442695
    %v2893 = vpow.pop %v2892
    %v2894 = vmul.f32 %v2883, 1.442695
    %v2895 = vpow.pop %v2894
    %v2896 = vmul.f32 %v2884, 1.442695
    %v2897 = vpow.pop %v2896
    %v2898 = vmul.f32 %v2885, 1.442695
    %v2899 = vpow.pop %v2898
    %v2900 = vmul.f32 %v2886, 1.442695
    %v2901 = vpow.pop %v2900
    %v2902 = vmul.f32 %v2887, 1.442695
    %v2903 = vpow.pop %v2902
    %v2904 = vsel %vm601, %v2889, 0.0
    %v2905 = vsel %vm602, %v2891, 0.0
    %v2906 = vsel %vm603, %v2893, 0.0
    %v2907 = vsel %vm604, %v2895, 0.0
    %v2908 = vsel %vm605, %v2897, 0.0
    %v2909 = vsel %vm606, %v2899, 0.0
    %v2910 = vsel %vm607, %v2901, 0.0
    %v2911 = vsel %vm608, %v2903, 0.0
    %v2912 = vsel %vm422, %v2904, 0.0
    %2913 = vadd.xlane.f32.xlu0 %v2912
    %v2914 = vpop.xlane.xlu0 %2913
    %v2915 = vsel %vm422, %v2905, 0.0
    %2916 = vadd.xlane.f32.xlu0 %v2915
    %v2917 = vpop.xlane.xlu0 %2916
    %v2918 = vsel %vm422, %v2906, 0.0
    %2919 = vadd.xlane.f32.xlu0 %v2918
    %v2920 = vpop.xlane.xlu0 %2919
    %v2921 = vsel %vm422, %v2907, 0.0
    %2922 = vadd.xlane.f32.xlu0 %v2921
    %v2923 = vpop.xlane.xlu0 %2922
    %v2924 = vsel %vm422, %v2908, 0.0
    %2925 = vadd.xlane.f32.xlu0 %v2924
    %v2926 = vpop.xlane.xlu0 %2925
    %v2927 = vsel %vm422, %v2909, 0.0
    %2928 = vadd.xlane.f32.xlu0 %v2927
    %v2929 = vpop.xlane.xlu0 %2928
    %v2930 = vsel %vm422, %v2910, 0.0
    %2931 = vadd.xlane.f32.xlu0 %v2930
    %v2932 = vpop.xlane.xlu0 %2931
    %v2933 = vsel %vm422, %v2911, 0.0
    %2934 = vadd.xlane.f32.xlu0 %v2933
    %v2935 = vpop.xlane.xlu0 %2934
    %vm2936 = vcmp.gt.f32.partialorder %v2914, 0.0
    %vm2937 = vcmp.gt.f32.partialorder %v2917, 0.0
    %vm2938 = vcmp.gt.f32.partialorder %v2920, 0.0
    %vm2939 = vcmp.gt.f32.partialorder %v2923, 0.0
    %vm2940 = vcmp.gt.f32.partialorder %v2926, 0.0
    %vm2941 = vcmp.gt.f32.partialorder %v2929, 0.0
    %vm2942 = vcmp.gt.f32.partialorder %v2932, 0.0
    %vm2943 = vcmp.gt.f32.partialorder %v2935, 0.0
    %v2944 = vrcp.pop %v2914
    %v2945 = vrcp.pop %v2917
    %v2946 = vrcp.pop %v2920
    %v2947 = vrcp.pop %v2923
    %v2948 = vrcp.pop %v2926
    %v2949 = vrcp.pop %v2929
    %v2950 = vrcp.pop %v2932
    %v2951 = vrcp.pop %v2935
    %v2952 = vsel %vm2936, %v2944, 0.0
    %v2953 = vsel %vm2937, %v2945, 0.0
    %v2954 = vsel %vm2938, %v2946, 0.0
    %v2955 = vsel %vm2939, %v2947, 0.0
    %v2956 = vsel %vm2940, %v2948, 0.0
    %v2957 = vsel %vm2941, %v2949, 0.0
    %v2958 = vsel %vm2942, %v2950, 0.0
    %v2959 = vsel %vm2943, %v2951, 0.0
    %v2960 = vmul.f32 %v2904, %v2952
    %v2961 = vmul.f32 %v2905, %v2953
    %v2962 = vmul.f32 %v2906, %v2954
    %v2963 = vmul.f32 %v2907, %v2955
    %v2964 = vmul.f32 %v2908, %v2956
    %v2965 = vmul.f32 %v2909, %v2957
    %v2966 = vmul.f32 %v2910, %v2958
    %v2967 = vmul.f32 %v2911, %v2959
    %v2968 = vpack.c.bf16 %v2961, %v2960
    %v2969 = vpack.c.bf16 %v2963, %v2962
    %v2970 = vpack.c.bf16 %v2965, %v2964
    %v2971 = vpack.c.bf16 %v2967, %v2966
    %v2977 = vsel %vm422, %v2968, 0
    %v2980 = vsel %vm422, %v2969, 0
    %v2983 = vsel %vm422, %v2970, 0
    %v2986 = vsel %vm422, %v2971, 0
    %2988 = vmatprep.subr.bf16.mxu0 0
    %2989 = vmatpush1.bf16.msra.mxu0 %v2744
    %2990 = vmatprep.subr.bf16.mxu0 0
    %2991 = vmatpush1.bf16.msra.mxu0 %v2746
    %2992 = vmatprep.subr.bf16.mxu0 0
    %2993 = vmatpush1.bf16.msra.mxu0 %v2748
    %2994 = vmatprep.subr.bf16.mxu0 0
    %2995 = vmatpush1.bf16.msra.mxu0 %v2750
    %2996 = vmatprep.subr.bf16.mxu0 0
    %2997 = vmatpush1.bf16.msra.mxu0 0
    %2998 = vmatprep.subr.bf16.mxu0 0
    %2999 = vmatpush1.bf16.msra.mxu0 0
    %3000 = vmatprep.subr.bf16.mxu0 0
    %3001 = vmatpush1.bf16.msra.mxu0 0
    %3002 = vmatprep.subr.bf16.mxu0 0
    %3003 = vmatpush1.bf16.msra.mxu0 0
    %3004 = vmatprep.subr.bf16.mxu0 0
    %3005 = vmatpush1.bf16.msra.mxu0 0
    %3006 = vmatprep.subr.bf16.mxu0 0
    %3007 = vmatpush1.bf16.msra.mxu0 0
    %3008 = vmatprep.subr.bf16.mxu0 0
    %3009 = vmatpush1.bf16.msra.mxu0 0
    %3010 = vmatprep.subr.bf16.mxu0 0
    %3011 = vmatpush1.bf16.msra.mxu0 0
    %3012 = vmatprep.subr.bf16.mxu0 0
    %3013 = vmatpush1.bf16.msra.mxu0 0
    %3014 = vmatprep.subr.bf16.mxu0 0
    %3015 = vmatpush1.bf16.msra.mxu0 0
    %3016 = vmatprep.subr.bf16.mxu0 0
    %3017 = vmatpush1.bf16.msra.mxu0 0
    %3018 = vmatprep.subr.bf16.mxu0 0
    %3019 = vmatpush1.bf16.msra.mxu0 0
    %3020 = vmatprep.mubr.bf16.mxu0 0
    %3021 = vmatmul.mubr.bf16.gmra.mrb[0].mxu0 %v2977
    %v3022 = vpop.f32.mrb[0].mxu0
    %v3023 = vadd.f32 0.0, %v3022
    %v3024 = vpop.f32.mrb[0].mxu0
    %v3025 = vpop.f32.mrb[0].mxu0
    %v3026 = vadd.f32 0.0, %v3025
    %v3027 = vpop.f32.mrb[0].mxu0
    %3028 = vmatprep.mubr.bf16.mxu0 0
    %3029 = vmatmul.mubr.bf16.gmra.mrb[0].mxu0 %v2980
    %v3030 = vpop.f32.mrb[0].mxu0
    %v3031 = vadd.f32 0.0, %v3030
    %v3032 = vpop.f32.mrb[0].mxu0
    %v3033 = vpop.f32.mrb[0].mxu0
    %v3034 = vadd.f32 0.0, %v3033
    %v3035 = vpop.f32.mrb[0].mxu0
    %3036 = vmatprep.mubr.bf16.mxu0 0
    %3037 = vmatmul.mubr.bf16.gmra.mrb[0].mxu0 %v2983
    %v3038 = vpop.f32.mrb[0].mxu0
    %v3039 = vadd.f32 0.0, %v3038
    %v3040 = vpop.f32.mrb[0].mxu0
    %v3041 = vpop.f32.mrb[0].mxu0
    %v3042 = vadd.f32 0.0, %v3041
    %v3043 = vpop.f32.mrb[0].mxu0
    %3044 = vmatprep.mubr.bf16.mxu0 0
    %3045 = vmatmul.mubr.bf16.gmra.mrb[0].mxu0 %v2986
    %v3046 = vpop.f32.mrb[0].mxu0
    %v3047 = vadd.f32 0.0, %v3046
    %v3048 = vpop.f32.mrb[0].mxu0
    %v3049 = vpop.f32.mrb[0].mxu0
    %v3050 = vadd.f32 0.0, %v3049
    %v3051 = vpop.f32.mrb[0].mxu0
    %3052 = vdwg.mxu0
    %3061 = vrot.lane.b32.xlu0 %v3023, 96
    %v3062 = vpop.permute.xlu0 %3061
    %3063 = vrot.lane.b32.xlu0 %v3026, 96
    %v3064 = vpop.permute.xlu0 %3063
    %3065 = vrot.lane.b32.xlu0 %v3031, 96
    %v3066 = vpop.permute.xlu0 %3065
    %3067 = vrot.lane.b32.xlu0 %v3034, 96
    %v3068 = vpop.permute.xlu0 %3067
    %3069 = vrot.lane.b32.xlu0 %v3039, 96
    %v3070 = vpop.permute.xlu0 %3069
    %3071 = vrot.lane.b32.xlu0 %v3042, 96
    %v3072 = vpop.permute.xlu0 %3071
    %3073 = vrot.lane.b32.xlu0 %v3047, 96
    %v3074 = vpop.permute.xlu0 %3073
    %3075 = vrot.lane.b32.xlu0 %v3050, 96
    %v3076 = vpop.permute.xlu0 %3075
    %vm3085 = vcmask 917248
    %3086 = vst.msk [vmem:[#allocation2] sm:$0xff] %vm3085, %v3062
    %3087 = vst.msk [vmem:[#allocation2 + $0x8] sm:$0xff] %vm3085, %v3064
    %3088 = vst.msk [vmem:[#allocation2 + $0x10] sm:$0xff] %vm3085, %v3066
    %3089 = vst.msk [vmem:[#allocation2 + $0x18] sm:$0xff] %vm3085, %v3068
    %3090 = vst.msk [vmem:[#allocation2 + $0x20] sm:$0xff] %vm3085, %v3070
    %3091 = vst.msk [vmem:[#allocation2 + $0x28] sm:$0xff] %vm3085, %v3072
    %3092 = vst.msk [vmem:[#allocation2 + $0x30] sm:$0xff] %vm3085, %v3074
    %3093 = vst.msk [vmem:[#allocation2 + $0x38] sm:$0xff] %vm3085, %v3076
    %3094 = vrot.lane.b32.xlu0 %v621, 16
    %v3095 = vpop.permute.xlu0 %3094
    %3096 = vrot.lane.b32.xlu0 %v622, 16
    %v3097 = vpop.permute.xlu0 %3096
    %3098 = vrot.lane.b32.xlu0 %v623, 16
    %v3099 = vpop.permute.xlu0 %3098
    %3100 = vrot.lane.b32.xlu0 %v624, 16
    %v3101 = vpop.permute.xlu0 %3100
    %3102 = vrot.lane.b32.xlu0 %v617, 16
    %v3103 = vpop.permute.xlu0 %3102
    %3104 = vrot.lane.b32.xlu0 %v618, 16
    %v3105 = vpop.permute.xlu0 %3104
    %3106 = vrot.lane.b32.xlu0 %v619, 16
    %v3107 = vpop.permute.xlu0 %3106
    %3108 = vrot.lane.b32.xlu0 %v620, 16
    %v3109 = vpop.permute.xlu0 %3108
    %v3111 = vsel %vm625, %v3095, 0
    %v3114 = vsel %vm625, %v3097, 0
    %v3117 = vsel %vm625, %v3099, 0
    %v3120 = vsel %vm625, %v3101, 0
    %v3123 = vsel %vm625, %v3103, 0
    %v3126 = vsel %vm625, %v3105, 0
    %v3129 = vsel %vm625, %v3107, 0
    %v3132 = vsel %vm625, %v3109, 0
    %3134 = vmatprep.subr.bf16.mxu0 0
    %3135 = vmatpush1.bf16.xpose.msra.mxu0 %v3123
    %3136 = vmatprep.subr.bf16.mxu0 0
    %3137 = vmatpush1.bf16.xpose.msra.mxu0 %v3126
    %3138 = vmatprep.subr.bf16.mxu0 0
    %3139 = vmatpush1.bf16.xpose.msra.mxu0 %v3129
    %3140 = vmatprep.subr.bf16.mxu0 0
    %3141 = vmatpush1.bf16.xpose.msra.mxu0 %v3132
    %3142 = vmatprep.subr.bf16.mxu0 0
    %3143 = vmatpush1.bf16.xpose.msra.mxu0 0
    %3144 = vmatprep.subr.bf16.mxu0 0
    %3145 = vmatpush1.bf16.xpose.msra.mxu0 0
    %3146 = vmatprep.subr.bf16.mxu0 0
    %3147 = vmatpush1.bf16.xpose.msra.mxu0 0
    %3148 = vmatprep.subr.bf16.mxu0 0
    %3149 = vmatpush1.bf16.xpose.msra.mxu0 0
    %3150 = vmatprep.subr.bf16.mxu0 0
    %3151 = vmatpush1.bf16.xpose.msra.mxu0 0
    %3152 = vmatprep.subr.bf16.mxu0 0
    %3153 = vmatpush1.bf16.xpose.msra.mxu0 0
    %3154 = vmatprep.subr.bf16.mxu0 0
    %3155 = vmatpush1.bf16.xpose.msra.mxu0 0
    %3156 = vmatprep.subr.bf16.mxu0 0
    %3157 = vmatpush1.bf16.xpose.msra.mxu0 0
    %3158 = vmatprep.subr.bf16.mxu0 0
    %3159 = vmatpush1.bf16.xpose.msra.mxu0 0
    %3160 = vmatprep.subr.bf16.mxu0 0
    %3161 = vmatpush1.bf16.xpose.msra.mxu0 0
    %3162 = vmatprep.subr.bf16.mxu0 0
    %3163 = vmatpush1.bf16.xpose.msra.mxu0 0
    %3164 = vmatprep.subr.bf16.mxu0 0
    %3165 = vmatpush1.bf16.xpose.msra.mxu0 0
    %3166 = vmatprep.mubr.bf16.mxu0 0
    %3167 = vmatmul.mubr.bf16.gmra.mrb[0].mxu0 %v3111
    %v3168 = vpop.f32.mrb[0].mxu0
    %v3169 = vadd.f32 0.0, %v3168
    %v3170 = vpop.f32.mrb[0].mxu0
    %v3171 = vpop.f32.mrb[0].mxu0
    %v3172 = vadd.f32 0.0, %v3171
    %v3173 = vpop.f32.mrb[0].mxu0
    %3174 = vmatprep.mubr.bf16.mxu0 0
    %3175 = vmatmul.mubr.bf16.gmra.mrb[0].mxu0 %v3114
    %v3176 = vpop.f32.mrb[0].mxu0
    %v3177 = vadd.f32 0.0, %v3176
    %v3178 = vpop.f32.mrb[0].mxu0
    %v3179 = vpop.f32.mrb[0].mxu0
    %v3180 = vadd.f32 0.0, %v3179
    %v3181 = vpop.f32.mrb[0].mxu0
    %3182 = vmatprep.mubr.bf16.mxu0 0
    %3183 = vmatmul.mubr.bf16.gmra.mrb[0].mxu0 %v3117
    %v3184 = vpop.f32.mrb[0].mxu0
    %v3185 = vadd.f32 0.0, %v3184
    %v3186 = vpop.f32.mrb[0].mxu0
    %v3187 = vpop.f32.mrb[0].mxu0
    %v3188 = vadd.f32 0.0, %v3187
    %v3189 = vpop.f32.mrb[0].mxu0
    %3190 = vmatprep.mubr.bf16.mxu0 0
    %3191 = vmatmul.mubr.bf16.gmra.mrb[0].mxu0 %v3120
    %v3192 = vpop.f32.mrb[0].mxu0
    %v3193 = vadd.f32 0.0, %v3192
    %v3194 = vpop.f32.mrb[0].mxu0
    %v3195 = vpop.f32.mrb[0].mxu0
    %v3196 = vadd.f32 0.0, %v3195
    %v3197 = vpop.f32.mrb[0].mxu0
    %3198 = vdwg.mxu0
    %v3199 = vsel %vm575, -9e+15, %v3169
    %v3200 = vsel %vm576, -9e+15, %v3172
    %v3201 = vsel %vm577, -9e+15, %v3177
    %v3202 = vsel %vm578, -9e+15, %v3180
    %v3203 = vsel %vm579, -9e+15, %v3185
    %v3204 = vsel %vm580, -9e+15, %v3188
    %v3205 = vsel %vm581, -9e+15, %v3193
    %v3206 = vsel %vm582, -9e+15, %v3196
    %v3207 = vadd.f32 %v3199, %v609
    %v3208 = vadd.f32 %v3200, %v610
    %v3209 = vadd.f32 %v3201, %v611
    %v3210 = vadd.f32 %v3202, %v612
    %v3211 = vadd.f32 %v3203, %v613
    %v3212 = vadd.f32 %v3204, %v614
    %v3213 = vadd.f32 %v3205, %v615
    %v3214 = vadd.f32 %v3206, %v616
    %v3215 = vsel %vm422, %v3207, -inf
    %3216 = vmax.xlane.f32.xlu0 %v3215
    %v3217 = vpop.xlane.xlu0 %3216
    %v3218 = vsel %vm422, %v3208, -inf
    %3219 = vmax.xlane.f32.xlu0 %v3218
    %v3220 = vpop.xlane.xlu0 %3219
    %v3221 = vsel %vm422, %v3209, -inf
    %3222 = vmax.xlane.f32.xlu0 %v3221
    %v3223 = vpop.xlane.xlu0 %3222
    %v3224 = vsel %vm422, %v3210, -inf
    %3225 = vmax.xlane.f32.xlu0 %v3224
    %v3226 = vpop.xlane.xlu0 %3225
    %v3227 = vsel %vm422, %v3211, -inf
    %3228 = vmax.xlane.f32.xlu0 %v3227
    %v3229 = vpop.xlane.xlu0 %3228
    %v3230 = vsel %vm422, %v3212, -inf
    %3231 = vmax.xlane.f32.xlu0 %v3230
    %v3232 = vpop.xlane.xlu0 %3231
    %v3233 = vsel %vm422, %v3213, -inf
    %3234 = vmax.xlane.f32.xlu0 %v3233
    %v3235 = vpop.xlane.xlu0 %3234
    %v3236 = vsel %vm422, %v3214, -inf
    %3237 = vmax.xlane.f32.xlu0 %v3236
    %v3238 = vpop.xlane.xlu0 %3237
    %v3239 = vsub.f32 %v3207, %v3217
    %v3240 = vsub.f32 %v3208, %v3220
    %v3241 = vsub.f32 %v3209, %v3223
    %v3242 = vsub.f32 %v3210, %v3226
    %v3243 = vsub.f32 %v3211, %v3229
    %v3244 = vsub.f32 %v3212, %v3232
    %v3245 = vsub.f32 %v3213, %v3235
    %v3246 = vsub.f32 %v3214, %v3238
    %v3247 = vmul.f32 %v3239, 1.442695
    %v3248 = vpow.pop %v3247
    %v3249 = vmul.f32 %v3240, 1.442695
    %v3250 = vpow.pop %v3249
    %v3251 = vmul.f32 %v3241, 1.442695
    %v3252 = vpow.pop %v3251
    %v3253 = vmul.f32 %v3242, 1.442695
    %v3254 = vpow.pop %v3253
    %v3255 = vmul.f32 %v3243, 1.442695
    %v3256 = vpow.pop %v3255
    %v3257 = vmul.f32 %v3244, 1.442695
    %v3258 = vpow.pop %v3257
    %v3259 = vmul.f32 %v3245, 1.442695
    %v3260 = vpow.pop %v3259
    %v3261 = vmul.f32 %v3246, 1.442695
    %v3262 = vpow.pop %v3261
    %v3263 = vsel %vm601, %v3248, 0.0
    %v3264 = vsel %vm602, %v3250, 0.0
    %v3265 = vsel %vm603, %v3252, 0.0
    %v3266 = vsel %vm604, %v3254, 0.0
    %v3267 = vsel %vm605, %v3256, 0.0
    %v3268 = vsel %vm606, %v3258, 0.0
    %v3269 = vsel %vm607, %v3260, 0.0
    %v3270 = vsel %vm608, %v3262, 0.0
    %v3271 = vsel %vm422, %v3263, 0.0
    %3272 = vadd.xlane.f32.xlu0 %v3271
    %v3273 = vpop.xlane.xlu0 %3272
    %v3274 = vsel %vm422, %v3264, 0.0
    %3275 = vadd.xlane.f32.xlu0 %v3274
    %v3276 = vpop.xlane.xlu0 %3275
    %v3277 = vsel %vm422, %v3265, 0.0
    %3278 = vadd.xlane.f32.xlu0 %v3277
    %v3279 = vpop.xlane.xlu0 %3278
    %v3280 = vsel %vm422, %v3266, 0.0
    %3281 = vadd.xlane.f32.xlu0 %v3280
    %v3282 = vpop.xlane.xlu0 %3281
    %v3283 = vsel %vm422, %v3267, 0.0
    %3284 = vadd.xlane.f32.xlu0 %v3283
    %v3285 = vpop.xlane.xlu0 %3284
    %v3286 = vsel %vm422, %v3268, 0.0
    %3287 = vadd.xlane.f32.xlu0 %v3286
    %v3288 = vpop.xlane.xlu0 %3287
    %v3289 = vsel %vm422, %v3269, 0.0
    %3290 = vadd.xlane.f32.xlu0 %v3289
    %v3291 = vpop.xlane.xlu0 %3290
    %v3292 = vsel %vm422, %v3270, 0.0
    %3293 = vadd.xlane.f32.xlu0 %v3292
    %v3294 = vpop.xlane.xlu0 %3293
    %vm3295 = vcmp.gt.f32.partialorder %v3273, 0.0
    %vm3296 = vcmp.gt.f32.partialorder %v3276, 0.0
    %vm3297 = vcmp.gt.f32.partialorder %v3279, 0.0
    %vm3298 = vcmp.gt.f32.partialorder %v3282, 0.0
    %vm3299 = vcmp.gt.f32.partialorder %v3285, 0.0
    %vm3300 = vcmp.gt.f32.partialorder %v3288, 0.0
    %vm3301 = vcmp.gt.f32.partialorder %v3291, 0.0
    %vm3302 = vcmp.gt.f32.partialorder %v3294, 0.0
    %v3303 = vrcp.pop %v3273
    %v3304 = vrcp.pop %v3276
    %v3305 = vrcp.pop %v3279
    %v3306 = vrcp.pop %v3282
    %v3307 = vrcp.pop %v3285
    %v3308 = vrcp.pop %v3288
    %v3309 = vrcp.pop %v3291
    %v3310 = vrcp.pop %v3294
    %v3311 = vsel %vm3295, %v3303, 0.0
    %v3312 = vsel %vm3296, %v3304, 0.0
    %v3313 = vsel %vm3297, %v3305, 0.0
    %v3314 = vsel %vm3298, %v3306, 0.0
    %v3315 = vsel %vm3299, %v3307, 0.0
    %v3316 = vsel %vm3300, %v3308, 0.0
    %v3317 = vsel %vm3301, %v3309, 0.0
    %v3318 = vsel %vm3302, %v3310, 0.0
    %v3319 = vmul.f32 %v3263, %v3311
    %v3320 = vmul.f32 %v3264, %v3312
    %v3321 = vmul.f32 %v3265, %v3313
    %v3322 = vmul.f32 %v3266, %v3314
    %v3323 = vmul.f32 %v3267, %v3315
    %v3324 = vmul.f32 %v3268, %v3316
    %v3325 = vmul.f32 %v3269, %v3317
    %v3326 = vmul.f32 %v3270, %v3318
    %v3327 = vpack.c.bf16 %v3320, %v3319
    %v3328 = vpack.c.bf16 %v3322, %v3321
    %v3329 = vpack.c.bf16 %v3324, %v3323
    %v3330 = vpack.c.bf16 %v3326, %v3325
    %v3336 = vsel %vm422, %v3327, 0
    %v3339 = vsel %vm422, %v3328, 0
    %v3342 = vsel %vm422, %v3329, 0
    %v3345 = vsel %vm422, %v3330, 0
    %3347 = vmatprep.subr.bf16.mxu0 0
    %3348 = vmatpush1.bf16.msra.mxu0 %v3103
    %3349 = vmatprep.subr.bf16.mxu0 0
    %3350 = vmatpush1.bf16.msra.mxu0 %v3105
    %3351 = vmatprep.subr.bf16.mxu0 0
    %3352 = vmatpush1.bf16.msra.mxu0 %v3107
    %3353 = vmatprep.subr.bf16.mxu0 0
    %3354 = vmatpush1.bf16.msra.mxu0 %v3109
    %3355 = vmatprep.subr.bf16.mxu0 0
    %3356 = vmatpush1.bf16.msra.mxu0 0
    %3357 = vmatprep.subr.bf16.mxu0 0
    %3358 = vmatpush1.bf16.msra.mxu0 0
    %3359 = vmatprep.subr.bf16.mxu0 0
    %3360 = vmatpush1.bf16.msra.mxu0 0
    %3361 = vmatprep.subr.bf16.mxu0 0
    %3362 = vmatpush1.bf16.msra.mxu0 0
    %3363 = vmatprep.subr.bf16.mxu0 0
    %3364 = vmatpush1.bf16.msra.mxu0 0
    %3365 = vmatprep.subr.bf16.mxu0 0
    %3366 = vmatpush1.bf16.msra.mxu0 0
    %3367 = vmatprep.subr.bf16.mxu0 0
    %3368 = vmatpush1.bf16.msra.mxu0 0
    %3369 = vmatprep.subr.bf16.mxu0 0
    %3370 = vmatpush1.bf16.msra.mxu0 0
    %3371 = vmatprep.subr.bf16.mxu0 0
    %3372 = vmatpush1.bf16.msra.mxu0 0
    %3373 = vmatprep.subr.bf16.mxu0 0
    %3374 = vmatpush1.bf16.msra.mxu0 0
    %3375 = vmatprep.subr.bf16.mxu0 0
    %3376 = vmatpush1.bf16.msra.mxu0 0
    %3377 = vmatprep.subr.bf16.mxu0 0
    %3378 = vmatpush1.bf16.msra.mxu0 0
    %3379 = vmatprep.mubr.bf16.mxu0 0
    %3380 = vmatmul.mubr.bf16.gmra.mrb[0].mxu0 %v3336
    %v3381 = vpop.f32.mrb[0].mxu0
    %v3382 = vadd.f32 0.0, %v3381
    %v3383 = vpop.f32.mrb[0].mxu0
    %v3384 = vpop.f32.mrb[0].mxu0
    %v3385 = vadd.f32 0.0, %v3384
    %v3386 = vpop.f32.mrb[0].mxu0
    %3387 = vmatprep.mubr.bf16.mxu0 0
    %3388 = vmatmul.mubr.bf16.gmra.mrb[0].mxu0 %v3339
    %v3389 = vpop.f32.mrb[0].mxu0
    %v3390 = vadd.f32 0.0, %v3389
    %v3391 = vpop.f32.mrb[0].mxu0
    %v3392 = vpop.f32.mrb[0].mxu0
    %v3393 = vadd.f32 0.0, %v3392
    %v3394 = vpop.f32.mrb[0].mxu0
    %3395 = vmatprep.mubr.bf16.mxu0 0
    %3396 = vmatmul.mubr.bf16.gmra.mrb[0].mxu0 %v3342
    %v3397 = vpop.f32.mrb[0].mxu0
    %v3398 = vadd.f32 0.0, %v3397
    %v3399 = vpop.f32.mrb[0].mxu0
    %v3400 = vpop.f32.mrb[0].mxu0
    %v3401 = vadd.f32 0.0, %v3400
    %v3402 = vpop.f32.mrb[0].mxu0
    %3403 = vmatprep.mubr.bf16.mxu0 0
    %3404 = vmatmul.mubr.bf16.gmra.mrb[0].mxu0 %v3345
    %v3405 = vpop.f32.mrb[0].mxu0
    %v3406 = vadd.f32 0.0, %v3405
    %v3407 = vpop.f32.mrb[0].mxu0
    %v3408 = vpop.f32.mrb[0].mxu0
    %v3409 = vadd.f32 0.0, %v3408
    %v3410 = vpop.f32.mrb[0].mxu0
    %3411 = vdwg.mxu0
    %3420 = vrot.lane.b32.xlu0 %v3382, 112
    %v3421 = vpop.permute.xlu0 %3420
    %3422 = vrot.lane.b32.xlu0 %v3385, 112
    %v3423 = vpop.permute.xlu0 %3422
    %3424 = vrot.lane.b32.xlu0 %v3390, 112
    %v3425 = vpop.permute.xlu0 %3424
    %3426 = vrot.lane.b32.xlu0 %v3393, 112
    %v3427 = vpop.permute.xlu0 %3426
    %3428 = vrot.lane.b32.xlu0 %v3398, 112
    %v3429 = vpop.permute.xlu0 %3428
    %3430 = vrot.lane.b32.xlu0 %v3401, 112
    %v3431 = vpop.permute.xlu0 %3430
    %3432 = vrot.lane.b32.xlu0 %v3406, 112
    %v3433 = vpop.permute.xlu0 %3432
    %3434 = vrot.lane.b32.xlu0 %v3409, 112
    %v3435 = vpop.permute.xlu0 %3434
    %vm3444 = vcmask 1048448
    %3445 = vst.msk [vmem:[#allocation2] sm:$0xff] %vm3444, %v3421
    %3446 = vst.msk [vmem:[#allocation2 + $0x8] sm:$0xff] %vm3444, %v3423
    %3447 = vst.msk [vmem:[#allocation2 + $0x10] sm:$0xff] %vm3444, %v3425
    %3448 = vst.msk [vmem:[#allocation2 + $0x18] sm:$0xff] %vm3444, %v3427
    %3449 = vst.msk [vmem:[#allocation2 + $0x20] sm:$0xff] %vm3444, %v3429
    %3450 = vst.msk [vmem:[#allocation2 + $0x28] sm:$0xff] %vm3444, %v3431
    %3451 = vst.msk [vmem:[#allocation2 + $0x30] sm:$0xff] %vm3444, %v3433
    %3452 = vst.msk [vmem:[#allocation2 + $0x38] sm:$0xff] %vm3444, %v3435
    // Predicated region
    $region22: #{tpu_custom_call.1} parent=1 // pred_check
      _
    $region23: #{tpu_custom_call.1} parent=1 // pred_check_branch
      %3454 = sbr.rel (0) target = $region25
    $region24: #{tpu_custom_call.1} parent=1 // pred_region
      %s3456 = ssub.s32 1024, 1024
      %3457 = vsyncadd [#allocation3], %s3456
      %s3458 = sshll.u32 [#allocation2], 4
      %s3459 = int_to_ptr.vmem [resolvable:$true] %s3458
      %3464 = dma.vmem_to_hbm [thread:$0]  %s3459, 1024, %s5, [#allocation3], 128, 128, 8
    $region25: #{tpu_custom_call.1} parent=1 // pred_fallthru
      _
    // Predicated region
    $region26: #{tpu_custom_call.1} parent=1 // pred_check
      _
    $region27: #{tpu_custom_call.1} parent=1 // pred_check_branch
      %3466 = sbr.rel (0) target = $region29
    $region28: #{tpu_custom_call.1} parent=1 // pred_region
      %3467 = dma.done [#allocation3], 1024
    $region29: #{tpu_custom_call.1} parent=1 // pred_fallthru
      _
    %3468 = vsyncpa [#allocation3], 1

</llo_original>
